<compile_context>
chip_gen: v7x
topology: tpu7x:2x2x1
jax: 0.10.0
libtpu: 0.0.40
codegen_flags: <defaults>
</compile_context>

<pallas_src>
import functools

import jax
import jax.numpy as jnp
from jax.experimental import pallas as pl
from jax.experimental.pallas import tpu as pltpu


def _relu6(v):
    return jnp.minimum(jnp.maximum(v, 0.0), 6.0)


# -----------------------------------------------------------------------------
# Fused MobileVOD forward kernel (one batch element per grid step)
# -----------------------------------------------------------------------------
def _mobilevod_fused_kernel(x_ref, w1_ref, b1_ref, wdw_ref, bdw_ref,
                            wpw_ref, bpw_ref, wh_ref, bh_ref,
                            out_ref, s1_ref, s2_ref, *, H, W, halo):
    HW = H * W
    span = HW + 2 * W            # rows covering dy in {-1,0,+1} for all outputs
    base = halo - W              # multiple of 8 (halo and W are)
    c1 = s1_ref.shape[-1]
    c2 = s2_ref.shape[-1]

    # Output-pixel column each span-row maps to (pattern repeats with period W).
    # Computed once and shared by all three 3x3 convs.
    q = jax.lax.broadcasted_iota(jnp.int32, (span, 1), 0)
    if W & (W - 1) == 0:
        col = jnp.bitwise_and(q, W - 1)
    else:
        col = jax.lax.rem(q, W)
    ok_l = col >= 1              # left neighbour (dx=-1) is a real pixel
    ok_r = col <= W - 2          # right neighbour (dx=+1) is a real pixel

    def tap_patches(src):
        """9 (HW, C) patches of a 3x3 / pad=1 conv in tap-major (dy, dx) order.

        The dx = -1/0/+1 shifted+masked views are built once (2 unaligned
        slices + 2 selects); every tap is then a sublane-aligned static slice
        of one of them (start = dy*W, a multiple of 8).
        """
        ctr = src[base:base + span, :]
        lft = src[base - 1:base - 1 + span, :]
        rgt = src[base + 1:base + 1 + span, :]
        lft = jnp.where(ok_l, lft, jnp.zeros_like(lft))
        rgt = jnp.where(ok_r, rgt, jnp.zeros_like(rgt))
        patches = []
        for dy in range(3):                      # dy = -1, 0, +1
            off = dy * W
            for buf in (lft, ctr, rgt):          # dx = -1, 0, +1
                patches.append(buf[off:off + HW, :])
        return patches

    def conv3x3_mxu(src, wflat_ref, b_ref):
        """3x3 conv as a single MXU dot: taps folded into the contraction dim."""
        slab = jnp.concatenate(tap_patches(src), axis=-1)      # (HW, 9*C) bf16
        return jnp.dot(slab, wflat_ref[...],
                       preferred_element_type=jnp.float32) + b_ref[...]

    # Zero only the halo rows; the interior is fully overwritten every step.
    s1_ref[:halo, :] = jnp.zeros((halo, c1), s1_ref.dtype)
    s1_ref[halo + HW:, :] = jnp.zeros((halo, c1), s1_ref.dtype)
    s2_ref[:halo, :] = jnp.zeros((halo, c2), s2_ref.dtype)
    s2_ref[halo + HW:, :] = jnp.zeros((halo, c2), s2_ref.dtype)

    # ---- encoder ----
    # conv1: full 3x3, cin -> c1, ReLU6 (one fused-K MXU dot, bf16 operands).
    act1 = _relu6(conv3x3_mxu(x_ref[...], w1_ref, b1_ref))       # (HW, c1) f32
    s1_ref[halo:halo + HW, :] = act1

    # depthwise 3x3 + ReLU6 (VPU, f32; 9 aligned-tap multiply-adds).
    # TODO(synk): at c1=16 the VPU lanes are only 12% occupied; pad channels to
    #             128 (or lane-pack spatial positions) when scaling up.
    acc = None
    for k, patch in enumerate(tap_patches(s1_ref[...])):
        term = patch * wdw_ref[k]
        acc = term if acc is None else acc + term
    act_dw = _relu6(acc + bdw_ref[...])

    # pointwise 1x1 + ReLU6 (single MXU dot).
    act_pw = _relu6(jnp.dot(act_dw.astype(jnp.bfloat16), wpw_ref[...],
                            preferred_element_type=jnp.float32) + bpw_ref[...])
    s2_ref[halo:halo + HW, :] = act_pw.astype(s2_ref.dtype)      # bf16 scratch

    # ---- SSD decoder: conf + loc heads fused into one lane-dense 3x3 conv ----
    out_ref[...] = conv3x3_mxu(s2_ref[...], wh_ref, bh_ref).astype(out_ref.dtype)


# -----------------------------------------------------------------------------
# Parameters (deterministic, synthetic) — weights stored tap-major (9, Cin, Cout)
# -----------------------------------------------------------------------------
def init_mobilevod_params(key, in_ch=3, c1=16, c2=32, num_anchors=3,
                          num_classes=5):
    ks = jax.random.split(key, 8)
    cin_pad = ((in_ch + 7) // 8) * 8
    n_head = num_anchors * num_classes + num_anchors * 4
    cout_pad = ((n_head + 127) // 128) * 128       # lane-dense head output

    def tap_conv_w(k, cin, cout, cin_store):
        w = jax.random.normal(k, (9, cin, cout), jnp.float32) / jnp.sqrt(9.0 * cin)
        if cin_store > cin:
            w = jnp.pad(w, ((0, 0), (0, cin_store - cin), (0, 0)))
        return w

    conf_w = tap_conv_w(ks[6], c2, num_anchors * num_classes, c2)
    loc_w = tap_conv_w(ks[7], c2, num_anchors * 4, c2)
    head_w = jnp.concatenate([conf_w, loc_w], axis=-1)          # (9, c2, n_head)
    head_w = jnp.pad(head_w, ((0, 0), (0, 0), (0, cout_pad - n_head)))

    params = {
        # encoder
        "w1": tap_conv_w(ks[0], in_ch, c1, cin_pad).astype(jnp.bfloat16),
        "b1": 0.01 * jax.random.normal(ks[1], (1, c1), jnp.float32),
        "dw_w": jax.random.normal(ks[2], (9, 1, c1), jnp.float32) / 3.0,
        "dw_b": 0.01 * jax.random.normal(ks[3], (1, c1), jnp.float32),
        "pw_w": (jax.random.normal(ks[4], (c1, c2), jnp.float32)
                 / jnp.sqrt(float(c1))).astype(jnp.bfloat16),
        "pw_b": 0.01 * jax.random.normal(ks[5], (1, c2), jnp.float32),
        # fused SSD decoder heads (conf channels first, then loc, zero-padded)
        "head_w": head_w.astype(jnp.bfloat16),
        "head_b": jnp.zeros((1, cout_pad), jnp.float32),
    }
    meta = {"num_anchors": num_anchors, "num_classes": num_classes,
            "cin_pad": cin_pad, "n_head": n_head}
    return params, meta


# -----------------------------------------------------------------------------
# Forward pass
# -----------------------------------------------------------------------------
def mobilevod_forward(params, meta, seq_nchw):
    """seq: (N, 3, H, W) -> (confidences (N, H*W*A, NC), locations (N, H*W*A, 4))."""
    A, NC = meta["num_anchors"], meta["num_classes"]
    cin_pad = meta["cin_pad"]
    x = jnp.transpose(seq_nchw, (0, 2, 3, 1))                   # NHWC
    N, H, W, Cin = x.shape
    HW = H * W
    halo = ((W + 1 + 7) // 8) * 8          # sublane-aligned zero halo rows
    R0 = HW + 2 * halo

    c1 = params["b1"].shape[-1]
    c2 = params["pw_b"].shape[-1]
    cout_pad = params["head_b"].shape[-1]

    # Host-side prep: flat spatial rows, zero halo rows, pad Cin, cast to bf16
    # (conv1 computes in bf16 anyway -> halves the per-step input DMA).
    xh = jnp.pad(x.astype(jnp.bfloat16).reshape(N, HW, Cin),
                 ((0, 0), (halo, halo), (0, cin_pad - Cin)))

    # Repack tap-major (9, Cin, Cout) conv weights to (9*Cin, Cout) so each
    # 3x3 conv is a single fused-K MXU dot inside the kernel.
    w1_flat = params["w1"].reshape(9 * cin_pad, c1)
    head_w_flat = params["head_w"].reshape(9 * c2, cout_pad)

    out = pl.pallas_call(
        functools.partial(_mobilevod_fused_kernel, H=H, W=W, halo=halo),
        out_shape=jax.ShapeDtypeStruct((N, HW, cout_pad), jnp.bfloat16),
        grid_spec=pltpu.PrefetchScalarGridSpec(
            num_scalar_prefetch=0,
            grid=(N,),
            in_specs=[
                pl.BlockSpec((None, R0, cin_pad), lambda n: (n, 0, 0)),
                pl.BlockSpec((9 * cin_pad, c1), lambda n: (0, 0)),
                pl.BlockSpec((1, c1), lambda n: (0, 0)),
                pl.BlockSpec((9, 1, c1), lambda n: (0, 0, 0)),
                pl.BlockSpec((1, c1), lambda n: (0, 0)),
                pl.BlockSpec((c1, c2), lambda n: (0, 0)),
                pl.BlockSpec((1, c2), lambda n: (0, 0)),
                pl.BlockSpec((9 * c2, cout_pad), lambda n: (0, 0)),
                pl.BlockSpec((1, cout_pad), lambda n: (0, 0)),
            ],
            out_specs=pl.BlockSpec((None, HW, cout_pad), lambda n: (n, 0, 0)),
            scratch_shapes=[
                pltpu.VMEM((R0, c1), jnp.float32),    # conv1 out (f32: VPU depthwise)
                pltpu.VMEM((R0, c2), jnp.bfloat16),   # pointwise out (bf16: MXU head)
            ],
        ),
        compiler_params=pltpu.CompilerParams(
            dimension_semantics=("parallel",),
            vmem_limit_bytes=32 * 1024 * 1024),
    )(xh, w1_flat, params["b1"], params["dw_w"], params["dw_b"],
      params["pw_w"], params["pw_b"], head_w_flat, params["head_b"])

    # PyTorch: permute(0,2,3,1).view(N, -1, C) — NHWC layout already matches.
    conf = out[:, :, :A * NC].astype(jnp.float32).reshape(N, HW * A, NC)
    loc = out[:, :, A * NC:A * (NC + 4)].astype(jnp.float32).reshape(N, HW * A, 4)
    return conf, loc


# -----------------------------------------------------------------------------
# Pure-JAX reference (for numerical sanity checking only)
# -----------------------------------------------------------------------------
def _forward_reference(params, meta, seq_nchw):
    A, NC = meta["num_anchors"], meta["num_classes"]
    x = jnp.transpose(seq_nchw, (0, 2, 3, 1)).astype(jnp.float32)
    N, H, W, _ = x.shape
    dn = ("NHWC", "HWIO", "NHWC")
    hp = jax.lax.Precision.HIGHEST
    relu6 = lambda v: jnp.clip(v, 0.0, 6.0)

    def conv3x3(inp, w9, b):
        cin = inp.shape[-1]
        k = w9.astype(jnp.float32)[:, :cin, :].reshape(3, 3, cin, -1)
        y = jax.lax.conv_general_dilated(inp, k, (1, 1), "SAME",
                                         dimension_numbers=dn, precision=hp)
        return y + b.reshape(1, 1, 1, -1)

    y = relu6(conv3x3(x, params["w1"], params["b1"]))
    kdw = params["dw_w"].reshape(3, 3, 1, -1)
    y = jax.lax.conv_general_dilated(y, kdw, (1, 1), "SAME",
                                     dimension_numbers=dn,
                                     feature_group_count=y.shape[-1],
                                     precision=hp)
    y = relu6(y + params["dw_b"].reshape(1, 1, 1, -1))
    y = relu6(jnp.einsum("nhwc,cd->nhwd", y,
                         params["pw_w"].astype(jnp.float32), precision=hp)
              + params["pw_b"].reshape(1, 1, 1, -1))
    h = conv3x3(y, params["head_w"], params["head_b"])
    out = h.reshape(N, H * W, -1)
    conf = out[..., :A * NC].reshape(N, H * W * A, NC)
    loc = out[..., A * NC:A * (NC + 4)].reshape(N, H * W * A, 4)
    return conf, loc


if __name__ == "__main__":
    key = jax.random.PRNGKey(0)
    k_param, k_input = jax.random.split(key)

    params, meta = init_mobilevod_params(k_param)
    seq = jax.random.normal(k_input, (2, 3, 16, 16), jnp.float32)   # NCHW

    fwd = jax.jit(functools.partial(mobilevod_forward, params, meta))
    confidences, locations = fwd(seq)
    jax.block_until_ready((confidences, locations))

    A, NC = meta["num_anchors"], meta["num_classes"]
    assert confidences.shape == (2, 16 * 16 * A, NC)
    assert locations.shape == (2, 16 * 16 * A, 4)
    assert bool(jnp.all(jnp.isfinite(confidences)))
    assert bool(jnp.all(jnp.isfinite(locations)))

    # Numerical sanity check vs pure-JAX reference (kernel uses bf16 MXU
    # operands, bf16 activation scratch and bf16 writeback -> loose tolerance).
    conf_ref, loc_ref = _forward_reference(params, meta, seq)
    err = max(float(jnp.max(jnp.abs(confidences - conf_ref))),
              float(jnp.max(jnp.abs(locations - loc_ref))))
    assert err < 0.25, f"max abs error vs reference: {err}"

    print("KERNEL_OK")
</pallas_src>

<mosaic_0001>
module attributes {stable_mosaic.version = 11 : i64} {
  func.func @_mobilevod_fused_kernel(%arg0: i32, %arg1: memref<1x304x8xbf16, #tpu.memory_space<vmem>>, %arg2: memref<72x16xbf16, #tpu.memory_space<vmem>>, %arg3: memref<1x16xf32, #tpu.memory_space<vmem>>, %arg4: memref<9x1x16xf32, #tpu.memory_space<vmem>>, %arg5: memref<1x16xf32, #tpu.memory_space<vmem>>, %arg6: memref<16x32xbf16, #tpu.memory_space<vmem>>, %arg7: memref<1x32xf32, #tpu.memory_space<vmem>>, %arg8: memref<288x128xbf16, #tpu.memory_space<vmem>>, %arg9: memref<1x128xf32, #tpu.memory_space<vmem>>, %arg10: memref<1x256x128xbf16, #tpu.memory_space<vmem>>, %arg11: memref<304x16xf32, #tpu.memory_space<vmem>>, %arg12: memref<304x32xbf16, #tpu.memory_space<vmem>>) attributes {dimension_semantics = [#tpu.dimension_semantics<parallel>], iteration_bounds = array<i64: 2>, scalar_prefetch = 0 : i64, scratch_operands = 2 : i64, tpu.core_type = #tpu.core_type<tc>, window_params = [{transform_indices = @transform_0, window_bounds = array<i64: 1, 304, 8>}, {pipeline_mode = #tpu.pipeline_mode<synchronous>, transform_indices = @transform_1, window_bounds = array<i64: 72, 16>}, {pipeline_mode = #tpu.pipeline_mode<synchronous>, transform_indices = @transform_2, window_bounds = array<i64: 1, 16>}, {pipeline_mode = #tpu.pipeline_mode<synchronous>, transform_indices = @transform_3, window_bounds = array<i64: 9, 1, 16>}, {pipeline_mode = #tpu.pipeline_mode<synchronous>, transform_indices = @transform_4, window_bounds = array<i64: 1, 16>}, {pipeline_mode = #tpu.pipeline_mode<synchronous>, transform_indices = @transform_5, window_bounds = array<i64: 16, 32>}, {pipeline_mode = #tpu.pipeline_mode<synchronous>, transform_indices = @transform_6, window_bounds = array<i64: 1, 32>}, {pipeline_mode = #tpu.pipeline_mode<synchronous>, transform_indices = @transform_7, window_bounds = array<i64: 288, 128>}, {pipeline_mode = #tpu.pipeline_mode<synchronous>, transform_indices = @transform_8, window_bounds = array<i64: 1, 128>}, {transform_indices = @transform_9, window_bounds = array<i64: 1, 256, 128>}]} {
    %0 = tpu.iota {dimensions = array<i32: 0>} : vector<288x1xi32>
    %c15_i32 = arith.constant 15 : i32
    %1 = vector.broadcast %c15_i32 : i32 to vector<288x1xi32>
    %2 = arith.andi %0, %1 : vector<288x1xi32>
    %c1_i32 = arith.constant 1 : i32
    %3 = vector.broadcast %c1_i32 : i32 to vector<288x1xi32>
    %4 = arith.cmpi sge, %2, %3 : vector<288x1xi32>
    %c14_i32 = arith.constant 14 : i32
    %5 = vector.broadcast %c14_i32 : i32 to vector<288x1xi32>
    %6 = arith.cmpi sle, %2, %5 : vector<288x1xi32>
    %cst = arith.constant 0.000000e+00 : f32
    %7 = vector.broadcast %cst : f32 to vector<24x16xf32>
    %c0 = arith.constant 0 : index
    %c0_0 = arith.constant 0 : index
    %8 = vector.load %arg11[%c0, %c0_0] : memref<304x16xf32, #tpu.memory_space<vmem>>, vector<24x16xf32>
    tpu.vector_store %arg11[%c0, %c0_0], %7 {strides = array<i32>} : memref<304x16xf32, #tpu.memory_space<vmem>>, vector<24x16xf32>,
    %cst_1 = arith.constant 0.000000e+00 : f32
    %9 = vector.broadcast %cst_1 : f32 to vector<24x16xf32>
    %c280 = arith.constant 280 : index
    %c0_2 = arith.constant 0 : index
    %10 = vector.load %arg11[%c280, %c0_2] : memref<304x16xf32, #tpu.memory_space<vmem>>, vector<24x16xf32>
    tpu.vector_store %arg11[%c280, %c0_2], %9 {strides = array<i32>} : memref<304x16xf32, #tpu.memory_space<vmem>>, vector<24x16xf32>,
    %cst_3 = arith.constant 0.000000e+00 : bf16
    %11 = vector.broadcast %cst_3 : bf16 to vector<24x32xbf16>
    %c0_4 = arith.constant 0 : index
    %c0_5 = arith.constant 0 : index
    %12 = vector.load %arg12[%c0_4, %c0_5] : memref<304x32xbf16, #tpu.memory_space<vmem>>, vector<24x32xbf16>
    tpu.vector_store %arg12[%c0_4, %c0_5], %11 {strides = array<i32>} : memref<304x32xbf16, #tpu.memory_space<vmem>>, vector<24x32xbf16>,
    %cst_6 = arith.constant 0.000000e+00 : bf16
    %13 = vector.broadcast %cst_6 : bf16 to vector<24x32xbf16>
    %c280_7 = arith.constant 280 : index
    %c0_8 = arith.constant 0 : index
    %14 = vector.load %arg12[%c280_7, %c0_8] : memref<304x32xbf16, #tpu.memory_space<vmem>>, vector<24x32xbf16>
    tpu.vector_store %arg12[%c280_7, %c0_8], %13 {strides = array<i32>} : memref<304x32xbf16, #tpu.memory_space<vmem>>, vector<24x32xbf16>,
    %c0_9 = arith.constant 0 : index
    %c0_10 = arith.constant 0 : index
    %c0_11 = arith.constant 0 : index
    %15 = vector.load %arg1[%c0_9, %c0_10, %c0_11] : memref<1x304x8xbf16, #tpu.memory_space<vmem>>, vector<1x304x8xbf16>
    %16 = vector.shape_cast %15 : vector<1x304x8xbf16> to vector<304x8xbf16>
    %17 = vector.extract_strided_slice %16 {offsets = [8, 0], sizes = [288, 8], strides = [1, 1]} : vector<304x8xbf16> to vector<288x8xbf16>
    %18 = vector.extract_strided_slice %16 {offsets = [7, 0], sizes = [288, 8], strides = [1, 1]} : vector<304x8xbf16> to vector<288x8xbf16>
    %19 = vector.extract_strided_slice %16 {offsets = [9, 0], sizes = [288, 8], strides = [1, 1]} : vector<304x8xbf16> to vector<288x8xbf16>
    %cst_12 = arith.constant 0.000000e+00 : bf16
    %20 = vector.broadcast %cst_12 : bf16 to vector<288x8xbf16>
    %21 = vector.shape_cast %4 : vector<288x1xi1> to vector<288x1xi1>
    %22 = vector.broadcast %21 : vector<288x1xi1> to vector<288x8xi1>
    %23 = arith.select %22, %18, %20 : vector<288x8xi1>, vector<288x8xbf16>
    %cst_13 = arith.constant 0.000000e+00 : bf16
    %24 = vector.broadcast %cst_13 : bf16 to vector<288x8xbf16>
    %25 = vector.shape_cast %6 : vector<288x1xi1> to vector<288x1xi1>
    %26 = vector.broadcast %25 : vector<288x1xi1> to vector<288x8xi1>
    %27 = arith.select %26, %19, %24 : vector<288x8xi1>, vector<288x8xbf16>
    %28 = vector.extract_strided_slice %23 {offsets = [0, 0], sizes = [256, 8], strides = [1, 1]} : vector<288x8xbf16> to vector<256x8xbf16>
    %29 = vector.extract_strided_slice %17 {offsets = [0, 0], sizes = [256, 8], strides = [1, 1]} : vector<288x8xbf16> to vector<256x8xbf16>
    %30 = vector.extract_strided_slice %27 {offsets = [0, 0], sizes = [256, 8], strides = [1, 1]} : vector<288x8xbf16> to vector<256x8xbf16>
    %31 = vector.extract_strided_slice %23 {offsets = [16, 0], sizes = [256, 8], strides = [1, 1]} : vector<288x8xbf16> to vector<256x8xbf16>
    %32 = vector.extract_strided_slice %17 {offsets = [16, 0], sizes = [256, 8], strides = [1, 1]} : vector<288x8xbf16> to vector<256x8xbf16>
    %33 = vector.extract_strided_slice %27 {offsets = [16, 0], sizes = [256, 8], strides = [1, 1]} : vector<288x8xbf16> to vector<256x8xbf16>
    %34 = vector.extract_strided_slice %23 {offsets = [32, 0], sizes = [256, 8], strides = [1, 1]} : vector<288x8xbf16> to vector<256x8xbf16>
    %35 = vector.extract_strided_slice %17 {offsets = [32, 0], sizes = [256, 8], strides = [1, 1]} : vector<288x8xbf16> to vector<256x8xbf16>
    %36 = vector.extract_strided_slice %27 {offsets = [32, 0], sizes = [256, 8], strides = [1, 1]} : vector<288x8xbf16> to vector<256x8xbf16>
    %37 = tpu.concatenate %28, %29, %30, %31, %32, %33, %34, %35, %36 in 1 : vector<256x8xbf16>, vector<256x8xbf16>, vector<256x8xbf16>, vector<256x8xbf16>, vector<256x8xbf16>, vector<256x8xbf16>, vector<256x8xbf16>, vector<256x8xbf16>, vector<256x8xbf16> -> vector<256x72xbf16>
    %c0_14 = arith.constant 0 : index
    %c0_15 = arith.constant 0 : index
    %38 = vector.load %arg2[%c0_14, %c0_15] : memref<72x16xbf16, #tpu.memory_space<vmem>>, vector<72x16xbf16>
    %cst_16 = arith.constant dense<0.000000e+00> : vector<256x16xf32>
    %39 = tpu.matmul %37, %38, %cst_16 {dimension_numbers = #tpu.dot_dimension_numbers<[1], [0], [0], [1], [0, 0, 1, 1], [], []>} : vector<256x72xbf16>, vector<72x16xbf16>, vector<256x16xf32> -> vector<256x16xf32>
    %c0_17 = arith.constant 0 : index
    %c0_18 = arith.constant 0 : index
    %40 = vector.load %arg3[%c0_17, %c0_18] : memref<1x16xf32, #tpu.memory_space<vmem>>, vector<1x16xf32>
    %41 = vector.broadcast %40 : vector<1x16xf32> to vector<256x16xf32>
    %42 = arith.addf %39, %41 : vector<256x16xf32>
    %cst_19 = arith.constant 0.000000e+00 : f32
    %43 = vector.broadcast %cst_19 : f32 to vector<256x16xf32>
    %44 = arith.maximumf %42, %43 : vector<256x16xf32>
    %cst_20 = arith.constant 6.000000e+00 : f32
    %45 = vector.broadcast %cst_20 : f32 to vector<256x16xf32>
    %46 = arith.minimumf %44, %45 : vector<256x16xf32>
    %c24 = arith.constant 24 : index
    %c0_21 = arith.constant 0 : index
    %47 = vector.load %arg11[%c24, %c0_21] : memref<304x16xf32, #tpu.memory_space<vmem>>, vector<256x16xf32>
    tpu.vector_store %arg11[%c24, %c0_21], %46 {strides = array<i32>} : memref<304x16xf32, #tpu.memory_space<vmem>>, vector<256x16xf32>,
    %c0_22 = arith.constant 0 : index
    %c0_23 = arith.constant 0 : index
    %48 = vector.load %arg11[%c0_22, %c0_23] : memref<304x16xf32, #tpu.memory_space<vmem>>, vector<304x16xf32>
    %49 = vector.extract_strided_slice %48 {offsets = [8, 0], sizes = [288, 16], strides = [1, 1]} : vector<304x16xf32> to vector<288x16xf32>
    %50 = vector.extract_strided_slice %48 {offsets = [7, 0], sizes = [288, 16], strides = [1, 1]} : vector<304x16xf32> to vector<288x16xf32>
    %51 = vector.extract_strided_slice %48 {offsets = [9, 0], sizes = [288, 16], strides = [1, 1]} : vector<304x16xf32> to vector<288x16xf32>
    %cst_24 = arith.constant 0.000000e+00 : f32
    %52 = vector.broadcast %cst_24 : f32 to vector<288x16xf32>
    %53 = vector.shape_cast %4 : vector<288x1xi1> to vector<288x1xi1>
    %54 = vector.broadcast %53 : vector<288x1xi1> to vector<288x16xi1>
    %55 = arith.select %54, %50, %52 : vector<288x16xi1>, vector<288x16xf32>
    %cst_25 = arith.constant 0.000000e+00 : f32
    %56 = vector.broadcast %cst_25 : f32 to vector<288x16xf32>
    %57 = vector.shape_cast %6 : vector<288x1xi1> to vector<288x1xi1>
    %58 = vector.broadcast %57 : vector<288x1xi1> to vector<288x16xi1>
    %59 = arith.select %58, %51, %56 : vector<288x16xi1>, vector<288x16xf32>
    %60 = vector.extract_strided_slice %55 {offsets = [0, 0], sizes = [256, 16], strides = [1, 1]} : vector<288x16xf32> to vector<256x16xf32>
    %61 = vector.extract_strided_slice %49 {offsets = [0, 0], sizes = [256, 16], strides = [1, 1]} : vector<288x16xf32> to vector<256x16xf32>
    %62 = vector.extract_strided_slice %59 {offsets = [0, 0], sizes = [256, 16], strides = [1, 1]} : vector<288x16xf32> to vector<256x16xf32>
    %63 = vector.extract_strided_slice %55 {offsets = [16, 0], sizes = [256, 16], strides = [1, 1]} : vector<288x16xf32> to vector<256x16xf32>
    %64 = vector.extract_strided_slice %49 {offsets = [16, 0], sizes = [256, 16], strides = [1, 1]} : vector<288x16xf32> to vector<256x16xf32>
    %65 = vector.extract_strided_slice %59 {offsets = [16, 0], sizes = [256, 16], strides = [1, 1]} : vector<288x16xf32> to vector<256x16xf32>
    %66 = vector.extract_strided_slice %55 {offsets = [32, 0], sizes = [256, 16], strides = [1, 1]} : vector<288x16xf32> to vector<256x16xf32>
    %67 = vector.extract_strided_slice %49 {offsets = [32, 0], sizes = [256, 16], strides = [1, 1]} : vector<288x16xf32> to vector<256x16xf32>
    %68 = vector.extract_strided_slice %59 {offsets = [32, 0], sizes = [256, 16], strides = [1, 1]} : vector<288x16xf32> to vector<256x16xf32>
    %c0_26 = arith.constant 0 : index
    %c0_27 = arith.constant 0 : index
    %c0_28 = arith.constant 0 : index
    %69 = vector.load %arg4[%c0_26, %c0_27, %c0_28] : memref<9x1x16xf32, #tpu.memory_space<vmem>>, vector<1x1x16xf32>
    %70 = vector.shape_cast %69 : vector<1x1x16xf32> to vector<1x16xf32>
    %71 = vector.broadcast %70 : vector<1x16xf32> to vector<256x16xf32>
    %72 = arith.mulf %60, %71 : vector<256x16xf32>
    %c1 = arith.constant 1 : index
    %c0_29 = arith.constant 0 : index
    %c0_30 = arith.constant 0 : index
    %73 = vector.load %arg4[%c1, %c0_29, %c0_30] : memref<9x1x16xf32, #tpu.memory_space<vmem>>, vector<1x1x16xf32>
    %74 = vector.shape_cast %73 : vector<1x1x16xf32> to vector<1x16xf32>
    %75 = vector.broadcast %74 : vector<1x16xf32> to vector<256x16xf32>
    %76 = arith.mulf %61, %75 : vector<256x16xf32>
    %77 = arith.addf %72, %76 : vector<256x16xf32>
    %c2 = arith.constant 2 : index
    %c0_31 = arith.constant 0 : index
    %c0_32 = arith.constant 0 : index
    %78 = vector.load %arg4[%c2, %c0_31, %c0_32] : memref<9x1x16xf32, #tpu.memory_space<vmem>>, vector<1x1x16xf32>
    %79 = vector.shape_cast %78 : vector<1x1x16xf32> to vector<1x16xf32>
    %80 = vector.broadcast %79 : vector<1x16xf32> to vector<256x16xf32>
    %81 = arith.mulf %62, %80 : vector<256x16xf32>
    %82 = arith.addf %77, %81 : vector<256x16xf32>
    %c3 = arith.constant 3 : index
    %c0_33 = arith.constant 0 : index
    %c0_34 = arith.constant 0 : index
    %83 = vector.load %arg4[%c3, %c0_33, %c0_34] : memref<9x1x16xf32, #tpu.memory_space<vmem>>, vector<1x1x16xf32>
    %84 = vector.shape_cast %83 : vector<1x1x16xf32> to vector<1x16xf32>
    %85 = vector.broadcast %84 : vector<1x16xf32> to vector<256x16xf32>
    %86 = arith.mulf %63, %85 : vector<256x16xf32>
    %87 = arith.addf %82, %86 : vector<256x16xf32>
    %c4 = arith.constant 4 : index
    %c0_35 = arith.constant 0 : index
    %c0_36 = arith.constant 0 : index
    %88 = vector.load %arg4[%c4, %c0_35, %c0_36] : memref<9x1x16xf32, #tpu.memory_space<vmem>>, vector<1x1x16xf32>
    %89 = vector.shape_cast %88 : vector<1x1x16xf32> to vector<1x16xf32>
    %90 = vector.broadcast %89 : vector<1x16xf32> to vector<256x16xf32>
    %91 = arith.mulf %64, %90 : vector<256x16xf32>
    %92 = arith.addf %87, %91 : vector<256x16xf32>
    %c5 = arith.constant 5 : index
    %c0_37 = arith.constant 0 : index
    %c0_38 = arith.constant 0 : index
    %93 = vector.load %arg4[%c5, %c0_37, %c0_38] : memref<9x1x16xf32, #tpu.memory_space<vmem>>, vector<1x1x16xf32>
    %94 = vector.shape_cast %93 : vector<1x1x16xf32> to vector<1x16xf32>
    %95 = vector.broadcast %94 : vector<1x16xf32> to vector<256x16xf32>
    %96 = arith.mulf %65, %95 : vector<256x16xf32>
    %97 = arith.addf %92, %96 : vector<256x16xf32>
    %c6 = arith.constant 6 : index
    %c0_39 = arith.constant 0 : index
    %c0_40 = arith.constant 0 : index
    %98 = vector.load %arg4[%c6, %c0_39, %c0_40] : memref<9x1x16xf32, #tpu.memory_space<vmem>>, vector<1x1x16xf32>
    %99 = vector.shape_cast %98 : vector<1x1x16xf32> to vector<1x16xf32>
    %100 = vector.broadcast %99 : vector<1x16xf32> to vector<256x16xf32>
    %101 = arith.mulf %66, %100 : vector<256x16xf32>
    %102 = arith.addf %97, %101 : vector<256x16xf32>
    %c7 = arith.constant 7 : index
    %c0_41 = arith.constant 0 : index
    %c0_42 = arith.constant 0 : index
    %103 = vector.load %arg4[%c7, %c0_41, %c0_42] : memref<9x1x16xf32, #tpu.memory_space<vmem>>, vector<1x1x16xf32>
    %104 = vector.shape_cast %103 : vector<1x1x16xf32> to vector<1x16xf32>
    %105 = vector.broadcast %104 : vector<1x16xf32> to vector<256x16xf32>
    %106 = arith.mulf %67, %105 : vector<256x16xf32>
    %107 = arith.addf %102, %106 : vector<256x16xf32>
    %c8 = arith.constant 8 : index
    %c0_43 = arith.constant 0 : index
    %c0_44 = arith.constant 0 : index
    %108 = vector.load %arg4[%c8, %c0_43, %c0_44] : memref<9x1x16xf32, #tpu.memory_space<vmem>>, vector<1x1x16xf32>
    %109 = vector.shape_cast %108 : vector<1x1x16xf32> to vector<1x16xf32>
    %110 = vector.broadcast %109 : vector<1x16xf32> to vector<256x16xf32>
    %111 = arith.mulf %68, %110 : vector<256x16xf32>
    %112 = arith.addf %107, %111 : vector<256x16xf32>
    %c0_45 = arith.constant 0 : index
    %c0_46 = arith.constant 0 : index
    %113 = vector.load %arg5[%c0_45, %c0_46] : memref<1x16xf32, #tpu.memory_space<vmem>>, vector<1x16xf32>
    %114 = vector.broadcast %113 : vector<1x16xf32> to vector<256x16xf32>
    %115 = arith.addf %112, %114 : vector<256x16xf32>
    %cst_47 = arith.constant 0.000000e+00 : f32
    %116 = vector.broadcast %cst_47 : f32 to vector<256x16xf32>
    %117 = arith.maximumf %115, %116 : vector<256x16xf32>
    %cst_48 = arith.constant 6.000000e+00 : f32
    %118 = vector.broadcast %cst_48 : f32 to vector<256x16xf32>
    %119 = arith.minimumf %117, %118 : vector<256x16xf32>
    %120 = arith.truncf %119 : vector<256x16xf32> to vector<256x16xbf16>
    %c0_49 = arith.constant 0 : index
    %c0_50 = arith.constant 0 : index
    %121 = vector.load %arg6[%c0_49, %c0_50] : memref<16x32xbf16, #tpu.memory_space<vmem>>, vector<16x32xbf16>
    %cst_51 = arith.constant dense<0.000000e+00> : vector<256x32xf32>
    %122 = tpu.matmul %120, %121, %cst_51 {dimension_numbers = #tpu.dot_dimension_numbers<[1], [0], [0], [1], [0, 0, 1, 1], [], []>} : vector<256x16xbf16>, vector<16x32xbf16>, vector<256x32xf32> -> vector<256x32xf32>
    %c0_52 = arith.constant 0 : index
    %c0_53 = arith.constant 0 : index
    %123 = vector.load %arg7[%c0_52, %c0_53] : memref<1x32xf32, #tpu.memory_space<vmem>>, vector<1x32xf32>
    %124 = vector.broadcast %123 : vector<1x32xf32> to vector<256x32xf32>
    %125 = arith.addf %122, %124 : vector<256x32xf32>
    %cst_54 = arith.constant 0.000000e+00 : f32
    %126 = vector.broadcast %cst_54 : f32 to vector<256x32xf32>
    %127 = arith.maximumf %125, %126 : vector<256x32xf32>
    %cst_55 = arith.constant 6.000000e+00 : f32
    %128 = vector.broadcast %cst_55 : f32 to vector<256x32xf32>
    %129 = arith.minimumf %127, %128 : vector<256x32xf32>
    %130 = arith.truncf %129 : vector<256x32xf32> to vector<256x32xbf16>
    %c24_56 = arith.constant 24 : index
    %c0_57 = arith.constant 0 : index
    %131 = vector.load %arg12[%c24_56, %c0_57] : memref<304x32xbf16, #tpu.memory_space<vmem>>, vector<256x32xbf16>
    tpu.vector_store %arg12[%c24_56, %c0_57], %130 {strides = array<i32>} : memref<304x32xbf16, #tpu.memory_space<vmem>>, vector<256x32xbf16>,
    %c0_58 = arith.constant 0 : index
    %c0_59 = arith.constant 0 : index
    %132 = vector.load %arg12[%c0_58, %c0_59] : memref<304x32xbf16, #tpu.memory_space<vmem>>, vector<304x32xbf16>
    %133 = vector.extract_strided_slice %132 {offsets = [8, 0], sizes = [288, 32], strides = [1, 1]} : vector<304x32xbf16> to vector<288x32xbf16>
    %134 = vector.extract_strided_slice %132 {offsets = [7, 0], sizes = [288, 32], strides = [1, 1]} : vector<304x32xbf16> to vector<288x32xbf16>
    %135 = vector.extract_strided_slice %132 {offsets = [9, 0], sizes = [288, 32], strides = [1, 1]} : vector<304x32xbf16> to vector<288x32xbf16>
    %cst_60 = arith.constant 0.000000e+00 : bf16
    %136 = vector.broadcast %cst_60 : bf16 to vector<288x32xbf16>
    %137 = vector.shape_cast %4 : vector<288x1xi1> to vector<288x1xi1>
    %138 = vector.broadcast %137 : vector<288x1xi1> to vector<288x32xi1>
    %139 = arith.select %138, %134, %136 : vector<288x32xi1>, vector<288x32xbf16>
    %cst_61 = arith.constant 0.000000e+00 : bf16
    %140 = vector.broadcast %cst_61 : bf16 to vector<288x32xbf16>
    %141 = vector.shape_cast %6 : vector<288x1xi1> to vector<288x1xi1>
    %142 = vector.broadcast %141 : vector<288x1xi1> to vector<288x32xi1>
    %143 = arith.select %142, %135, %140 : vector<288x32xi1>, vector<288x32xbf16>
    %144 = vector.extract_strided_slice %139 {offsets = [0, 0], sizes = [256, 32], strides = [1, 1]} : vector<288x32xbf16> to vector<256x32xbf16>
    %145 = vector.extract_strided_slice %133 {offsets = [0, 0], sizes = [256, 32], strides = [1, 1]} : vector<288x32xbf16> to vector<256x32xbf16>
    %146 = vector.extract_strided_slice %143 {offsets = [0, 0], sizes = [256, 32], strides = [1, 1]} : vector<288x32xbf16> to vector<256x32xbf16>
    %147 = vector.extract_strided_slice %139 {offsets = [16, 0], sizes = [256, 32], strides = [1, 1]} : vector<288x32xbf16> to vector<256x32xbf16>
    %148 = vector.extract_strided_slice %133 {offsets = [16, 0], sizes = [256, 32], strides = [1, 1]} : vector<288x32xbf16> to vector<256x32xbf16>
    %149 = vector.extract_strided_slice %143 {offsets = [16, 0], sizes = [256, 32], strides = [1, 1]} : vector<288x32xbf16> to vector<256x32xbf16>
    %150 = vector.extract_strided_slice %139 {offsets = [32, 0], sizes = [256, 32], strides = [1, 1]} : vector<288x32xbf16> to vector<256x32xbf16>
    %151 = vector.extract_strided_slice %133 {offsets = [32, 0], sizes = [256, 32], strides = [1, 1]} : vector<288x32xbf16> to vector<256x32xbf16>
    %152 = vector.extract_strided_slice %143 {offsets = [32, 0], sizes = [256, 32], strides = [1, 1]} : vector<288x32xbf16> to vector<256x32xbf16>
    %153 = tpu.concatenate %144, %145, %146, %147, %148, %149, %150, %151, %152 in 1 : vector<256x32xbf16>, vector<256x32xbf16>, vector<256x32xbf16>, vector<256x32xbf16>, vector<256x32xbf16>, vector<256x32xbf16>, vector<256x32xbf16>, vector<256x32xbf16>, vector<256x32xbf16> -> vector<256x288xbf16>
    %c0_62 = arith.constant 0 : index
    %c0_63 = arith.constant 0 : index
    %154 = vector.load %arg8[%c0_62, %c0_63] : memref<288x128xbf16, #tpu.memory_space<vmem>>, vector<288x128xbf16>
    %cst_64 = arith.constant dense<0.000000e+00> : vector<256x128xf32>
    %155 = tpu.matmul %153, %154, %cst_64 {dimension_numbers = #tpu.dot_dimension_numbers<[1], [0], [0], [1], [0, 0, 1, 1], [], []>} : vector<256x288xbf16>, vector<288x128xbf16>, vector<256x128xf32> -> vector<256x128xf32>
    %c0_65 = arith.constant 0 : index
    %c0_66 = arith.constant 0 : index
    %156 = vector.load %arg9[%c0_65, %c0_66] : memref<1x128xf32, #tpu.memory_space<vmem>>, vector<1x128xf32>
    %157 = vector.broadcast %156 : vector<1x128xf32> to vector<256x128xf32>
    %158 = arith.addf %155, %157 : vector<256x128xf32>
    %159 = arith.truncf %158 : vector<256x128xf32> to vector<256x128xbf16>
    %c0_67 = arith.constant 0 : index
    %c0_68 = arith.constant 0 : index
    %c0_69 = arith.constant 0 : index
    %160 = vector.load %arg10[%c0_67, %c0_68, %c0_69] : memref<1x256x128xbf16, #tpu.memory_space<vmem>>, vector<1x256x128xbf16>
    %161 = vector.shape_cast %160 : vector<1x256x128xbf16> to vector<256x128xbf16>
    %162 = vector.shape_cast %159 : vector<256x128xbf16> to vector<1x256x128xbf16>
    tpu.vector_store %arg10[%c0_67, %c0_68, %c0_69], %162 {strides = array<i32>} : memref<1x256x128xbf16, #tpu.memory_space<vmem>>, vector<1x256x128xbf16>,
    return
  }
  func.func @transform_0(%arg0: i32) -> (i32, i32, i32) {
    %c0_i32 = arith.constant 0 : i32
    %c0_i32_0 = arith.constant 0 : i32
    %c0_i32_1 = arith.constant 0 : i32
    return %arg0, %c0_i32, %c0_i32_0 : i32, i32, i32
  }
  func.func @transform_1(%arg0: i32) -> (i32, i32) {
    %c0_i32 = arith.constant 0 : i32
    %c0_i32_0 = arith.constant 0 : i32
    %c0_i32_1 = arith.constant 0 : i32
    return %c0_i32, %c0_i32_0 : i32, i32
  }
  func.func @transform_2(%arg0: i32) -> (i32, i32) {
    %c0_i32 = arith.constant 0 : i32
    %c0_i32_0 = arith.constant 0 : i32
    %c0_i32_1 = arith.constant 0 : i32
    return %c0_i32, %c0_i32_0 : i32, i32
  }
  func.func @transform_3(%arg0: i32) -> (i32, i32, i32) {
    %c0_i32 = arith.constant 0 : i32
    %c0_i32_0 = arith.constant 0 : i32
    %c0_i32_1 = arith.constant 0 : i32
    %c0_i32_2 = arith.constant 0 : i32
    return %c0_i32, %c0_i32_0, %c0_i32_1 : i32, i32, i32
  }
  func.func @transform_4(%arg0: i32) -> (i32, i32) {
    %c0_i32 = arith.constant 0 : i32
    %c0_i32_0 = arith.constant 0 : i32
    %c0_i32_1 = arith.constant 0 : i32
    return %c0_i32, %c0_i32_0 : i32, i32
  }
  func.func @transform_5(%arg0: i32) -> (i32, i32) {
    %c0_i32 = arith.constant 0 : i32
    %c0_i32_0 = arith.constant 0 : i32
    %c0_i32_1 = arith.constant 0 : i32
    return %c0_i32, %c0_i32_0 : i32, i32
  }
  func.func @transform_6(%arg0: i32) -> (i32, i32) {
    %c0_i32 = arith.constant 0 : i32
    %c0_i32_0 = arith.constant 0 : i32
    %c0_i32_1 = arith.constant 0 : i32
    return %c0_i32, %c0_i32_0 : i32, i32
  }
  func.func @transform_7(%arg0: i32) -> (i32, i32) {
    %c0_i32 = arith.constant 0 : i32
    %c0_i32_0 = arith.constant 0 : i32
    %c0_i32_1 = arith.constant 0 : i32
    return %c0_i32, %c0_i32_0 : i32, i32
  }
  func.func @transform_8(%arg0: i32) -> (i32, i32) {
    %c0_i32 = arith.constant 0 : i32
    %c0_i32_0 = arith.constant 0 : i32
    %c0_i32_1 = arith.constant 0 : i32
    return %c0_i32, %c0_i32_0 : i32, i32
  }
  func.func @transform_9(%arg0: i32) -> (i32, i32, i32) {
    %c0_i32 = arith.constant 0 : i32
    %c0_i32_0 = arith.constant 0 : i32
    %c0_i32_1 = arith.constant 0 : i32
    return %arg0, %c0_i32, %c0_i32_0 : i32, i32, i32
  }
}

</mosaic_0001>

<llo_original>
// kernel: mobilevod_forward.1
$region0: #{mobilevod_forward.1}
  #allocation0 [shape = 'u32[]', space=smem, size = 0x4, offset = 0x4, fixed_abs, tag = 'smem constant byte address 0x4 - core index']
  #allocation1 [shape = 'u32[144,128]{1,0:T(1,128)}', space=vmem, size = 0x12000, scoped, tag = 'internal scratch']
  #allocation2 [shape = 'f32[304,16]{1,0:T(8,128)}', space=vmem, size = 0x26000, scoped, tag = 'scratch operand']
  #allocation3 [shape = 'bf16[304,32]{1,0:T(16,128)(2,1)}', space=vmem, size = 0x13000, scoped, tag = 'scratch operand']
  %s0 = inlined_call_operand.vmem [shape: bf16[2,304,8], index: 0, kind: input, shape index: {}]
  %s1 = inlined_call_operand.vmem [shape: bf16[72,16], index: 1, kind: input, shape index: {}]
  %s2 = inlined_call_operand.vmem [shape: f32[1,16], index: 2, kind: input, shape index: {}]
  %s3 = inlined_call_operand.vmem [shape: f32[9,1,16], index: 3, kind: input, shape index: {}]
  %s4 = inlined_call_operand.vmem [shape: f32[1,16], index: 4, kind: input, shape index: {}]
  %s5 = inlined_call_operand.vmem [shape: bf16[16,32], index: 5, kind: input, shape index: {}]
  %s6 = inlined_call_operand.vmem [shape: f32[1,32], index: 6, kind: input, shape index: {}]
  %s7 = inlined_call_operand.vmem [shape: bf16[288,128], index: 7, kind: input, shape index: {}]
  %s8 = inlined_call_operand.vmem [shape: f32[1,128], index: 8, kind: input, shape index: {}]
  %s9 = inlined_call_operand.vmem [shape: bf16[2,256,128], index: 9, kind: output, shape index: {}]
  %s10 = sld [smem:[#allocation0]]
  $region69: #{mobilevod_forward.1} parent=0
    _
  %s12 = ssub.s32 1, %s10
  %s13 = scalar_select 0, %s12, %s10
  loop: start=0, step=1, limit=4
  $region2: #{mobilevod_forward.1} parent=0 // loop_pre_header
    _
  $region3: #{mobilevod_forward.1} parent=0 // loop_header
    %s15 = sphi 0, %s19
    %p16 = scmp.ge.s32.totalorder %s15, 4
    %s25 = sphi 0, %s27
    %s28 = sphi 0, %s25
    %s29 = sphi 0, %s28
    %s45 = sphi 0, %s29
    %s49 = sphi 0, %s49
    %s51 = sphi 0, %s49
    %s52 = sphi 0, %s51
    %s66 = sphi 0, %s52
    %s70 = sphi 0, %s70
    %s72 = sphi 0, %s70
    %s73 = sphi 0, %s72
    %s87 = sphi 0, %s73
    %s91 = sphi 0, %s91
    %s93 = sphi 0, %s91
    %s94 = sphi 0, %s93
    %s108 = sphi 0, %s94
    %s112 = sphi 0, %s112
    %s114 = sphi 0, %s112
    %s115 = sphi 0, %s114
    %s129 = sphi 0, %s115
    %s133 = sphi 0, %s133
    %s135 = sphi 0, %s133
    %s136 = sphi 0, %s135
    %s150 = sphi 0, %s136
    %s154 = sphi 0, %s154
    %s156 = sphi 0, %s154
    %s157 = sphi 0, %s156
    %s171 = sphi 0, %s157
    %s175 = sphi 0, %s175
    %s177 = sphi 0, %s175
    %s178 = sphi 0, %s177
    %s192 = sphi 0, %s178
    %s196 = sphi 0, %s196
    %s198 = sphi 0, %s196
    %s199 = sphi 0, %s198
    %s213 = sphi 0, %s199
    %s219 = sphi 0, %s221
    %s222 = sphi 0, %s219
    %s223 = sphi 0, %s222
    %s239 = sphi 0, %s223
  $region4: #{mobilevod_forward.1} parent=0 // loop_header_branch
    %18 = sbr.rel (%p16) target = $region8
  $region5: #{mobilevod_forward.1} parent=0 // loop_body
    %s20 = ssub.s32 %s15, 1
    %s21 = ssub.s32 %s15, 2
    %s22 = sadd.s32 %s15, 1
    %s23 = ssub.s32 %s15, %s22
    %p24 = scmp.eq.s32.totalorder %s23, 0
    %s26 = sadd.s32 %s25, 1
    %s27 = scalar_select %p24, %s25, %s26
    %p30 = pneg %p24
    %p31 = scmp.eq.s32.totalorder %s15, 1
    %p32 = por %p30, %p31
    %p33 = scmp.ne.s32.totalorder %s25, %s28
    %p34 = scmp.eq.s32.totalorder %s15, 0
    %p35 = por %p33, %p34
    %p36 = scmp.ne.s32.totalorder %s25, %s28
    %p37 = scmp.eq.s32.totalorder %s20, 1
    %p38 = por %p36, %p37
    %p39 = scmp.ne.s32.totalorder %s28, %s29
    %p40 = scmp.eq.s32.totalorder %s20, 0
    %p41 = por %p39, %p40
    %p42 = scmp.ne.s32.totalorder %s28, %s29
    %p43 = scmp.eq.s32.totalorder %s21, 1
    %p44 = por %p42, %p43
    %p46 = scmp.ne.s32.totalorder %s29, %s45
    %p47 = scmp.eq.s32.totalorder %s21, 0
    %p48 = por %p46, %p47
    %s50 = sadd.s32 %s49, 1
    %p53 = scmp.eq.s32.totalorder %s15, 1
    %p54 = scmp.ne.s32.totalorder %s49, %s51
    %p55 = scmp.eq.s32.totalorder %s15, 0
    %p56 = por %p54, %p55
    %p57 = scmp.ne.s32.totalorder %s49, %s51
    %p58 = scmp.eq.s32.totalorder %s20, 1
    %p59 = por %p57, %p58
    %p60 = scmp.ne.s32.totalorder %s51, %s52
    %p61 = scmp.eq.s32.totalorder %s20, 0
    %p62 = por %p60, %p61
    %p63 = scmp.ne.s32.totalorder %s51, %s52
    %p64 = scmp.eq.s32.totalorder %s21, 1
    %p65 = por %p63, %p64
    %p67 = scmp.ne.s32.totalorder %s52, %s66
    %p68 = scmp.eq.s32.totalorder %s21, 0
    %p69 = por %p67, %p68
    %s71 = sadd.s32 %s70, 1
    %p74 = scmp.eq.s32.totalorder %s15, 1
    %p75 = scmp.ne.s32.totalorder %s70, %s72
    %p76 = scmp.eq.s32.totalorder %s15, 0
    %p77 = por %p75, %p76
    %p78 = scmp.ne.s32.totalorder %s70, %s72
    %p79 = scmp.eq.s32.totalorder %s20, 1
    %p80 = por %p78, %p79
    %p81 = scmp.ne.s32.totalorder %s72, %s73
    %p82 = scmp.eq.s32.totalorder %s20, 0
    %p83 = por %p81, %p82
    %p84 = scmp.ne.s32.totalorder %s72, %s73
    %p85 = scmp.eq.s32.totalorder %s21, 1
    %p86 = por %p84, %p85
    %p88 = scmp.ne.s32.totalorder %s73, %s87
    %p89 = scmp.eq.s32.totalorder %s21, 0
    %p90 = por %p88, %p89
    %s92 = sadd.s32 %s91, 1
    %p95 = scmp.eq.s32.totalorder %s15, 1
    %p96 = scmp.ne.s32.totalorder %s91, %s93
    %p97 = scmp.eq.s32.totalorder %s15, 0
    %p98 = por %p96, %p97
    %p99 = scmp.ne.s32.totalorder %s91, %s93
    %p100 = scmp.eq.s32.totalorder %s20, 1
    %p101 = por %p99, %p100
    %p102 = scmp.ne.s32.totalorder %s93, %s94
    %p103 = scmp.eq.s32.totalorder %s20, 0
    %p104 = por %p102, %p103
    %p105 = scmp.ne.s32.totalorder %s93, %s94
    %p106 = scmp.eq.s32.totalorder %s21, 1
    %p107 = por %p105, %p106
    %p109 = scmp.ne.s32.totalorder %s94, %s108
    %p110 = scmp.eq.s32.totalorder %s21, 0
    %p111 = por %p109, %p110
    %s113 = sadd.s32 %s112, 1
    %p116 = scmp.eq.s32.totalorder %s15, 1
    %p117 = scmp.ne.s32.totalorder %s112, %s114
    %p118 = scmp.eq.s32.totalorder %s15, 0
    %p119 = por %p117, %p118
    %p120 = scmp.ne.s32.totalorder %s112, %s114
    %p121 = scmp.eq.s32.totalorder %s20, 1
    %p122 = por %p120, %p121
    %p123 = scmp.ne.s32.totalorder %s114, %s115
    %p124 = scmp.eq.s32.totalorder %s20, 0
    %p125 = por %p123, %p124
    %p126 = scmp.ne.s32.totalorder %s114, %s115
    %p127 = scmp.eq.s32.totalorder %s21, 1
    %p128 = por %p126, %p127
    %p130 = scmp.ne.s32.totalorder %s115, %s129
    %p131 = scmp.eq.s32.totalorder %s21, 0
    %p132 = por %p130, %p131
    %s134 = sadd.s32 %s133, 1
    %p137 = scmp.eq.s32.totalorder %s15, 1
    %p138 = scmp.ne.s32.totalorder %s133, %s135
    %p139 = scmp.eq.s32.totalorder %s15, 0
    %p140 = por %p138, %p139
    %p141 = scmp.ne.s32.totalorder %s133, %s135
    %p142 = scmp.eq.s32.totalorder %s20, 1
    %p143 = por %p141, %p142
    %p144 = scmp.ne.s32.totalorder %s135, %s136
    %p145 = scmp.eq.s32.totalorder %s20, 0
    %p146 = por %p144, %p145
    %p147 = scmp.ne.s32.totalorder %s135, %s136
    %p148 = scmp.eq.s32.totalorder %s21, 1
    %p149 = por %p147, %p148
    %p151 = scmp.ne.s32.totalorder %s136, %s150
    %p152 = scmp.eq.s32.totalorder %s21, 0
    %p153 = por %p151, %p152
    %s155 = sadd.s32 %s154, 1
    %p158 = scmp.eq.s32.totalorder %s15, 1
    %p159 = scmp.ne.s32.totalorder %s154, %s156
    %p160 = scmp.eq.s32.totalorder %s15, 0
    %p161 = por %p159, %p160
    %p162 = scmp.ne.s32.totalorder %s154, %s156
    %p163 = scmp.eq.s32.totalorder %s20, 1
    %p164 = por %p162, %p163
    %p165 = scmp.ne.s32.totalorder %s156, %s157
    %p166 = scmp.eq.s32.totalorder %s20, 0
    %p167 = por %p165, %p166
    %p168 = scmp.ne.s32.totalorder %s156, %s157
    %p169 = scmp.eq.s32.totalorder %s21, 1
    %p170 = por %p168, %p169
    %p172 = scmp.ne.s32.totalorder %s157, %s171
    %p173 = scmp.eq.s32.totalorder %s21, 0
    %p174 = por %p172, %p173
    %s176 = sadd.s32 %s175, 1
    %p179 = scmp.eq.s32.totalorder %s15, 1
    %p180 = scmp.ne.s32.totalorder %s175, %s177
    %p181 = scmp.eq.s32.totalorder %s15, 0
    %p182 = por %p180, %p181
    %p183 = scmp.ne.s32.totalorder %s175, %s177
    %p184 = scmp.eq.s32.totalorder %s20, 1
    %p185 = por %p183, %p184
    %p186 = scmp.ne.s32.totalorder %s177, %s178
    %p187 = scmp.eq.s32.totalorder %s20, 0
    %p188 = por %p186, %p187
    %p189 = scmp.ne.s32.totalorder %s177, %s178
    %p190 = scmp.eq.s32.totalorder %s21, 1
    %p191 = por %p189, %p190
    %p193 = scmp.ne.s32.totalorder %s178, %s192
    %p194 = scmp.eq.s32.totalorder %s21, 0
    %p195 = por %p193, %p194
    %s197 = sadd.s32 %s196, 1
    %p200 = scmp.eq.s32.totalorder %s15, 1
    %p201 = scmp.ne.s32.totalorder %s196, %s198
    %p202 = scmp.eq.s32.totalorder %s15, 0
    %p203 = por %p201, %p202
    %p204 = scmp.ne.s32.totalorder %s196, %s198
    %p205 = scmp.eq.s32.totalorder %s20, 1
    %p206 = por %p204, %p205
    %p207 = scmp.ne.s32.totalorder %s198, %s199
    %p208 = scmp.eq.s32.totalorder %s20, 0
    %p209 = por %p207, %p208
    %p210 = scmp.ne.s32.totalorder %s198, %s199
    %p211 = scmp.eq.s32.totalorder %s21, 1
    %p212 = por %p210, %p211
    %p214 = scmp.ne.s32.totalorder %s199, %s213
    %p215 = scmp.eq.s32.totalorder %s21, 0
    %p216 = por %p214, %p215
    %s217 = ssub.s32 %s15, %s22
    %p218 = scmp.eq.s32.totalorder %s217, 0
    %s220 = sadd.s32 %s219, 1
    %s221 = scalar_select %p218, %s219, %s220
    %p224 = pneg %p218
    %p225 = scmp.eq.s32.totalorder %s15, 1
    %p226 = por %p224, %p225
    %p227 = scmp.ne.s32.totalorder %s219, %s222
    %p228 = scmp.eq.s32.totalorder %s15, 0
    %p229 = por %p227, %p228
    %p230 = scmp.ne.s32.totalorder %s219, %s222
    %p231 = scmp.eq.s32.totalorder %s20, 1
    %p232 = por %p230, %p231
    %p233 = scmp.ne.s32.totalorder %s222, %s223
    %p234 = scmp.eq.s32.totalorder %s20, 0
    %p235 = por %p233, %p234
    %p236 = scmp.ne.s32.totalorder %s222, %s223
    %p237 = scmp.eq.s32.totalorder %s21, 1
    %p238 = por %p236, %p237
    %p240 = scmp.ne.s32.totalorder %s223, %s239
    %p241 = scmp.eq.s32.totalorder %s21, 0
    %p242 = por %p240, %p241
    %p243 = scmp.le.s32.totalorder 1, %s15
    %p244 = scmp.lt.s32.totalorder %s15, 3
    %p245 = pnand %p243, %p244
    %p246 = pneg %p245
    // Predicated region
    $region9: #{mobilevod_forward.1} parent=5 // pred_check
      _
    $region10: #{mobilevod_forward.1} parent=5 // pred_check_branch
      %248 = sbr.rel (%p245) target = $region12
    $region11: #{mobilevod_forward.1} parent=5 // pred_region
      %s249 = ssub.s32 %s15, 1
      // Predicated region
      $region13: #{mobilevod_forward.1} parent=11 // pred_check
        %p250 = pneg %p62
      $region14: #{mobilevod_forward.1} parent=11 // pred_check_branch
        %252 = sbr.rel (%p250) target = $region16
      $region15: #{mobilevod_forward.1} parent=11 // pred_region
        _
      $region16: #{mobilevod_forward.1} parent=11 // pred_fallthru
        _
      // Predicated region
      $region17: #{mobilevod_forward.1} parent=11 // pred_check
        %p253 = pneg %p83
      $region18: #{mobilevod_forward.1} parent=11 // pred_check_branch
        %255 = sbr.rel (%p253) target = $region20
      $region19: #{mobilevod_forward.1} parent=11 // pred_region
        _
      $region20: #{mobilevod_forward.1} parent=11 // pred_fallthru
        _
      // Predicated region
      $region21: #{mobilevod_forward.1} parent=11 // pred_check
        %p256 = pneg %p104
      $region22: #{mobilevod_forward.1} parent=11 // pred_check_branch
        %258 = sbr.rel (%p256) target = $region24
      $region23: #{mobilevod_forward.1} parent=11 // pred_region
        _
      $region24: #{mobilevod_forward.1} parent=11 // pred_fallthru
        _
      // Predicated region
      $region25: #{mobilevod_forward.1} parent=11 // pred_check
        %p259 = pneg %p125
      $region26: #{mobilevod_forward.1} parent=11 // pred_check_branch
        %261 = sbr.rel (%p259) target = $region28
      $region27: #{mobilevod_forward.1} parent=11 // pred_region
        _
      $region28: #{mobilevod_forward.1} parent=11 // pred_fallthru
        _
      // Predicated region
      $region29: #{mobilevod_forward.1} parent=11 // pred_check
        %p262 = pneg %p146
      $region30: #{mobilevod_forward.1} parent=11 // pred_check_branch
        %264 = sbr.rel (%p262) target = $region32
      $region31: #{mobilevod_forward.1} parent=11 // pred_region
        _
      $region32: #{mobilevod_forward.1} parent=11 // pred_fallthru
        _
      // Predicated region
      $region33: #{mobilevod_forward.1} parent=11 // pred_check
        %p265 = pneg %p167
      $region34: #{mobilevod_forward.1} parent=11 // pred_check_branch
        %267 = sbr.rel (%p265) target = $region36
      $region35: #{mobilevod_forward.1} parent=11 // pred_region
        _
      $region36: #{mobilevod_forward.1} parent=11 // pred_fallthru
        _
      // Predicated region
      $region37: #{mobilevod_forward.1} parent=11 // pred_check
        %p268 = pneg %p188
      $region38: #{mobilevod_forward.1} parent=11 // pred_check_branch
        %270 = sbr.rel (%p268) target = $region40
      $region39: #{mobilevod_forward.1} parent=11 // pred_region
        _
      $region40: #{mobilevod_forward.1} parent=11 // pred_fallthru
        _
      // Predicated region
      $region41: #{mobilevod_forward.1} parent=11 // pred_check
        %p271 = pneg %p209
      $region42: #{mobilevod_forward.1} parent=11 // pred_check_branch
        %273 = sbr.rel (%p271) target = $region44
      $region43: #{mobilevod_forward.1} parent=11 // pred_region
        _
      $region44: #{mobilevod_forward.1} parent=11 // pred_fallthru
        _
    $region12: #{mobilevod_forward.1} parent=5 // pred_fallthru
      _
    %p274 = scmp.lt.s32.totalorder %s15, 2
    // Predicated region
    $region45: #{mobilevod_forward.1} parent=5 // pred_check
      %p275 = pneg %p274
    $region46: #{mobilevod_forward.1} parent=5 // pred_check_branch
      %277 = sbr.rel (%p275) target = $region48
    $region47: #{mobilevod_forward.1} parent=5 // pred_region
      // Predicated region
      $region49: #{mobilevod_forward.1} parent=47 // pred_check
        %p278 = pneg %p35
      $region50: #{mobilevod_forward.1} parent=47 // pred_check_branch
        %280 = sbr.rel (%p278) target = $region52
      $region51: #{mobilevod_forward.1} parent=47 // pred_region
        %p281 = scmp.lt.s32.totalorder %s15, 1
        %s282 = scalar_select %p281, %s15, 1
        %s283 = smul.addr %s282, 38
        %s284 = smul.addr %s283, 4
        %s285 = scalar_lea.vmem %s0, %s284
      $region52: #{mobilevod_forward.1} parent=47 // pred_fallthru
        _
    $region48: #{mobilevod_forward.1} parent=5 // pred_fallthru
      _
    %p286 = scmp.le.s32.totalorder 1, %s15
    %p287 = scmp.lt.s32.totalorder %s15, 3
    %p288 = pnand %p286, %p287
    %p289 = pneg %p288
    // Predicated region
    $region53: #{mobilevod_forward.1} parent=5 // pred_check
      _
    $region54: #{mobilevod_forward.1} parent=5 // pred_check_branch
      %291 = sbr.rel (%p288) target = $region56
    $region55: #{mobilevod_forward.1} parent=5 // pred_region
      %s292 = ssub.s32 %s15, 1
      %p293 = scmp.lt.s32.totalorder %s20, 1
      %s294 = scalar_select %p293, %s20, 1
      %s295 = smul.addr %s294, 38
      %s296 = smul.addr %s295, 4
      %s297 = scalar_lea.vmem %s0, %s296
      %p298 = pneg %p41
      %p299 = pneg %p38
      %p300 = pneg %p62
      %p301 = pneg %p59
      %p302 = pneg %p83
      %p303 = pneg %p80
      %p304 = pneg %p104
      %p305 = pneg %p101
      %p306 = pneg %p125
      %p307 = pneg %p122
      %p308 = pneg %p146
      %p309 = pneg %p143
      %p310 = pneg %p167
      %p311 = pneg %p164
      %p312 = pneg %p188
      %p313 = pneg %p185
      %p314 = pneg %p209
      %p315 = pneg %p206
      %p316 = pneg %p235
      %p317 = pneg %p232
      %p318 = scmp.lt.s32.totalorder %s20, 1
      %s319 = scalar_select %p318, %s20, 1
      %s320 = smul.addr %s319, 32
      %s321 = smul.addr %s320, 4
      %s322 = scalar_lea.vmem %s9, %s321
      %p323 = scmp.lt.s32.totalorder %s20, 1
      %s324 = scalar_select %p323, %s20, 1
      %s325 = smul.addr %s324, 38
      %s326 = smul.addr %s325, 4
      %s327 = scalar_lea.vmem %s0, %s326
      %p328 = scmp.lt.s32.totalorder %s20, 1
      %s329 = scalar_select %p328, %s20, 1
      %s330 = smul.addr %s329, 32
      %s331 = smul.addr %s330, 4
      %s332 = scalar_lea.vmem %s9, %s331
      %v336 = vlaneseq
      %v337 = vshrl.u32 %v336, 7
      %v338 = vadd.s32 %v337, 8
      %v339 = vadd.s32 %v337, 16
      %v340 = vadd.s32 %v337, 24
      %v341 = vadd.s32 %v337, 32
      %v342 = vadd.s32 %v337, 40
      %v343 = vadd.s32 %v337, 48
      %v344 = vadd.s32 %v337, 56
      %v345 = vadd.s32 %v337, 64
      %v346 = vadd.s32 %v337, 72
      %v347 = vadd.s32 %v337, 80
      %v348 = vadd.s32 %v337, 88
      %v349 = vadd.s32 %v337, 96
      %v350 = vadd.s32 %v337, 104
      %v351 = vadd.s32 %v337, 112
      %v352 = vadd.s32 %v337, 120
      %v353 = vadd.s32 %v337, 128
      %v354 = vadd.s32 %v337, 136
      %v355 = vadd.s32 %v337, 144
      %v356 = vadd.s32 %v337, 152
      %v357 = vadd.s32 %v337, 160
      %v358 = vadd.s32 %v337, 168
      %v359 = vadd.s32 %v337, 176
      %v360 = vadd.s32 %v337, 184
      %v361 = vadd.s32 %v337, 192
      %v362 = vadd.s32 %v337, 200
      %v363 = vadd.s32 %v337, 208
      %v364 = vadd.s32 %v337, 216
      %v365 = vadd.s32 %v337, 224
      %v366 = vadd.s32 %v337, 232
      %v367 = vadd.s32 %v337, 240
      %v368 = vadd.s32 %v337, 248
      %v369 = vadd.s32 %v337, 256
      %v370 = vadd.s32 %v337, 264
      %v371 = vadd.s32 %v337, 272
      %v372 = vadd.s32 %v337, 280
      %v373 = vand.u32 %v337, 15
      %v374 = vand.u32 %v338, 15
      %v375 = vand.u32 %v339, 15
      %v376 = vand.u32 %v340, 15
      %v377 = vand.u32 %v341, 15
      %v378 = vand.u32 %v342, 15
      %v379 = vand.u32 %v343, 15
      %v380 = vand.u32 %v344, 15
      %v381 = vand.u32 %v345, 15
      %v382 = vand.u32 %v346, 15
      %v383 = vand.u32 %v347, 15
      %v384 = vand.u32 %v348, 15
      %v385 = vand.u32 %v349, 15
      %v386 = vand.u32 %v350, 15
      %v387 = vand.u32 %v351, 15
      %v388 = vand.u32 %v352, 15
      %v389 = vand.u32 %v353, 15
      %v390 = vand.u32 %v354, 15
      %v391 = vand.u32 %v355, 15
      %v392 = vand.u32 %v356, 15
      %v393 = vand.u32 %v357, 15
      %v394 = vand.u32 %v358, 15
      %v395 = vand.u32 %v359, 15
      %v396 = vand.u32 %v360, 15
      %v397 = vand.u32 %v361, 15
      %v398 = vand.u32 %v362, 15
      %v399 = vand.u32 %v363, 15
      %v400 = vand.u32 %v364, 15
      %v401 = vand.u32 %v365, 15
      %v402 = vand.u32 %v366, 15
      %v403 = vand.u32 %v367, 15
      %v404 = vand.u32 %v368, 15
      %v405 = vand.u32 %v369, 15
      %v406 = vand.u32 %v370, 15
      %v407 = vand.u32 %v371, 15
      %v408 = vand.u32 %v372, 15
      %vm409 = vcmp.ge.s32.totalorder %v373, 1
      %vm410 = vcmp.ge.s32.totalorder %v374, 1
      %vm411 = vcmp.ge.s32.totalorder %v375, 1
      %vm412 = vcmp.ge.s32.totalorder %v376, 1
      %vm413 = vcmp.ge.s32.totalorder %v377, 1
      %vm414 = vcmp.ge.s32.totalorder %v378, 1
      %vm415 = vcmp.ge.s32.totalorder %v379, 1
      %vm416 = vcmp.ge.s32.totalorder %v380, 1
      %vm417 = vcmp.ge.s32.totalorder %v381, 1
      %vm418 = vcmp.ge.s32.totalorder %v382, 1
      %vm419 = vcmp.ge.s32.totalorder %v383, 1
      %vm420 = vcmp.ge.s32.totalorder %v384, 1
      %vm421 = vcmp.ge.s32.totalorder %v385, 1
      %vm422 = vcmp.ge.s32.totalorder %v386, 1
      %vm423 = vcmp.ge.s32.totalorder %v387, 1
      %vm424 = vcmp.ge.s32.totalorder %v388, 1
      %vm425 = vcmp.ge.s32.totalorder %v389, 1
      %vm426 = vcmp.ge.s32.totalorder %v390, 1
      %vm427 = vcmp.ge.s32.totalorder %v391, 1
      %vm428 = vcmp.ge.s32.totalorder %v392, 1
      %vm429 = vcmp.ge.s32.totalorder %v393, 1
      %vm430 = vcmp.ge.s32.totalorder %v394, 1
      %vm431 = vcmp.ge.s32.totalorder %v395, 1
      %vm432 = vcmp.ge.s32.totalorder %v396, 1
      %vm433 = vcmp.ge.s32.totalorder %v397, 1
      %vm434 = vcmp.ge.s32.totalorder %v398, 1
      %vm435 = vcmp.ge.s32.totalorder %v399, 1
      %vm436 = vcmp.ge.s32.totalorder %v400, 1
      %vm437 = vcmp.ge.s32.totalorder %v401, 1
      %vm438 = vcmp.ge.s32.totalorder %v402, 1
      %vm439 = vcmp.ge.s32.totalorder %v403, 1
      %vm440 = vcmp.ge.s32.totalorder %v404, 1
      %vm441 = vcmp.ge.s32.totalorder %v405, 1
      %vm442 = vcmp.ge.s32.totalorder %v406, 1
      %vm443 = vcmp.ge.s32.totalorder %v407, 1
      %vm444 = vcmp.ge.s32.totalorder %v408, 1
      %vm445 = vcmp.le.s32.totalorder %v373, 14
      %vm446 = vcmp.le.s32.totalorder %v374, 14
      %vm447 = vcmp.le.s32.totalorder %v375, 14
      %vm448 = vcmp.le.s32.totalorder %v376, 14
      %vm449 = vcmp.le.s32.totalorder %v377, 14
      %vm450 = vcmp.le.s32.totalorder %v378, 14
      %vm451 = vcmp.le.s32.totalorder %v379, 14
      %vm452 = vcmp.le.s32.totalorder %v380, 14
      %vm453 = vcmp.le.s32.totalorder %v381, 14
      %vm454 = vcmp.le.s32.totalorder %v382, 14
      %vm455 = vcmp.le.s32.totalorder %v383, 14
      %vm456 = vcmp.le.s32.totalorder %v384, 14
      %vm457 = vcmp.le.s32.totalorder %v385, 14
      %vm458 = vcmp.le.s32.totalorder %v386, 14
      %vm459 = vcmp.le.s32.totalorder %v387, 14
      %vm460 = vcmp.le.s32.totalorder %v388, 14
      %vm461 = vcmp.le.s32.totalorder %v389, 14
      %vm462 = vcmp.le.s32.totalorder %v390, 14
      %vm463 = vcmp.le.s32.totalorder %v391, 14
      %vm464 = vcmp.le.s32.totalorder %v392, 14
      %vm465 = vcmp.le.s32.totalorder %v393, 14
      %vm466 = vcmp.le.s32.totalorder %v394, 14
      %vm467 = vcmp.le.s32.totalorder %v395, 14
      %vm468 = vcmp.le.s32.totalorder %v396, 14
      %vm469 = vcmp.le.s32.totalorder %v397, 14
      %vm470 = vcmp.le.s32.totalorder %v398, 14
      %vm471 = vcmp.le.s32.totalorder %v399, 14
      %vm472 = vcmp.le.s32.totalorder %v400, 14
      %vm473 = vcmp.le.s32.totalorder %v401, 14
      %vm474 = vcmp.le.s32.totalorder %v402, 14
      %vm475 = vcmp.le.s32.totalorder %v403, 14
      %vm476 = vcmp.le.s32.totalorder %v404, 14
      %vm477 = vcmp.le.s32.totalorder %v405, 14
      %vm478 = vcmp.le.s32.totalorder %v406, 14
      %vm479 = vcmp.le.s32.totalorder %v407, 14
      %vm480 = vcmp.le.s32.totalorder %v408, 14
      %vm481 = vcmask 130048
      %482 = vst.msk [vmem:[#allocation2] sm:$0xff] %vm481, 0.0
      %483 = vst.msk [vmem:[#allocation2 + $0x8] sm:$0xff] %vm481, 0.0
      %484 = vst.msk [vmem:[#allocation2 + $0x10] sm:$0xff] %vm481, 0.0
      %485 = vst.msk [vmem:[#allocation2 + $0x118] sm:$0xff] %vm481, 0.0
      %486 = vst.msk [vmem:[#allocation2 + $0x120] sm:$0xff] %vm481, 0.0
      %487 = vst.msk [vmem:[#allocation2 + $0x128] sm:$0xff] %vm481, 0.0
      %vm488 = vcmask 261120
      %489 = vst.msk [vmem:[#allocation3] sm:$0xff] %vm488, 0
      %vm490 = vcmask 257024
      %491 = vst.msk [vmem:[#allocation3 + $0x8] sm:$0xf] %vm490, 0
      %vm492 = vcmask 261124
      %493 = vst.msk [vmem:[#allocation3 + $0x88] sm:$0xf0] %vm492, 0
      %494 = vst.msk [vmem:[#allocation3 + $0x90] sm:$0xff] %vm488, 0
      %v495 = vld [vmem:[%s327] sm:$0xf]
      %v496 = vld [vmem:[%s327 + $0x4] sm:$0xf]
      %v497 = vld [vmem:[%s327 + $0x8] sm:$0xf]
      %v498 = vld [vmem:[%s327 + $0xc] sm:$0xf]
      %v499 = vld [vmem:[%s327 + $0x10] sm:$0xf]
      %v500 = vld [vmem:[%s327 + $0x14] sm:$0xf]
      %v501 = vld [vmem:[%s327 + $0x18] sm:$0xf]
      %v502 = vld [vmem:[%s327 + $0x1c] sm:$0xf]
      %v503 = vld [vmem:[%s327 + $0x20] sm:$0xf]
      %v504 = vld [vmem:[%s327 + $0x24] sm:$0xf]
      %v505 = vld [vmem:[%s327 + $0x28] sm:$0xf]
      %v506 = vld [vmem:[%s327 + $0x2c] sm:$0xf]
      %v507 = vld [vmem:[%s327 + $0x30] sm:$0xf]
      %v508 = vld [vmem:[%s327 + $0x34] sm:$0xf]
      %v509 = vld [vmem:[%s327 + $0x38] sm:$0xf]
      %v510 = vld [vmem:[%s327 + $0x3c] sm:$0xf]
      %v511 = vld [vmem:[%s327 + $0x40] sm:$0xf]
      %v512 = vld [vmem:[%s327 + $0x44] sm:$0xf]
      %v513 = vld [vmem:[%s327 + $0x48] sm:$0xf]
      %v514 = vld [vmem:[%s327 + $0x4c] sm:$0xf]
      %v515 = vld [vmem:[%s327 + $0x50] sm:$0xf]
      %v516 = vld [vmem:[%s327 + $0x54] sm:$0xf]
      %v517 = vld [vmem:[%s327 + $0x58] sm:$0xf]
      %v518 = vld [vmem:[%s327 + $0x5c] sm:$0xf]
      %v519 = vld [vmem:[%s327 + $0x60] sm:$0xf]
      %v520 = vld [vmem:[%s327 + $0x64] sm:$0xf]
      %v521 = vld [vmem:[%s327 + $0x68] sm:$0xf]
      %v522 = vld [vmem:[%s327 + $0x6c] sm:$0xf]
      %v523 = vld [vmem:[%s327 + $0x70] sm:$0xf]
      %v524 = vld [vmem:[%s327 + $0x74] sm:$0xf]
      %v525 = vld [vmem:[%s327 + $0x78] sm:$0xf]
      %v526 = vld [vmem:[%s327 + $0x7c] sm:$0xf]
      %v527 = vld [vmem:[%s327 + $0x80] sm:$0xf]
      %v528 = vld [vmem:[%s327 + $0x84] sm:$0xf]
      %v529 = vld [vmem:[%s327 + $0x88] sm:$0xf]
      %v530 = vld [vmem:[%s327 + $0x8c] sm:$0xf]
      %v531 = vld [vmem:[%s327 + $0x90] sm:$0xf]
      %v532 = vld [vmem:[%s327 + $0x94] sm:$0xf]
      %v533 = vsel %vm409, 1, 0
      %v534 = vsel %vm410, 1, 0
      %v535 = vsel %vm411, 1, 0
      %v536 = vsel %vm412, 1, 0
      %v537 = vsel %vm413, 1, 0
      %v538 = vsel %vm414, 1, 0
      %v539 = vsel %vm415, 1, 0
      %v540 = vsel %vm416, 1, 0
      %v541 = vsel %vm417, 1, 0
      %v542 = vsel %vm418, 1, 0
      %v543 = vsel %vm419, 1, 0
      %v544 = vsel %vm420, 1, 0
      %v545 = vsel %vm421, 1, 0
      %v546 = vsel %vm422, 1, 0
      %v547 = vsel %vm423, 1, 0
      %v548 = vsel %vm424, 1, 0
      %v549 = vsel %vm425, 1, 0
      %v550 = vsel %vm426, 1, 0
      %v551 = vsel %vm427, 1, 0
      %v552 = vsel %vm428, 1, 0
      %v553 = vsel %vm429, 1, 0
      %v554 = vsel %vm430, 1, 0
      %v555 = vsel %vm431, 1, 0
      %v556 = vsel %vm432, 1, 0
      %v557 = vsel %vm433, 1, 0
      %v558 = vsel %vm434, 1, 0
      %v559 = vsel %vm435, 1, 0
      %v560 = vsel %vm436, 1, 0
      %v561 = vsel %vm437, 1, 0
      %v562 = vsel %vm438, 1, 0
      %v563 = vsel %vm439, 1, 0
      %v564 = vsel %vm440, 1, 0
      %v565 = vsel %vm441, 1, 0
      %v566 = vsel %vm442, 1, 0
      %v567 = vsel %vm443, 1, 0
      %v568 = vsel %vm444, 1, 0
      %vm569 = vcmp.eq.s32.totalorder %v533, 1
      %vm570 = vcmp.eq.s32.totalorder %v534, 1
      %vm571 = vcmp.eq.s32.totalorder %v535, 1
      %vm572 = vcmp.eq.s32.totalorder %v536, 1
      %vm573 = vcmp.eq.s32.totalorder %v537, 1
      %vm574 = vcmp.eq.s32.totalorder %v538, 1
      %vm575 = vcmp.eq.s32.totalorder %v539, 1
      %vm576 = vcmp.eq.s32.totalorder %v540, 1
      %vm577 = vcmp.eq.s32.totalorder %v541, 1
      %vm578 = vcmp.eq.s32.totalorder %v542, 1
      %vm579 = vcmp.eq.s32.totalorder %v543, 1
      %vm580 = vcmp.eq.s32.totalorder %v544, 1
      %vm581 = vcmp.eq.s32.totalorder %v545, 1
      %vm582 = vcmp.eq.s32.totalorder %v546, 1
      %vm583 = vcmp.eq.s32.totalorder %v547, 1
      %vm584 = vcmp.eq.s32.totalorder %v548, 1
      %vm585 = vcmp.eq.s32.totalorder %v549, 1
      %vm586 = vcmp.eq.s32.totalorder %v550, 1
      %vm587 = vcmp.eq.s32.totalorder %v551, 1
      %vm588 = vcmp.eq.s32.totalorder %v552, 1
      %vm589 = vcmp.eq.s32.totalorder %v553, 1
      %vm590 = vcmp.eq.s32.totalorder %v554, 1
      %vm591 = vcmp.eq.s32.totalorder %v555, 1
      %vm592 = vcmp.eq.s32.totalorder %v556, 1
      %vm593 = vcmp.eq.s32.totalorder %v557, 1
      %vm594 = vcmp.eq.s32.totalorder %v558, 1
      %vm595 = vcmp.eq.s32.totalorder %v559, 1
      %vm596 = vcmp.eq.s32.totalorder %v560, 1
      %vm597 = vcmp.eq.s32.totalorder %v561, 1
      %vm598 = vcmp.eq.s32.totalorder %v562, 1
      %vm599 = vcmp.eq.s32.totalorder %v563, 1
      %vm600 = vcmp.eq.s32.totalorder %v564, 1
      %vm601 = vcmp.eq.s32.totalorder %v565, 1
      %vm602 = vcmp.eq.s32.totalorder %v566, 1
      %vm603 = vcmp.eq.s32.totalorder %v567, 1
      %vm604 = vcmp.eq.s32.totalorder %v568, 1
      %vm605 = vmpackc.low %vm569, %vm569
      %vm606 = vmpackc.low %vm570, %vm570
      %vm607 = vmpackc.low %vm571, %vm571
      %vm608 = vmpackc.low %vm572, %vm572
      %vm609 = vmpackc.low %vm573, %vm573
      %vm610 = vmpackc.low %vm574, %vm574
      %vm611 = vmpackc.low %vm575, %vm575
      %vm612 = vmpackc.low %vm576, %vm576
      %vm613 = vmpackc.low %vm577, %vm577
      %vm614 = vmpackc.low %vm578, %vm578
      %vm615 = vmpackc.low %vm579, %vm579
      %vm616 = vmpackc.low %vm580, %vm580
      %vm617 = vmpackc.low %vm581, %vm581
      %vm618 = vmpackc.low %vm582, %vm582
      %vm619 = vmpackc.low %vm583, %vm583
      %vm620 = vmpackc.low %vm584, %vm584
      %vm621 = vmpackc.low %vm585, %vm585
      %vm622 = vmpackc.low %vm586, %vm586
      %vm623 = vmpackc.low %vm587, %vm587
      %vm624 = vmpackc.low %vm588, %vm588
      %vm625 = vmpackc.low %vm589, %vm589
      %vm626 = vmpackc.low %vm590, %vm590
      %vm627 = vmpackc.low %vm591, %vm591
      %vm628 = vmpackc.low %vm592, %vm592
      %vm629 = vmpackc.low %vm593, %vm593
      %vm630 = vmpackc.low %vm594, %vm594
      %vm631 = vmpackc.low %vm595, %vm595
      %vm632 = vmpackc.low %vm596, %vm596
      %vm633 = vmpackc.low %vm597, %vm597
      %vm634 = vmpackc.low %vm598, %vm598
      %vm635 = vmpackc.low %vm599, %vm599
      %vm636 = vmpackc.low %vm600, %vm600
      %vm637 = vmpackc.low %vm601, %vm601
      %vm638 = vmpackc.low %vm602, %vm602
      %vm639 = vmpackc.low %vm603, %vm603
      %vm640 = vmpackc.low %vm604, %vm604
      %v641 = vsel %vm605, 65537, 0
      %v642 = vsel %vm606, 65537, 0
      %v643 = vsel %vm607, 65537, 0
      %v644 = vsel %vm608, 65537, 0
      %v645 = vsel %vm609, 65537, 0
      %v646 = vsel %vm610, 65537, 0
      %v647 = vsel %vm611, 65537, 0
      %v648 = vsel %vm612, 65537, 0
      %v649 = vsel %vm613, 65537, 0
      %v650 = vsel %vm614, 65537, 0
      %v651 = vsel %vm615, 65537, 0
      %v652 = vsel %vm616, 65537, 0
      %v653 = vsel %vm617, 65537, 0
      %v654 = vsel %vm618, 65537, 0
      %v655 = vsel %vm619, 65537, 0
      %v656 = vsel %vm620, 65537, 0
      %v657 = vsel %vm621, 65537, 0
      %v658 = vsel %vm622, 65537, 0
      %v659 = vsel %vm623, 65537, 0
      %v660 = vsel %vm624, 65537, 0
      %v661 = vsel %vm625, 65537, 0
      %v662 = vsel %vm626, 65537, 0
      %v663 = vsel %vm627, 65537, 0
      %v664 = vsel %vm628, 65537, 0
      %v665 = vsel %vm629, 65537, 0
      %v666 = vsel %vm630, 65537, 0
      %v667 = vsel %vm631, 65537, 0
      %v668 = vsel %vm632, 65537, 0
      %v669 = vsel %vm633, 65537, 0
      %v670 = vsel %vm634, 65537, 0
      %v671 = vsel %vm635, 65537, 0
      %v672 = vsel %vm636, 65537, 0
      %v673 = vsel %vm637, 65537, 0
      %v674 = vsel %vm638, 65537, 0
      %v675 = vsel %vm639, 65537, 0
      %v676 = vsel %vm640, 65537, 0
      %vm677 = vsmask.f32 3328
      %vm678 = vsmask.f32 7440
      %vm679 = vmor %vm677, %vm678
      %v681 = vshll.u32 %v641, 16
      %v683 = vrot.slane %v681, 5
      %v684 = vshrl.u32 %v641, 16
      %v686 = vrot.slane %v684, 4
      %v687 = vor.u32 %v686, %v683
      %v688 = vrot.slane %v687, 4
      %v690 = vshll.u32 %v642, 16
      %v692 = vrot.slane %v690, 5
      %v693 = vsel %vm679, %v688, %v692
      %v694 = vshrl.u32 %v642, 16
      %v696 = vrot.slane %v694, 4
      %v697 = vor.u32 %v696, %v692
      %v698 = vrot.slane %v697, 4
      %v700 = vshll.u32 %v643, 16
      %v702 = vrot.slane %v700, 5
      %v703 = vsel %vm679, %v698, %v702
      %v704 = vshrl.u32 %v643, 16
      %v706 = vrot.slane %v704, 4
      %v707 = vor.u32 %v706, %v702
      %v708 = vrot.slane %v707, 4
      %v710 = vshll.u32 %v644, 16
      %v712 = vrot.slane %v710, 5
      %v713 = vsel %vm679, %v708, %v712
      %v714 = vshrl.u32 %v644, 16
      %v716 = vrot.slane %v714, 4
      %v717 = vor.u32 %v716, %v712
      %v718 = vrot.slane %v717, 4
      %v720 = vshll.u32 %v645, 16
      %v722 = vrot.slane %v720, 5
      %v723 = vsel %vm679, %v718, %v722
      %v724 = vshrl.u32 %v645, 16
      %v726 = vrot.slane %v724, 4
      %v727 = vor.u32 %v726, %v722
      %v728 = vrot.slane %v727, 4
      %v730 = vshll.u32 %v646, 16
      %v732 = vrot.slane %v730, 5
      %v733 = vsel %vm679, %v728, %v732
      %v734 = vshrl.u32 %v646, 16
      %v736 = vrot.slane %v734, 4
      %v737 = vor.u32 %v736, %v732
      %v738 = vrot.slane %v737, 4
      %v740 = vshll.u32 %v647, 16
      %v742 = vrot.slane %v740, 5
      %v743 = vsel %vm679, %v738, %v742
      %v744 = vshrl.u32 %v647, 16
      %v746 = vrot.slane %v744, 4
      %v747 = vor.u32 %v746, %v742
      %v748 = vrot.slane %v747, 4
      %v750 = vshll.u32 %v648, 16
      %v752 = vrot.slane %v750, 5
      %v753 = vsel %vm679, %v748, %v752
      %v754 = vshrl.u32 %v648, 16
      %v756 = vrot.slane %v754, 4
      %v757 = vor.u32 %v756, %v752
      %v758 = vrot.slane %v757, 4
      %v760 = vshll.u32 %v649, 16
      %v762 = vrot.slane %v760, 5
      %v763 = vsel %vm679, %v758, %v762
      %v764 = vshrl.u32 %v649, 16
      %v766 = vrot.slane %v764, 4
      %v767 = vor.u32 %v766, %v762
      %v768 = vrot.slane %v767, 4
      %v770 = vshll.u32 %v650, 16
      %v772 = vrot.slane %v770, 5
      %v773 = vsel %vm679, %v768, %v772
      %v774 = vshrl.u32 %v650, 16
      %v776 = vrot.slane %v774, 4
      %v777 = vor.u32 %v776, %v772
      %v778 = vrot.slane %v777, 4
      %v780 = vshll.u32 %v651, 16
      %v782 = vrot.slane %v780, 5
      %v783 = vsel %vm679, %v778, %v782
      %v784 = vshrl.u32 %v651, 16
      %v786 = vrot.slane %v784, 4
      %v787 = vor.u32 %v786, %v782
      %v788 = vrot.slane %v787, 4
      %v790 = vshll.u32 %v652, 16
      %v792 = vrot.slane %v790, 5
      %v793 = vsel %vm679, %v788, %v792
      %v794 = vshrl.u32 %v652, 16
      %v796 = vrot.slane %v794, 4
      %v797 = vor.u32 %v796, %v792
      %v798 = vrot.slane %v797, 4
      %v800 = vshll.u32 %v653, 16
      %v802 = vrot.slane %v800, 5
      %v803 = vsel %vm679, %v798, %v802
      %v804 = vshrl.u32 %v653, 16
      %v806 = vrot.slane %v804, 4
      %v807 = vor.u32 %v806, %v802
      %v808 = vrot.slane %v807, 4
      %v810 = vshll.u32 %v654, 16
      %v812 = vrot.slane %v810, 5
      %v813 = vsel %vm679, %v808, %v812
      %v814 = vshrl.u32 %v654, 16
      %v816 = vrot.slane %v814, 4
      %v817 = vor.u32 %v816, %v812
      %v818 = vrot.slane %v817, 4
      %v820 = vshll.u32 %v655, 16
      %v822 = vrot.slane %v820, 5
      %v823 = vsel %vm679, %v818, %v822
      %v824 = vshrl.u32 %v655, 16
      %v826 = vrot.slane %v824, 4
      %v827 = vor.u32 %v826, %v822
      %v828 = vrot.slane %v827, 4
      %v830 = vshll.u32 %v656, 16
      %v832 = vrot.slane %v830, 5
      %v833 = vsel %vm679, %v828, %v832
      %v834 = vshrl.u32 %v656, 16
      %v836 = vrot.slane %v834, 4
      %v837 = vor.u32 %v836, %v832
      %v838 = vrot.slane %v837, 4
      %v840 = vshll.u32 %v657, 16
      %v842 = vrot.slane %v840, 5
      %v843 = vsel %vm679, %v838, %v842
      %v844 = vshrl.u32 %v657, 16
      %v846 = vrot.slane %v844, 4
      %v847 = vor.u32 %v846, %v842
      %v848 = vrot.slane %v847, 4
      %v850 = vshll.u32 %v658, 16
      %v852 = vrot.slane %v850, 5
      %v853 = vsel %vm679, %v848, %v852
      %v854 = vshrl.u32 %v658, 16
      %v856 = vrot.slane %v854, 4
      %v857 = vor.u32 %v856, %v852
      %v858 = vrot.slane %v857, 4
      %v860 = vshll.u32 %v659, 16
      %v862 = vrot.slane %v860, 5
      %v863 = vsel %vm679, %v858, %v862
      %v864 = vshrl.u32 %v659, 16
      %v866 = vrot.slane %v864, 4
      %v867 = vor.u32 %v866, %v862
      %v868 = vrot.slane %v867, 4
      %v870 = vshll.u32 %v660, 16
      %v872 = vrot.slane %v870, 5
      %v873 = vsel %vm679, %v868, %v872
      %v874 = vshrl.u32 %v660, 16
      %v876 = vrot.slane %v874, 4
      %v877 = vor.u32 %v876, %v872
      %v878 = vrot.slane %v877, 4
      %v880 = vshll.u32 %v661, 16
      %v882 = vrot.slane %v880, 5
      %v883 = vsel %vm679, %v878, %v882
      %v884 = vshrl.u32 %v661, 16
      %v886 = vrot.slane %v884, 4
      %v887 = vor.u32 %v886, %v882
      %v888 = vrot.slane %v887, 4
      %v890 = vshll.u32 %v662, 16
      %v892 = vrot.slane %v890, 5
      %v893 = vsel %vm679, %v888, %v892
      %v894 = vshrl.u32 %v662, 16
      %v896 = vrot.slane %v894, 4
      %v897 = vor.u32 %v896, %v892
      %v898 = vrot.slane %v897, 4
      %v900 = vshll.u32 %v663, 16
      %v902 = vrot.slane %v900, 5
      %v903 = vsel %vm679, %v898, %v902
      %v904 = vshrl.u32 %v663, 16
      %v906 = vrot.slane %v904, 4
      %v907 = vor.u32 %v906, %v902
      %v908 = vrot.slane %v907, 4
      %v910 = vshll.u32 %v664, 16
      %v912 = vrot.slane %v910, 5
      %v913 = vsel %vm679, %v908, %v912
      %v914 = vshrl.u32 %v664, 16
      %v916 = vrot.slane %v914, 4
      %v917 = vor.u32 %v916, %v912
      %v918 = vrot.slane %v917, 4
      %v920 = vshll.u32 %v665, 16
      %v922 = vrot.slane %v920, 5
      %v923 = vsel %vm679, %v918, %v922
      %v924 = vshrl.u32 %v665, 16
      %v926 = vrot.slane %v924, 4
      %v927 = vor.u32 %v926, %v922
      %v928 = vrot.slane %v927, 4
      %v930 = vshll.u32 %v666, 16
      %v932 = vrot.slane %v930, 5
      %v933 = vsel %vm679, %v928, %v932
      %v934 = vshrl.u32 %v666, 16
      %v936 = vrot.slane %v934, 4
      %v937 = vor.u32 %v936, %v932
      %v938 = vrot.slane %v937, 4
      %v940 = vshll.u32 %v667, 16
      %v942 = vrot.slane %v940, 5
      %v943 = vsel %vm679, %v938, %v942
      %v944 = vshrl.u32 %v667, 16
      %v946 = vrot.slane %v944, 4
      %v947 = vor.u32 %v946, %v942
      %v948 = vrot.slane %v947, 4
      %v950 = vshll.u32 %v668, 16
      %v952 = vrot.slane %v950, 5
      %v953 = vsel %vm679, %v948, %v952
      %v954 = vshrl.u32 %v668, 16
      %v956 = vrot.slane %v954, 4
      %v957 = vor.u32 %v956, %v952
      %v958 = vrot.slane %v957, 4
      %v960 = vshll.u32 %v669, 16
      %v962 = vrot.slane %v960, 5
      %v963 = vsel %vm679, %v958, %v962
      %v964 = vshrl.u32 %v669, 16
      %v966 = vrot.slane %v964, 4
      %v967 = vor.u32 %v966, %v962
      %v968 = vrot.slane %v967, 4
      %v970 = vshll.u32 %v670, 16
      %v972 = vrot.slane %v970, 5
      %v973 = vsel %vm679, %v968, %v972
      %v974 = vshrl.u32 %v670, 16
      %v976 = vrot.slane %v974, 4
      %v977 = vor.u32 %v976, %v972
      %v978 = vrot.slane %v977, 4
      %v980 = vshll.u32 %v671, 16
      %v982 = vrot.slane %v980, 5
      %v983 = vsel %vm679, %v978, %v982
      %v984 = vshrl.u32 %v671, 16
      %v986 = vrot.slane %v984, 4
      %v987 = vor.u32 %v986, %v982
      %v988 = vrot.slane %v987, 4
      %v990 = vshll.u32 %v672, 16
      %v992 = vrot.slane %v990, 5
      %v993 = vsel %vm679, %v988, %v992
      %v994 = vshrl.u32 %v672, 16
      %v996 = vrot.slane %v994, 4
      %v997 = vor.u32 %v996, %v992
      %v998 = vrot.slane %v997, 4
      %v1000 = vshll.u32 %v673, 16
      %v1002 = vrot.slane %v1000, 5
      %v1003 = vsel %vm679, %v998, %v1002
      %v1004 = vshrl.u32 %v673, 16
      %v1006 = vrot.slane %v1004, 4
      %v1007 = vor.u32 %v1006, %v1002
      %v1008 = vrot.slane %v1007, 4
      %v1010 = vshll.u32 %v674, 16
      %v1012 = vrot.slane %v1010, 5
      %v1013 = vsel %vm679, %v1008, %v1012
      %v1014 = vshrl.u32 %v674, 16
      %v1016 = vrot.slane %v1014, 4
      %v1017 = vor.u32 %v1016, %v1012
      %v1018 = vrot.slane %v1017, 4
      %v1020 = vshll.u32 %v675, 16
      %v1022 = vrot.slane %v1020, 5
      %v1023 = vsel %vm679, %v1018, %v1022
      %v1024 = vshrl.u32 %v675, 16
      %v1026 = vrot.slane %v1024, 4
      %v1027 = vor.u32 %v1026, %v1022
      %v1028 = vrot.slane %v1027, 4
      %v1030 = vshll.u32 %v676, 16
      %v1032 = vrot.slane %v1030, 5
      %v1033 = vsel %vm679, %v1028, %v1032
      %v1034 = vshrl.u32 %v676, 16
      %v1036 = vrot.slane %v1034, 4
      %v1037 = vor.u32 %v1036, %v1032
      %v1038 = vrot.slane %v1037, 4
      %vm1039 = vcmp.ne.s16.totalorder %v683, 0
      %vm1040 = vcmp.ne.s16.totalorder %v693, 0
      %vm1041 = vcmp.ne.s16.totalorder %v703, 0
      %vm1042 = vcmp.ne.s16.totalorder %v713, 0
      %vm1043 = vcmp.ne.s16.totalorder %v723, 0
      %vm1044 = vcmp.ne.s16.totalorder %v733, 0
      %vm1045 = vcmp.ne.s16.totalorder %v743, 0
      %vm1046 = vcmp.ne.s16.totalorder %v753, 0
      %vm1047 = vcmp.ne.s16.totalorder %v763, 0
      %vm1048 = vcmp.ne.s16.totalorder %v773, 0
      %vm1049 = vcmp.ne.s16.totalorder %v783, 0
      %vm1050 = vcmp.ne.s16.totalorder %v793, 0
      %vm1051 = vcmp.ne.s16.totalorder %v803, 0
      %vm1052 = vcmp.ne.s16.totalorder %v813, 0
      %vm1053 = vcmp.ne.s16.totalorder %v823, 0
      %vm1054 = vcmp.ne.s16.totalorder %v833, 0
      %vm1055 = vcmp.ne.s16.totalorder %v843, 0
      %vm1056 = vcmp.ne.s16.totalorder %v853, 0
      %vm1057 = vcmp.ne.s16.totalorder %v863, 0
      %vm1058 = vcmp.ne.s16.totalorder %v873, 0
      %vm1059 = vcmp.ne.s16.totalorder %v883, 0
      %vm1060 = vcmp.ne.s16.totalorder %v893, 0
      %vm1061 = vcmp.ne.s16.totalorder %v903, 0
      %vm1062 = vcmp.ne.s16.totalorder %v913, 0
      %vm1063 = vcmp.ne.s16.totalorder %v923, 0
      %vm1064 = vcmp.ne.s16.totalorder %v933, 0
      %vm1065 = vcmp.ne.s16.totalorder %v943, 0
      %vm1066 = vcmp.ne.s16.totalorder %v953, 0
      %vm1067 = vcmp.ne.s16.totalorder %v963, 0
      %vm1068 = vcmp.ne.s16.totalorder %v973, 0
      %vm1069 = vcmp.ne.s16.totalorder %v983, 0
      %vm1070 = vcmp.ne.s16.totalorder %v993, 0
      %vm1071 = vcmp.ne.s16.totalorder %v1003, 0
      %vm1072 = vcmp.ne.s16.totalorder %v1013, 0
      %vm1073 = vcmp.ne.s16.totalorder %v1023, 0
      %vm1074 = vcmp.ne.s16.totalorder %v1033, 0
      %vm1075 = vcmp.ne.s16.totalorder %v1038, 0
      %v1076 = vsel %vm1039, %v495, 0
      %v1077 = vsel %vm1040, %v496, 0
      %v1078 = vsel %vm1041, %v497, 0
      %v1079 = vsel %vm1042, %v498, 0
      %v1080 = vsel %vm1043, %v499, 0
      %v1081 = vsel %vm1044, %v500, 0
      %v1082 = vsel %vm1045, %v501, 0
      %v1083 = vsel %vm1046, %v502, 0
      %v1084 = vsel %vm1047, %v503, 0
      %v1085 = vsel %vm1048, %v504, 0
      %v1086 = vsel %vm1049, %v505, 0
      %v1087 = vsel %vm1050, %v506, 0
      %v1088 = vsel %vm1051, %v507, 0
      %v1089 = vsel %vm1052, %v508, 0
      %v1090 = vsel %vm1053, %v509, 0
      %v1091 = vsel %vm1054, %v510, 0
      %v1092 = vsel %vm1055, %v511, 0
      %v1093 = vsel %vm1056, %v512, 0
      %v1094 = vsel %vm1057, %v513, 0
      %v1095 = vsel %vm1058, %v514, 0
      %v1096 = vsel %vm1059, %v515, 0
      %v1097 = vsel %vm1060, %v516, 0
      %v1098 = vsel %vm1061, %v517, 0
      %v1099 = vsel %vm1062, %v518, 0
      %v1100 = vsel %vm1063, %v519, 0
      %v1101 = vsel %vm1064, %v520, 0
      %v1102 = vsel %vm1065, %v521, 0
      %v1103 = vsel %vm1066, %v522, 0
      %v1104 = vsel %vm1067, %v523, 0
      %v1105 = vsel %vm1068, %v524, 0
      %v1106 = vsel %vm1069, %v525, 0
      %v1107 = vsel %vm1070, %v526, 0
      %v1108 = vsel %vm1071, %v527, 0
      %v1109 = vsel %vm1072, %v528, 0
      %v1110 = vsel %vm1073, %v529, 0
      %v1111 = vsel %vm1074, %v530, 0
      %v1112 = vsel %vm1075, %v531, 0
      %v1113 = vsel %vm445, 1, 0
      %v1114 = vsel %vm446, 1, 0
      %v1115 = vsel %vm447, 1, 0
      %v1116 = vsel %vm448, 1, 0
      %v1117 = vsel %vm449, 1, 0
      %v1118 = vsel %vm450, 1, 0
      %v1119 = vsel %vm451, 1, 0
      %v1120 = vsel %vm452, 1, 0
      %v1121 = vsel %vm453, 1, 0
      %v1122 = vsel %vm454, 1, 0
      %v1123 = vsel %vm455, 1, 0
      %v1124 = vsel %vm456, 1, 0
      %v1125 = vsel %vm457, 1, 0
      %v1126 = vsel %vm458, 1, 0
      %v1127 = vsel %vm459, 1, 0
      %v1128 = vsel %vm460, 1, 0
      %v1129 = vsel %vm461, 1, 0
      %v1130 = vsel %vm462, 1, 0
      %v1131 = vsel %vm463, 1, 0
      %v1132 = vsel %vm464, 1, 0
      %v1133 = vsel %vm465, 1, 0
      %v1134 = vsel %vm466, 1, 0
      %v1135 = vsel %vm467, 1, 0
      %v1136 = vsel %vm468, 1, 0
      %v1137 = vsel %vm469, 1, 0
      %v1138 = vsel %vm470, 1, 0
      %v1139 = vsel %vm471, 1, 0
      %v1140 = vsel %vm472, 1, 0
      %v1141 = vsel %vm473, 1, 0
      %v1142 = vsel %vm474, 1, 0
      %v1143 = vsel %vm475, 1, 0
      %v1144 = vsel %vm476, 1, 0
      %v1145 = vsel %vm477, 1, 0
      %v1146 = vsel %vm478, 1, 0
      %v1147 = vsel %vm479, 1, 0
      %v1148 = vsel %vm480, 1, 0
      %vm1149 = vcmp.eq.s32.totalorder %v1113, 1
      %vm1150 = vcmp.eq.s32.totalorder %v1114, 1
      %vm1151 = vcmp.eq.s32.totalorder %v1115, 1
      %vm1152 = vcmp.eq.s32.totalorder %v1116, 1
      %vm1153 = vcmp.eq.s32.totalorder %v1117, 1
      %vm1154 = vcmp.eq.s32.totalorder %v1118, 1
      %vm1155 = vcmp.eq.s32.totalorder %v1119, 1
      %vm1156 = vcmp.eq.s32.totalorder %v1120, 1
      %vm1157 = vcmp.eq.s32.totalorder %v1121, 1
      %vm1158 = vcmp.eq.s32.totalorder %v1122, 1
      %vm1159 = vcmp.eq.s32.totalorder %v1123, 1
      %vm1160 = vcmp.eq.s32.totalorder %v1124, 1
      %vm1161 = vcmp.eq.s32.totalorder %v1125, 1
      %vm1162 = vcmp.eq.s32.totalorder %v1126, 1
      %vm1163 = vcmp.eq.s32.totalorder %v1127, 1
      %vm1164 = vcmp.eq.s32.totalorder %v1128, 1
      %vm1165 = vcmp.eq.s32.totalorder %v1129, 1
      %vm1166 = vcmp.eq.s32.totalorder %v1130, 1
      %vm1167 = vcmp.eq.s32.totalorder %v1131, 1
      %vm1168 = vcmp.eq.s32.totalorder %v1132, 1
      %vm1169 = vcmp.eq.s32.totalorder %v1133, 1
      %vm1170 = vcmp.eq.s32.totalorder %v1134, 1
      %vm1171 = vcmp.eq.s32.totalorder %v1135, 1
      %vm1172 = vcmp.eq.s32.totalorder %v1136, 1
      %vm1173 = vcmp.eq.s32.totalorder %v1137, 1
      %vm1174 = vcmp.eq.s32.totalorder %v1138, 1
      %vm1175 = vcmp.eq.s32.totalorder %v1139, 1
      %vm1176 = vcmp.eq.s32.totalorder %v1140, 1
      %vm1177 = vcmp.eq.s32.totalorder %v1141, 1
      %vm1178 = vcmp.eq.s32.totalorder %v1142, 1
      %vm1179 = vcmp.eq.s32.totalorder %v1143, 1
      %vm1180 = vcmp.eq.s32.totalorder %v1144, 1
      %vm1181 = vcmp.eq.s32.totalorder %v1145, 1
      %vm1182 = vcmp.eq.s32.totalorder %v1146, 1
      %vm1183 = vcmp.eq.s32.totalorder %v1147, 1
      %vm1184 = vcmp.eq.s32.totalorder %v1148, 1
      %vm1185 = vmpackc.low %vm1149, %vm1149
      %vm1186 = vmpackc.low %vm1150, %vm1150
      %vm1187 = vmpackc.low %vm1151, %vm1151
      %vm1188 = vmpackc.low %vm1152, %vm1152
      %vm1189 = vmpackc.low %vm1153, %vm1153
      %vm1190 = vmpackc.low %vm1154, %vm1154
      %vm1191 = vmpackc.low %vm1155, %vm1155
      %vm1192 = vmpackc.low %vm1156, %vm1156
      %vm1193 = vmpackc.low %vm1157, %vm1157
      %vm1194 = vmpackc.low %vm1158, %vm1158
      %vm1195 = vmpackc.low %vm1159, %vm1159
      %vm1196 = vmpackc.low %vm1160, %vm1160
      %vm1197 = vmpackc.low %vm1161, %vm1161
      %vm1198 = vmpackc.low %vm1162, %vm1162
      %vm1199 = vmpackc.low %vm1163, %vm1163
      %vm1200 = vmpackc.low %vm1164, %vm1164
      %vm1201 = vmpackc.low %vm1165, %vm1165
      %vm1202 = vmpackc.low %vm1166, %vm1166
      %vm1203 = vmpackc.low %vm1167, %vm1167
      %vm1204 = vmpackc.low %vm1168, %vm1168
      %vm1205 = vmpackc.low %vm1169, %vm1169
      %vm1206 = vmpackc.low %vm1170, %vm1170
      %vm1207 = vmpackc.low %vm1171, %vm1171
      %vm1208 = vmpackc.low %vm1172, %vm1172
      %vm1209 = vmpackc.low %vm1173, %vm1173
      %vm1210 = vmpackc.low %vm1174, %vm1174
      %vm1211 = vmpackc.low %vm1175, %vm1175
      %vm1212 = vmpackc.low %vm1176, %vm1176
      %vm1213 = vmpackc.low %vm1177, %vm1177
      %vm1214 = vmpackc.low %vm1178, %vm1178
      %vm1215 = vmpackc.low %vm1179, %vm1179
      %vm1216 = vmpackc.low %vm1180, %vm1180
      %vm1217 = vmpackc.low %vm1181, %vm1181
      %vm1218 = vmpackc.low %vm1182, %vm1182
      %vm1219 = vmpackc.low %vm1183, %vm1183
      %vm1220 = vmpackc.low %vm1184, %vm1184
      %v1221 = vsel %vm1185, 65537, 0
      %v1222 = vsel %vm1186, 65537, 0
      %v1223 = vsel %vm1187, 65537, 0
      %v1224 = vsel %vm1188, 65537, 0
      %v1225 = vsel %vm1189, 65537, 0
      %v1226 = vsel %vm1190, 65537, 0
      %v1227 = vsel %vm1191, 65537, 0
      %v1228 = vsel %vm1192, 65537, 0
      %v1229 = vsel %vm1193, 65537, 0
      %v1230 = vsel %vm1194, 65537, 0
      %v1231 = vsel %vm1195, 65537, 0
      %v1232 = vsel %vm1196, 65537, 0
      %v1233 = vsel %vm1197, 65537, 0
      %v1234 = vsel %vm1198, 65537, 0
      %v1235 = vsel %vm1199, 65537, 0
      %v1236 = vsel %vm1200, 65537, 0
      %v1237 = vsel %vm1201, 65537, 0
      %v1238 = vsel %vm1202, 65537, 0
      %v1239 = vsel %vm1203, 65537, 0
      %v1240 = vsel %vm1204, 65537, 0
      %v1241 = vsel %vm1205, 65537, 0
      %v1242 = vsel %vm1206, 65537, 0
      %v1243 = vsel %vm1207, 65537, 0
      %v1244 = vsel %vm1208, 65537, 0
      %v1245 = vsel %vm1209, 65537, 0
      %v1246 = vsel %vm1210, 65537, 0
      %v1247 = vsel %vm1211, 65537, 0
      %v1248 = vsel %vm1212, 65537, 0
      %v1249 = vsel %vm1213, 65537, 0
      %v1250 = vsel %vm1214, 65537, 0
      %v1251 = vsel %vm1215, 65537, 0
      %v1252 = vsel %vm1216, 65537, 0
      %v1253 = vsel %vm1217, 65537, 0
      %v1254 = vsel %vm1218, 65537, 0
      %v1255 = vsel %vm1219, 65537, 0
      %v1256 = vsel %vm1220, 65537, 0
      %vm1257 = vsmask.f32 256
      %vm1258 = vsmask.f32 4368
      %vm1259 = vmor %vm1257, %vm1258
      %v1261 = vshrl.u32 %v1221, 16
      %v1263 = vrot.slane %v1261, 7
      %v1264 = vshll.u32 %v1221, 16
      %v1266 = vor.u32 %v1263, %v1264
      %v1267 = vrot.slane %v1263, 4
      %v1269 = vshrl.u32 %v1222, 16
      %v1271 = vrot.slane %v1269, 7
      %v1272 = vshll.u32 %v1222, 16
      %v1274 = vor.u32 %v1271, %v1272
      %v1275 = vsel %vm1259, %v1267, %v1274
      %v1276 = vrot.slane %v1271, 4
      %v1278 = vshrl.u32 %v1223, 16
      %v1280 = vrot.slane %v1278, 7
      %v1281 = vshll.u32 %v1223, 16
      %v1283 = vor.u32 %v1280, %v1281
      %v1284 = vsel %vm1259, %v1276, %v1283
      %v1285 = vrot.slane %v1280, 4
      %v1287 = vshrl.u32 %v1224, 16
      %v1289 = vrot.slane %v1287, 7
      %v1290 = vshll.u32 %v1224, 16
      %v1292 = vor.u32 %v1289, %v1290
      %v1293 = vsel %vm1259, %v1285, %v1292
      %v1294 = vrot.slane %v1289, 4
      %v1296 = vshrl.u32 %v1225, 16
      %v1298 = vrot.slane %v1296, 7
      %v1299 = vshll.u32 %v1225, 16
      %v1301 = vor.u32 %v1298, %v1299
      %v1302 = vsel %vm1259, %v1294, %v1301
      %v1303 = vrot.slane %v1298, 4
      %v1305 = vshrl.u32 %v1226, 16
      %v1307 = vrot.slane %v1305, 7
      %v1308 = vshll.u32 %v1226, 16
      %v1310 = vor.u32 %v1307, %v1308
      %v1311 = vsel %vm1259, %v1303, %v1310
      %v1312 = vrot.slane %v1307, 4
      %v1314 = vshrl.u32 %v1227, 16
      %v1316 = vrot.slane %v1314, 7
      %v1317 = vshll.u32 %v1227, 16
      %v1319 = vor.u32 %v1316, %v1317
      %v1320 = vsel %vm1259, %v1312, %v1319
      %v1321 = vrot.slane %v1316, 4
      %v1323 = vshrl.u32 %v1228, 16
      %v1325 = vrot.slane %v1323, 7
      %v1326 = vshll.u32 %v1228, 16
      %v1328 = vor.u32 %v1325, %v1326
      %v1329 = vsel %vm1259, %v1321, %v1328
      %v1330 = vrot.slane %v1325, 4
      %v1332 = vshrl.u32 %v1229, 16
      %v1334 = vrot.slane %v1332, 7
      %v1335 = vshll.u32 %v1229, 16
      %v1337 = vor.u32 %v1334, %v1335
      %v1338 = vsel %vm1259, %v1330, %v1337
      %v1339 = vrot.slane %v1334, 4
      %v1341 = vshrl.u32 %v1230, 16
      %v1343 = vrot.slane %v1341, 7
      %v1344 = vshll.u32 %v1230, 16
      %v1346 = vor.u32 %v1343, %v1344
      %v1347 = vsel %vm1259, %v1339, %v1346
      %v1348 = vrot.slane %v1343, 4
      %v1350 = vshrl.u32 %v1231, 16
      %v1352 = vrot.slane %v1350, 7
      %v1353 = vshll.u32 %v1231, 16
      %v1355 = vor.u32 %v1352, %v1353
      %v1356 = vsel %vm1259, %v1348, %v1355
      %v1357 = vrot.slane %v1352, 4
      %v1359 = vshrl.u32 %v1232, 16
      %v1361 = vrot.slane %v1359, 7
      %v1362 = vshll.u32 %v1232, 16
      %v1364 = vor.u32 %v1361, %v1362
      %v1365 = vsel %vm1259, %v1357, %v1364
      %v1366 = vrot.slane %v1361, 4
      %v1368 = vshrl.u32 %v1233, 16
      %v1370 = vrot.slane %v1368, 7
      %v1371 = vshll.u32 %v1233, 16
      %v1373 = vor.u32 %v1370, %v1371
      %v1374 = vsel %vm1259, %v1366, %v1373
      %v1375 = vrot.slane %v1370, 4
      %v1377 = vshrl.u32 %v1234, 16
      %v1379 = vrot.slane %v1377, 7
      %v1380 = vshll.u32 %v1234, 16
      %v1382 = vor.u32 %v1379, %v1380
      %v1383 = vsel %vm1259, %v1375, %v1382
      %v1384 = vrot.slane %v1379, 4
      %v1386 = vshrl.u32 %v1235, 16
      %v1388 = vrot.slane %v1386, 7
      %v1389 = vshll.u32 %v1235, 16
      %v1391 = vor.u32 %v1388, %v1389
      %v1392 = vsel %vm1259, %v1384, %v1391
      %v1393 = vrot.slane %v1388, 4
      %v1395 = vshrl.u32 %v1236, 16
      %v1397 = vrot.slane %v1395, 7
      %v1398 = vshll.u32 %v1236, 16
      %v1400 = vor.u32 %v1397, %v1398
      %v1401 = vsel %vm1259, %v1393, %v1400
      %v1402 = vrot.slane %v1397, 4
      %v1404 = vshrl.u32 %v1237, 16
      %v1406 = vrot.slane %v1404, 7
      %v1407 = vshll.u32 %v1237, 16
      %v1409 = vor.u32 %v1406, %v1407
      %v1410 = vsel %vm1259, %v1402, %v1409
      %v1411 = vrot.slane %v1406, 4
      %v1413 = vshrl.u32 %v1238, 16
      %v1415 = vrot.slane %v1413, 7
      %v1416 = vshll.u32 %v1238, 16
      %v1418 = vor.u32 %v1415, %v1416
      %v1419 = vsel %vm1259, %v1411, %v1418
      %v1420 = vrot.slane %v1415, 4
      %v1422 = vshrl.u32 %v1239, 16
      %v1424 = vrot.slane %v1422, 7
      %v1425 = vshll.u32 %v1239, 16
      %v1427 = vor.u32 %v1424, %v1425
      %v1428 = vsel %vm1259, %v1420, %v1427
      %v1429 = vrot.slane %v1424, 4
      %v1431 = vshrl.u32 %v1240, 16
      %v1433 = vrot.slane %v1431, 7
      %v1434 = vshll.u32 %v1240, 16
      %v1436 = vor.u32 %v1433, %v1434
      %v1437 = vsel %vm1259, %v1429, %v1436
      %v1438 = vrot.slane %v1433, 4
      %v1440 = vshrl.u32 %v1241, 16
      %v1442 = vrot.slane %v1440, 7
      %v1443 = vshll.u32 %v1241, 16
      %v1445 = vor.u32 %v1442, %v1443
      %v1446 = vsel %vm1259, %v1438, %v1445
      %v1447 = vrot.slane %v1442, 4
      %v1449 = vshrl.u32 %v1242, 16
      %v1451 = vrot.slane %v1449, 7
      %v1452 = vshll.u32 %v1242, 16
      %v1454 = vor.u32 %v1451, %v1452
      %v1455 = vsel %vm1259, %v1447, %v1454
      %v1456 = vrot.slane %v1451, 4
      %v1458 = vshrl.u32 %v1243, 16
      %v1460 = vrot.slane %v1458, 7
      %v1461 = vshll.u32 %v1243, 16
      %v1463 = vor.u32 %v1460, %v1461
      %v1464 = vsel %vm1259, %v1456, %v1463
      %v1465 = vrot.slane %v1460, 4
      %v1467 = vshrl.u32 %v1244, 16
      %v1469 = vrot.slane %v1467, 7
      %v1470 = vshll.u32 %v1244, 16
      %v1472 = vor.u32 %v1469, %v1470
      %v1473 = vsel %vm1259, %v1465, %v1472
      %v1474 = vrot.slane %v1469, 4
      %v1476 = vshrl.u32 %v1245, 16
      %v1478 = vrot.slane %v1476, 7
      %v1479 = vshll.u32 %v1245, 16
      %v1481 = vor.u32 %v1478, %v1479
      %v1482 = vsel %vm1259, %v1474, %v1481
      %v1483 = vrot.slane %v1478, 4
      %v1485 = vshrl.u32 %v1246, 16
      %v1487 = vrot.slane %v1485, 7
      %v1488 = vshll.u32 %v1246, 16
      %v1490 = vor.u32 %v1487, %v1488
      %v1491 = vsel %vm1259, %v1483, %v1490
      %v1492 = vrot.slane %v1487, 4
      %v1494 = vshrl.u32 %v1247, 16
      %v1496 = vrot.slane %v1494, 7
      %v1497 = vshll.u32 %v1247, 16
      %v1499 = vor.u32 %v1496, %v1497
      %v1500 = vsel %vm1259, %v1492, %v1499
      %v1501 = vrot.slane %v1496, 4
      %v1503 = vshrl.u32 %v1248, 16
      %v1505 = vrot.slane %v1503, 7
      %v1506 = vshll.u32 %v1248, 16
      %v1508 = vor.u32 %v1505, %v1506
      %v1509 = vsel %vm1259, %v1501, %v1508
      %v1510 = vrot.slane %v1505, 4
      %v1512 = vshrl.u32 %v1249, 16
      %v1514 = vrot.slane %v1512, 7
      %v1515 = vshll.u32 %v1249, 16
      %v1517 = vor.u32 %v1514, %v1515
      %v1518 = vsel %vm1259, %v1510, %v1517
      %v1519 = vrot.slane %v1514, 4
      %v1521 = vshrl.u32 %v1250, 16
      %v1523 = vrot.slane %v1521, 7
      %v1524 = vshll.u32 %v1250, 16
      %v1526 = vor.u32 %v1523, %v1524
      %v1527 = vsel %vm1259, %v1519, %v1526
      %v1528 = vrot.slane %v1523, 4
      %v1530 = vshrl.u32 %v1251, 16
      %v1532 = vrot.slane %v1530, 7
      %v1533 = vshll.u32 %v1251, 16
      %v1535 = vor.u32 %v1532, %v1533
      %v1536 = vsel %vm1259, %v1528, %v1535
      %v1537 = vrot.slane %v1532, 4
      %v1539 = vshrl.u32 %v1252, 16
      %v1541 = vrot.slane %v1539, 7
      %v1542 = vshll.u32 %v1252, 16
      %v1544 = vor.u32 %v1541, %v1542
      %v1545 = vsel %vm1259, %v1537, %v1544
      %v1546 = vrot.slane %v1541, 4
      %v1548 = vshrl.u32 %v1253, 16
      %v1550 = vrot.slane %v1548, 7
      %v1551 = vshll.u32 %v1253, 16
      %v1553 = vor.u32 %v1550, %v1551
      %v1554 = vsel %vm1259, %v1546, %v1553
      %v1555 = vrot.slane %v1550, 4
      %v1557 = vshrl.u32 %v1254, 16
      %v1559 = vrot.slane %v1557, 7
      %v1560 = vshll.u32 %v1254, 16
      %v1562 = vor.u32 %v1559, %v1560
      %v1563 = vsel %vm1259, %v1555, %v1562
      %v1564 = vrot.slane %v1559, 4
      %v1566 = vshrl.u32 %v1255, 16
      %v1568 = vrot.slane %v1566, 7
      %v1569 = vshll.u32 %v1255, 16
      %v1571 = vor.u32 %v1568, %v1569
      %v1572 = vsel %vm1259, %v1564, %v1571
      %v1573 = vrot.slane %v1568, 4
      %v1575 = vshrl.u32 %v1256, 16
      %v1577 = vrot.slane %v1575, 7
      %v1578 = vshll.u32 %v1256, 16
      %v1580 = vor.u32 %v1577, %v1578
      %v1581 = vsel %vm1259, %v1573, %v1580
      %v1582 = vrot.slane %v1577, 4
      %vm1583 = vcmp.ne.s16.totalorder %v1266, 0
      %vm1584 = vcmp.ne.s16.totalorder %v1275, 0
      %vm1585 = vcmp.ne.s16.totalorder %v1284, 0
      %vm1586 = vcmp.ne.s16.totalorder %v1293, 0
      %vm1587 = vcmp.ne.s16.totalorder %v1302, 0
      %vm1588 = vcmp.ne.s16.totalorder %v1311, 0
      %vm1589 = vcmp.ne.s16.totalorder %v1320, 0
      %vm1590 = vcmp.ne.s16.totalorder %v1329, 0
      %vm1591 = vcmp.ne.s16.totalorder %v1338, 0
      %vm1592 = vcmp.ne.s16.totalorder %v1347, 0
      %vm1593 = vcmp.ne.s16.totalorder %v1356, 0
      %vm1594 = vcmp.ne.s16.totalorder %v1365, 0
      %vm1595 = vcmp.ne.s16.totalorder %v1374, 0
      %vm1596 = vcmp.ne.s16.totalorder %v1383, 0
      %vm1597 = vcmp.ne.s16.totalorder %v1392, 0
      %vm1598 = vcmp.ne.s16.totalorder %v1401, 0
      %vm1599 = vcmp.ne.s16.totalorder %v1410, 0
      %vm1600 = vcmp.ne.s16.totalorder %v1419, 0
      %vm1601 = vcmp.ne.s16.totalorder %v1428, 0
      %vm1602 = vcmp.ne.s16.totalorder %v1437, 0
      %vm1603 = vcmp.ne.s16.totalorder %v1446, 0
      %vm1604 = vcmp.ne.s16.totalorder %v1455, 0
      %vm1605 = vcmp.ne.s16.totalorder %v1464, 0
      %vm1606 = vcmp.ne.s16.totalorder %v1473, 0
      %vm1607 = vcmp.ne.s16.totalorder %v1482, 0
      %vm1608 = vcmp.ne.s16.totalorder %v1491, 0
      %vm1609 = vcmp.ne.s16.totalorder %v1500, 0
      %vm1610 = vcmp.ne.s16.totalorder %v1509, 0
      %vm1611 = vcmp.ne.s16.totalorder %v1518, 0
      %vm1612 = vcmp.ne.s16.totalorder %v1527, 0
      %vm1613 = vcmp.ne.s16.totalorder %v1536, 0
      %vm1614 = vcmp.ne.s16.totalorder %v1545, 0
      %vm1615 = vcmp.ne.s16.totalorder %v1554, 0
      %vm1616 = vcmp.ne.s16.totalorder %v1563, 0
      %vm1617 = vcmp.ne.s16.totalorder %v1572, 0
      %vm1618 = vcmp.ne.s16.totalorder %v1581, 0
      %vm1619 = vcmp.ne.s16.totalorder %v1582, 0
      %v1620 = vsel %vm1583, %v496, 0
      %v1621 = vsel %vm1584, %v497, 0
      %v1622 = vsel %vm1585, %v498, 0
      %v1623 = vsel %vm1586, %v499, 0
      %v1624 = vsel %vm1587, %v500, 0
      %v1625 = vsel %vm1588, %v501, 0
      %v1626 = vsel %vm1589, %v502, 0
      %v1627 = vsel %vm1590, %v503, 0
      %v1628 = vsel %vm1591, %v504, 0
      %v1629 = vsel %vm1592, %v505, 0
      %v1630 = vsel %vm1593, %v506, 0
      %v1631 = vsel %vm1594, %v507, 0
      %v1632 = vsel %vm1595, %v508, 0
      %v1633 = vsel %vm1596, %v509, 0
      %v1634 = vsel %vm1597, %v510, 0
      %v1635 = vsel %vm1598, %v511, 0
      %v1636 = vsel %vm1599, %v512, 0
      %v1637 = vsel %vm1600, %v513, 0
      %v1638 = vsel %vm1601, %v514, 0
      %v1639 = vsel %vm1602, %v515, 0
      %v1640 = vsel %vm1603, %v516, 0
      %v1641 = vsel %vm1604, %v517, 0
      %v1642 = vsel %vm1605, %v518, 0
      %v1643 = vsel %vm1606, %v519, 0
      %v1644 = vsel %vm1607, %v520, 0
      %v1645 = vsel %vm1608, %v521, 0
      %v1646 = vsel %vm1609, %v522, 0
      %v1647 = vsel %vm1610, %v523, 0
      %v1648 = vsel %vm1611, %v524, 0
      %v1649 = vsel %vm1612, %v525, 0
      %v1650 = vsel %vm1613, %v526, 0
      %v1651 = vsel %vm1614, %v527, 0
      %v1652 = vsel %vm1615, %v528, 0
      %v1653 = vsel %vm1616, %v529, 0
      %v1654 = vsel %vm1617, %v530, 0
      %v1655 = vsel %vm1618, %v531, 0
      %v1656 = vsel %vm1619, %v532, 0
      %v1690 = vunpack.c.l.b16 %v1076
      %v1691 = vunpack.c.l.b16 %v1077
      %v1692 = vunpack.c.l.b16 %v1078
      %v1693 = vunpack.c.l.b16 %v1079
      %v1694 = vunpack.c.l.b16 %v1080
      %v1695 = vunpack.c.l.b16 %v1081
      %v1696 = vunpack.c.l.b16 %v1082
      %v1697 = vunpack.c.l.b16 %v1083
      %v1698 = vunpack.c.l.b16 %v1084
      %v1699 = vunpack.c.l.b16 %v1085
      %v1700 = vunpack.c.l.b16 %v1086
      %v1701 = vunpack.c.l.b16 %v1087
      %v1702 = vunpack.c.l.b16 %v1088
      %v1703 = vunpack.c.l.b16 %v1089
      %v1704 = vunpack.c.l.b16 %v1090
      %v1705 = vunpack.c.l.b16 %v1091
      %v1706 = vunpack.c.l.b16 %v1092
      %v1707 = vunpack.c.l.b16 %v1093
      %v1708 = vunpack.c.l.b16 %v1094
      %v1709 = vunpack.c.l.b16 %v1095
      %v1710 = vunpack.c.l.b16 %v1096
      %v1711 = vunpack.c.l.b16 %v1097
      %v1712 = vunpack.c.l.b16 %v1098
      %v1713 = vunpack.c.l.b16 %v1099
      %v1714 = vunpack.c.l.b16 %v1100
      %v1715 = vunpack.c.l.b16 %v1101
      %v1716 = vunpack.c.l.b16 %v1102
      %v1717 = vunpack.c.l.b16 %v1103
      %v1718 = vunpack.c.l.b16 %v1104
      %v1719 = vunpack.c.l.b16 %v1105
      %v1720 = vunpack.c.l.b16 %v1106
      %v1721 = vunpack.c.l.b16 %v1107
      %v1722 = vunpack.c.l.b16 %v1108
      %v1723 = vpack.c.b16 %v1691, %v1690
      %v1724 = vpack.c.b16 %v1693, %v1692
      %v1725 = vpack.c.b16 %v1695, %v1694
      %v1726 = vpack.c.b16 %v1697, %v1696
      %v1727 = vpack.c.b16 %v1699, %v1698
      %v1728 = vpack.c.b16 %v1701, %v1700
      %v1729 = vpack.c.b16 %v1703, %v1702
      %v1730 = vpack.c.b16 %v1705, %v1704
      %v1731 = vpack.c.b16 %v1707, %v1706
      %v1732 = vpack.c.b16 %v1709, %v1708
      %v1733 = vpack.c.b16 %v1711, %v1710
      %v1734 = vpack.c.b16 %v1713, %v1712
      %v1735 = vpack.c.b16 %v1715, %v1714
      %v1736 = vpack.c.b16 %v1717, %v1716
      %v1737 = vpack.c.b16 %v1719, %v1718
      %v1738 = vpack.c.b16 %v1721, %v1720
      %v1739 = vpack.c.b16 %v1722, %v1722
      %v1772 = vunpack.c.l.b16 %v496
      %v1773 = vunpack.c.l.b16 %v497
      %v1774 = vunpack.c.l.b16 %v498
      %v1775 = vunpack.c.l.b16 %v499
      %v1776 = vunpack.c.l.b16 %v500
      %v1777 = vunpack.c.l.b16 %v501
      %v1778 = vunpack.c.l.b16 %v502
      %v1779 = vunpack.c.l.b16 %v503
      %v1780 = vunpack.c.l.b16 %v504
      %v1781 = vunpack.c.l.b16 %v505
      %v1782 = vunpack.c.l.b16 %v506
      %v1783 = vunpack.c.l.b16 %v507
      %v1784 = vunpack.c.l.b16 %v508
      %v1785 = vunpack.c.l.b16 %v509
      %v1786 = vunpack.c.l.b16 %v510
      %v1787 = vunpack.c.l.b16 %v511
      %v1788 = vunpack.c.l.b16 %v512
      %v1789 = vunpack.c.l.b16 %v513
      %v1790 = vunpack.c.l.b16 %v514
      %v1791 = vunpack.c.l.b16 %v515
      %v1792 = vunpack.c.l.b16 %v516
      %v1793 = vunpack.c.l.b16 %v517
      %v1794 = vunpack.c.l.b16 %v518
      %v1795 = vunpack.c.l.b16 %v519
      %v1796 = vunpack.c.l.b16 %v520
      %v1797 = vunpack.c.l.b16 %v521
      %v1798 = vunpack.c.l.b16 %v522
      %v1799 = vunpack.c.l.b16 %v523
      %v1800 = vunpack.c.l.b16 %v524
      %v1801 = vunpack.c.l.b16 %v525
      %v1802 = vunpack.c.l.b16 %v526
      %v1803 = vunpack.c.l.b16 %v527
      %v1804 = vpack.c.b16 %v1773, %v1772
      %v1805 = vpack.c.b16 %v1775, %v1774
      %v1806 = vpack.c.b16 %v1777, %v1776
      %v1807 = vpack.c.b16 %v1779, %v1778
      %v1808 = vpack.c.b16 %v1781, %v1780
      %v1809 = vpack.c.b16 %v1783, %v1782
      %v1810 = vpack.c.b16 %v1785, %v1784
      %v1811 = vpack.c.b16 %v1787, %v1786
      %v1812 = vpack.c.b16 %v1789, %v1788
      %v1813 = vpack.c.b16 %v1791, %v1790
      %v1814 = vpack.c.b16 %v1793, %v1792
      %v1815 = vpack.c.b16 %v1795, %v1794
      %v1816 = vpack.c.b16 %v1797, %v1796
      %v1817 = vpack.c.b16 %v1799, %v1798
      %v1818 = vpack.c.b16 %v1801, %v1800
      %v1819 = vpack.c.b16 %v1803, %v1802
      %v1821 = vshrl.u32 %v1804, 16
      %v1823 = vrot.slane %v1821, 4
      %v1824 = vshll.u32 %v1804, 16
      %v1826 = vrot.slane %v1824, 5
      %v1827 = vor.u32 %v1823, %v1826
      %v1829 = vshrl.u32 %v1805, 16
      %v1831 = vrot.slane %v1829, 4
      %v1832 = vshll.u32 %v1805, 16
      %v1834 = vrot.slane %v1832, 5
      %v1835 = vor.u32 %v1831, %v1834
      %v1836 = vsel %vm677, %v1827, %v1835
      %v1838 = vshrl.u32 %v1806, 16
      %v1840 = vrot.slane %v1838, 4
      %v1841 = vshll.u32 %v1806, 16
      %v1843 = vrot.slane %v1841, 5
      %v1844 = vor.u32 %v1840, %v1843
      %v1845 = vsel %vm677, %v1835, %v1844
      %v1847 = vshrl.u32 %v1807, 16
      %v1849 = vrot.slane %v1847, 4
      %v1850 = vshll.u32 %v1807, 16
      %v1852 = vrot.slane %v1850, 5
      %v1853 = vor.u32 %v1849, %v1852
      %v1854 = vsel %vm677, %v1844, %v1853
      %v1856 = vshrl.u32 %v1808, 16
      %v1858 = vrot.slane %v1856, 4
      %v1859 = vshll.u32 %v1808, 16
      %v1861 = vrot.slane %v1859, 5
      %v1862 = vor.u32 %v1858, %v1861
      %v1863 = vsel %vm677, %v1853, %v1862
      %v1865 = vshrl.u32 %v1809, 16
      %v1867 = vrot.slane %v1865, 4
      %v1868 = vshll.u32 %v1809, 16
      %v1870 = vrot.slane %v1868, 5
      %v1871 = vor.u32 %v1867, %v1870
      %v1872 = vsel %vm677, %v1862, %v1871
      %v1874 = vshrl.u32 %v1810, 16
      %v1876 = vrot.slane %v1874, 4
      %v1877 = vshll.u32 %v1810, 16
      %v1879 = vrot.slane %v1877, 5
      %v1880 = vor.u32 %v1876, %v1879
      %v1881 = vsel %vm677, %v1871, %v1880
      %v1883 = vshrl.u32 %v1811, 16
      %v1885 = vrot.slane %v1883, 4
      %v1886 = vshll.u32 %v1811, 16
      %v1888 = vrot.slane %v1886, 5
      %v1889 = vor.u32 %v1885, %v1888
      %v1890 = vsel %vm677, %v1880, %v1889
      %v1892 = vshrl.u32 %v1812, 16
      %v1894 = vrot.slane %v1892, 4
      %v1895 = vshll.u32 %v1812, 16
      %v1897 = vrot.slane %v1895, 5
      %v1898 = vor.u32 %v1894, %v1897
      %v1899 = vsel %vm677, %v1889, %v1898
      %v1901 = vshrl.u32 %v1813, 16
      %v1903 = vrot.slane %v1901, 4
      %v1904 = vshll.u32 %v1813, 16
      %v1906 = vrot.slane %v1904, 5
      %v1907 = vor.u32 %v1903, %v1906
      %v1908 = vsel %vm677, %v1898, %v1907
      %v1910 = vshrl.u32 %v1814, 16
      %v1912 = vrot.slane %v1910, 4
      %v1913 = vshll.u32 %v1814, 16
      %v1915 = vrot.slane %v1913, 5
      %v1916 = vor.u32 %v1912, %v1915
      %v1917 = vsel %vm677, %v1907, %v1916
      %v1919 = vshrl.u32 %v1815, 16
      %v1921 = vrot.slane %v1919, 4
      %v1922 = vshll.u32 %v1815, 16
      %v1924 = vrot.slane %v1922, 5
      %v1925 = vor.u32 %v1921, %v1924
      %v1926 = vsel %vm677, %v1916, %v1925
      %v1928 = vshrl.u32 %v1816, 16
      %v1930 = vrot.slane %v1928, 4
      %v1931 = vshll.u32 %v1816, 16
      %v1933 = vrot.slane %v1931, 5
      %v1934 = vor.u32 %v1930, %v1933
      %v1935 = vsel %vm677, %v1925, %v1934
      %v1937 = vshrl.u32 %v1817, 16
      %v1939 = vrot.slane %v1937, 4
      %v1940 = vshll.u32 %v1817, 16
      %v1942 = vrot.slane %v1940, 5
      %v1943 = vor.u32 %v1939, %v1942
      %v1944 = vsel %vm677, %v1934, %v1943
      %v1946 = vshrl.u32 %v1818, 16
      %v1948 = vrot.slane %v1946, 4
      %v1949 = vshll.u32 %v1818, 16
      %v1951 = vrot.slane %v1949, 5
      %v1952 = vor.u32 %v1948, %v1951
      %v1953 = vsel %vm677, %v1943, %v1952
      %v1955 = vshrl.u32 %v1819, 16
      %v1957 = vrot.slane %v1955, 4
      %v1958 = vshll.u32 %v1819, 16
      %v1960 = vrot.slane %v1958, 5
      %v1961 = vor.u32 %v1957, %v1960
      %v1962 = vsel %vm677, %v1952, %v1961
      %1963 = vrot.lane.b32.xlu0 %v1827, 8
      %v1964 = vpop.permute.xlu0 %1963
      %1965 = vrot.lane.b32.xlu0 %v1836, 8
      %v1966 = vpop.permute.xlu0 %1965
      %1967 = vrot.lane.b32.xlu0 %v1845, 8
      %v1968 = vpop.permute.xlu0 %1967
      %1969 = vrot.lane.b32.xlu0 %v1854, 8
      %v1970 = vpop.permute.xlu0 %1969
      %1971 = vrot.lane.b32.xlu0 %v1863, 8
      %v1972 = vpop.permute.xlu0 %1971
      %1973 = vrot.lane.b32.xlu0 %v1872, 8
      %v1974 = vpop.permute.xlu0 %1973
      %1975 = vrot.lane.b32.xlu0 %v1881, 8
      %v1976 = vpop.permute.xlu0 %1975
      %1977 = vrot.lane.b32.xlu0 %v1890, 8
      %v1978 = vpop.permute.xlu0 %1977
      %1979 = vrot.lane.b32.xlu0 %v1899, 8
      %v1980 = vpop.permute.xlu0 %1979
      %1981 = vrot.lane.b32.xlu0 %v1908, 8
      %v1982 = vpop.permute.xlu0 %1981
      %1983 = vrot.lane.b32.xlu0 %v1917, 8
      %v1984 = vpop.permute.xlu0 %1983
      %1985 = vrot.lane.b32.xlu0 %v1926, 8
      %v1986 = vpop.permute.xlu0 %1985
      %1987 = vrot.lane.b32.xlu0 %v1935, 8
      %v1988 = vpop.permute.xlu0 %1987
      %1989 = vrot.lane.b32.xlu0 %v1944, 8
      %v1990 = vpop.permute.xlu0 %1989
      %1991 = vrot.lane.b32.xlu0 %v1953, 8
      %v1992 = vpop.permute.xlu0 %1991
      %1993 = vrot.lane.b32.xlu0 %v1962, 8
      %v1994 = vpop.permute.xlu0 %1993
      %1995 = vrot.lane.b32.xlu0 %v1961, 8
      %v1996 = vpop.permute.xlu0 %1995
      %v2030 = vunpack.c.l.b16 %v1620
      %v2031 = vunpack.c.l.b16 %v1621
      %v2032 = vunpack.c.l.b16 %v1622
      %v2033 = vunpack.c.l.b16 %v1623
      %v2034 = vunpack.c.l.b16 %v1624
      %v2035 = vunpack.c.l.b16 %v1625
      %v2036 = vunpack.c.l.b16 %v1626
      %v2037 = vunpack.c.l.b16 %v1627
      %v2038 = vunpack.c.l.b16 %v1628
      %v2039 = vunpack.c.l.b16 %v1629
      %v2040 = vunpack.c.l.b16 %v1630
      %v2041 = vunpack.c.l.b16 %v1631
      %v2042 = vunpack.c.l.b16 %v1632
      %v2043 = vunpack.c.l.b16 %v1633
      %v2044 = vunpack.c.l.b16 %v1634
      %v2045 = vunpack.c.l.b16 %v1635
      %v2046 = vunpack.c.l.b16 %v1636
      %v2047 = vunpack.c.l.b16 %v1637
      %v2048 = vunpack.c.l.b16 %v1638
      %v2049 = vunpack.c.l.b16 %v1639
      %v2050 = vunpack.c.l.b16 %v1640
      %v2051 = vunpack.c.l.b16 %v1641
      %v2052 = vunpack.c.l.b16 %v1642
      %v2053 = vunpack.c.l.b16 %v1643
      %v2054 = vunpack.c.l.b16 %v1644
      %v2055 = vunpack.c.l.b16 %v1645
      %v2056 = vunpack.c.l.b16 %v1646
      %v2057 = vunpack.c.l.b16 %v1647
      %v2058 = vunpack.c.l.b16 %v1648
      %v2059 = vunpack.c.l.b16 %v1649
      %v2060 = vunpack.c.l.b16 %v1650
      %v2061 = vunpack.c.l.b16 %v1651
      %v2062 = vunpack.c.l.b16 %v1652
      %v2063 = vpack.c.b16 %v2031, %v2030
      %v2064 = vpack.c.b16 %v2033, %v2032
      %v2065 = vpack.c.b16 %v2035, %v2034
      %v2066 = vpack.c.b16 %v2037, %v2036
      %v2067 = vpack.c.b16 %v2039, %v2038
      %v2068 = vpack.c.b16 %v2041, %v2040
      %v2069 = vpack.c.b16 %v2043, %v2042
      %v2070 = vpack.c.b16 %v2045, %v2044
      %v2071 = vpack.c.b16 %v2047, %v2046
      %v2072 = vpack.c.b16 %v2049, %v2048
      %v2073 = vpack.c.b16 %v2051, %v2050
      %v2074 = vpack.c.b16 %v2053, %v2052
      %v2075 = vpack.c.b16 %v2055, %v2054
      %v2076 = vpack.c.b16 %v2057, %v2056
      %v2077 = vpack.c.b16 %v2059, %v2058
      %v2078 = vpack.c.b16 %v2061, %v2060
      %v2079 = vpack.c.b16 %v2062, %v2062
      %vm2080 = vcmask 1042432
      %v2081 = vrot.slane %v2063, 5
      %v2082 = vrot.slane %v2064, 5
      %v2083 = vsel %vm2080, %v2081, %v2082
      %v2084 = vrot.slane %v2065, 5
      %v2085 = vsel %vm2080, %v2082, %v2084
      %v2086 = vrot.slane %v2066, 5
      %v2087 = vsel %vm2080, %v2084, %v2086
      %v2088 = vrot.slane %v2067, 5
      %v2089 = vsel %vm2080, %v2086, %v2088
      %v2090 = vrot.slane %v2068, 5
      %v2091 = vsel %vm2080, %v2088, %v2090
      %v2092 = vrot.slane %v2069, 5
      %v2093 = vsel %vm2080, %v2090, %v2092
      %v2094 = vrot.slane %v2070, 5
      %v2095 = vsel %vm2080, %v2092, %v2094
      %v2096 = vrot.slane %v2071, 5
      %v2097 = vsel %vm2080, %v2094, %v2096
      %v2098 = vrot.slane %v2072, 5
      %v2099 = vsel %vm2080, %v2096, %v2098
      %v2100 = vrot.slane %v2073, 5
      %v2101 = vsel %vm2080, %v2098, %v2100
      %v2102 = vrot.slane %v2074, 5
      %v2103 = vsel %vm2080, %v2100, %v2102
      %v2104 = vrot.slane %v2075, 5
      %v2105 = vsel %vm2080, %v2102, %v2104
      %v2106 = vrot.slane %v2076, 5
      %v2107 = vsel %vm2080, %v2104, %v2106
      %v2108 = vrot.slane %v2077, 5
      %v2109 = vsel %vm2080, %v2106, %v2108
      %v2110 = vrot.slane %v2078, 5
      %v2111 = vsel %vm2080, %v2108, %v2110
      %v2112 = vrot.slane %v2079, 5
      %v2113 = vsel %vm2080, %v2110, %v2112
      %2114 = vrot.lane.b32.xlu0 %v2081, 16
      %v2115 = vpop.permute.xlu0 %2114
      %2116 = vrot.lane.b32.xlu0 %v2083, 16
      %v2117 = vpop.permute.xlu0 %2116
      %2118 = vrot.lane.b32.xlu0 %v2085, 16
      %v2119 = vpop.permute.xlu0 %2118
      %2120 = vrot.lane.b32.xlu0 %v2087, 16
      %v2121 = vpop.permute.xlu0 %2120
      %2122 = vrot.lane.b32.xlu0 %v2089, 16
      %v2123 = vpop.permute.xlu0 %2122
      %2124 = vrot.lane.b32.xlu0 %v2091, 16
      %v2125 = vpop.permute.xlu0 %2124
      %2126 = vrot.lane.b32.xlu0 %v2093, 16
      %v2127 = vpop.permute.xlu0 %2126
      %2128 = vrot.lane.b32.xlu0 %v2095, 16
      %v2129 = vpop.permute.xlu0 %2128
      %2130 = vrot.lane.b32.xlu0 %v2097, 16
      %v2131 = vpop.permute.xlu0 %2130
      %2132 = vrot.lane.b32.xlu0 %v2099, 16
      %v2133 = vpop.permute.xlu0 %2132
      %2134 = vrot.lane.b32.xlu0 %v2101, 16
      %v2135 = vpop.permute.xlu0 %2134
      %2136 = vrot.lane.b32.xlu0 %v2103, 16
      %v2137 = vpop.permute.xlu0 %2136
      %2138 = vrot.lane.b32.xlu0 %v2105, 16
      %v2139 = vpop.permute.xlu0 %2138
      %2140 = vrot.lane.b32.xlu0 %v2107, 16
      %v2141 = vpop.permute.xlu0 %2140
      %2142 = vrot.lane.b32.xlu0 %v2109, 16
      %v2143 = vpop.permute.xlu0 %2142
      %2144 = vrot.lane.b32.xlu0 %v2111, 16
      %v2145 = vpop.permute.xlu0 %2144
      %2146 = vrot.lane.b32.xlu0 %v2113, 16
      %v2147 = vpop.permute.xlu0 %2146
      %v2150 = vunpack.c.l.b16 %v1109
      %v2151 = vunpack.c.l.b16 %v1110
      %v2152 = vpack.c.b16 %v2150, %v1722
      %v2153 = vpack.c.b16 %v2151, %v2151
      %2154 = vrot.lane.b32.xlu0 %v1724, 24
      %v2155 = vpop.permute.xlu0 %2154
      %2156 = vrot.lane.b32.xlu0 %v1725, 24
      %v2157 = vpop.permute.xlu0 %2156
      %2158 = vrot.lane.b32.xlu0 %v1726, 24
      %v2159 = vpop.permute.xlu0 %2158
      %2160 = vrot.lane.b32.xlu0 %v1727, 24
      %v2161 = vpop.permute.xlu0 %2160
      %2162 = vrot.lane.b32.xlu0 %v1728, 24
      %v2163 = vpop.permute.xlu0 %2162
      %2164 = vrot.lane.b32.xlu0 %v1729, 24
      %v2165 = vpop.permute.xlu0 %2164
      %2166 = vrot.lane.b32.xlu0 %v1730, 24
      %v2167 = vpop.permute.xlu0 %2166
      %2168 = vrot.lane.b32.xlu0 %v1731, 24
      %v2169 = vpop.permute.xlu0 %2168
      %2170 = vrot.lane.b32.xlu0 %v1732, 24
      %v2171 = vpop.permute.xlu0 %2170
      %2172 = vrot.lane.b32.xlu0 %v1733, 24
      %v2173 = vpop.permute.xlu0 %2172
      %2174 = vrot.lane.b32.xlu0 %v1734, 24
      %v2175 = vpop.permute.xlu0 %2174
      %2176 = vrot.lane.b32.xlu0 %v1735, 24
      %v2177 = vpop.permute.xlu0 %2176
      %2178 = vrot.lane.b32.xlu0 %v1736, 24
      %v2179 = vpop.permute.xlu0 %2178
      %2180 = vrot.lane.b32.xlu0 %v1737, 24
      %v2181 = vpop.permute.xlu0 %2180
      %2182 = vrot.lane.b32.xlu0 %v1738, 24
      %v2183 = vpop.permute.xlu0 %2182
      %2184 = vrot.lane.b32.xlu0 %v2152, 24
      %v2185 = vpop.permute.xlu0 %2184
      %2186 = vrot.lane.b32.xlu0 %v2153, 24
      %v2187 = vpop.permute.xlu0 %2186
      %v2190 = vunpack.c.l.b16 %v528
      %v2191 = vunpack.c.l.b16 %v529
      %v2192 = vpack.c.b16 %v2191, %v2190
      %v2194 = vshrl.u32 %v2192, 16
      %v2196 = vrot.slane %v2194, 4
      %v2197 = vshll.u32 %v2192, 16
      %v2199 = vrot.slane %v2197, 5
      %v2200 = vor.u32 %v2196, %v2199
      %v2201 = vsel %vm677, %v1961, %v2200
      %2202 = vrot.lane.b32.xlu0 %v1835, 32
      %v2203 = vpop.permute.xlu0 %2202
      %2204 = vrot.lane.b32.xlu0 %v1845, 32
      %v2205 = vpop.permute.xlu0 %2204
      %2206 = vrot.lane.b32.xlu0 %v1854, 32
      %v2207 = vpop.permute.xlu0 %2206
      %2208 = vrot.lane.b32.xlu0 %v1863, 32
      %v2209 = vpop.permute.xlu0 %2208
      %2210 = vrot.lane.b32.xlu0 %v1872, 32
      %v2211 = vpop.permute.xlu0 %2210
      %2212 = vrot.lane.b32.xlu0 %v1881, 32
      %v2213 = vpop.permute.xlu0 %2212
      %2214 = vrot.lane.b32.xlu0 %v1890, 32
      %v2215 = vpop.permute.xlu0 %2214
      %2216 = vrot.lane.b32.xlu0 %v1899, 32
      %v2217 = vpop.permute.xlu0 %2216
      %2218 = vrot.lane.b32.xlu0 %v1908, 32
      %v2219 = vpop.permute.xlu0 %2218
      %2220 = vrot.lane.b32.xlu0 %v1917, 32
      %v2221 = vpop.permute.xlu0 %2220
      %2222 = vrot.lane.b32.xlu0 %v1926, 32
      %v2223 = vpop.permute.xlu0 %2222
      %2224 = vrot.lane.b32.xlu0 %v1935, 32
      %v2225 = vpop.permute.xlu0 %2224
      %2226 = vrot.lane.b32.xlu0 %v1944, 32
      %v2227 = vpop.permute.xlu0 %2226
      %2228 = vrot.lane.b32.xlu0 %v1953, 32
      %v2229 = vpop.permute.xlu0 %2228
      %2230 = vrot.lane.b32.xlu0 %v1962, 32
      %v2231 = vpop.permute.xlu0 %2230
      %2232 = vrot.lane.b32.xlu0 %v2201, 32
      %v2233 = vpop.permute.xlu0 %2232
      %2234 = vrot.lane.b32.xlu0 %v2200, 32
      %v2235 = vpop.permute.xlu0 %2234
      %v2238 = vunpack.c.l.b16 %v1653
      %v2239 = vunpack.c.l.b16 %v1654
      %v2240 = vpack.c.b16 %v2238, %v2062
      %v2241 = vpack.c.b16 %v2239, %v2239
      %v2242 = vrot.slane %v2240, 5
      %v2243 = vsel %vm2080, %v2110, %v2242
      %v2244 = vrot.slane %v2241, 5
      %v2245 = vsel %vm2080, %v2242, %v2244
      %2246 = vrot.lane.b32.xlu0 %v2082, 40
      %v2247 = vpop.permute.xlu0 %2246
      %2248 = vrot.lane.b32.xlu0 %v2085, 40
      %v2249 = vpop.permute.xlu0 %2248
      %2250 = vrot.lane.b32.xlu0 %v2087, 40
      %v2251 = vpop.permute.xlu0 %2250
      %2252 = vrot.lane.b32.xlu0 %v2089, 40
      %v2253 = vpop.permute.xlu0 %2252
      %2254 = vrot.lane.b32.xlu0 %v2091, 40
      %v2255 = vpop.permute.xlu0 %2254
      %2256 = vrot.lane.b32.xlu0 %v2093, 40
      %v2257 = vpop.permute.xlu0 %2256
      %2258 = vrot.lane.b32.xlu0 %v2095, 40
      %v2259 = vpop.permute.xlu0 %2258
      %2260 = vrot.lane.b32.xlu0 %v2097, 40
      %v2261 = vpop.permute.xlu0 %2260
      %2262 = vrot.lane.b32.xlu0 %v2099, 40
      %v2263 = vpop.permute.xlu0 %2262
      %2264 = vrot.lane.b32.xlu0 %v2101, 40
      %v2265 = vpop.permute.xlu0 %2264
      %2266 = vrot.lane.b32.xlu0 %v2103, 40
      %v2267 = vpop.permute.xlu0 %2266
      %2268 = vrot.lane.b32.xlu0 %v2105, 40
      %v2269 = vpop.permute.xlu0 %2268
      %2270 = vrot.lane.b32.xlu0 %v2107, 40
      %v2271 = vpop.permute.xlu0 %2270
      %2272 = vrot.lane.b32.xlu0 %v2109, 40
      %v2273 = vpop.permute.xlu0 %2272
      %2274 = vrot.lane.b32.xlu0 %v2111, 40
      %v2275 = vpop.permute.xlu0 %2274
      %2276 = vrot.lane.b32.xlu0 %v2243, 40
      %v2277 = vpop.permute.xlu0 %2276
      %2278 = vrot.lane.b32.xlu0 %v2245, 40
      %v2279 = vpop.permute.xlu0 %2278
      %v2282 = vunpack.c.l.b16 %v1111
      %v2283 = vunpack.c.l.b16 %v1112
      %v2284 = vpack.c.b16 %v2282, %v2151
      %v2285 = vpack.c.b16 %v2283, %v2283
      %2286 = vrot.lane.b32.xlu0 %v1725, 48
      %v2287 = vpop.permute.xlu0 %2286
      %2288 = vrot.lane.b32.xlu0 %v1726, 48
      %v2289 = vpop.permute.xlu0 %2288
      %2290 = vrot.lane.b32.xlu0 %v1727, 48
      %v2291 = vpop.permute.xlu0 %2290
      %2292 = vrot.lane.b32.xlu0 %v1728, 48
      %v2293 = vpop.permute.xlu0 %2292
      %2294 = vrot.lane.b32.xlu0 %v1729, 48
      %v2295 = vpop.permute.xlu0 %2294
      %2296 = vrot.lane.b32.xlu0 %v1730, 48
      %v2297 = vpop.permute.xlu0 %2296
      %2298 = vrot.lane.b32.xlu0 %v1731, 48
      %v2299 = vpop.permute.xlu0 %2298
      %2300 = vrot.lane.b32.xlu0 %v1732, 48
      %v2301 = vpop.permute.xlu0 %2300
      %2302 = vrot.lane.b32.xlu0 %v1733, 48
      %v2303 = vpop.permute.xlu0 %2302
      %2304 = vrot.lane.b32.xlu0 %v1734, 48
      %v2305 = vpop.permute.xlu0 %2304
      %2306 = vrot.lane.b32.xlu0 %v1735, 48
      %v2307 = vpop.permute.xlu0 %2306
      %2308 = vrot.lane.b32.xlu0 %v1736, 48
      %v2309 = vpop.permute.xlu0 %2308
      %2310 = vrot.lane.b32.xlu0 %v1737, 48
      %v2311 = vpop.permute.xlu0 %2310
      %2312 = vrot.lane.b32.xlu0 %v1738, 48
      %v2313 = vpop.permute.xlu0 %2312
      %2314 = vrot.lane.b32.xlu0 %v2152, 48
      %v2315 = vpop.permute.xlu0 %2314
      %2316 = vrot.lane.b32.xlu0 %v2284, 48
      %v2317 = vpop.permute.xlu0 %2316
      %2318 = vrot.lane.b32.xlu0 %v2285, 48
      %v2319 = vpop.permute.xlu0 %2318
      %v2322 = vunpack.c.l.b16 %v530
      %v2323 = vunpack.c.l.b16 %v531
      %v2324 = vpack.c.b16 %v2323, %v2322
      %v2326 = vshrl.u32 %v2324, 16
      %v2328 = vrot.slane %v2326, 4
      %v2329 = vshll.u32 %v2324, 16
      %v2331 = vrot.slane %v2329, 5
      %v2332 = vor.u32 %v2328, %v2331
      %v2333 = vsel %vm677, %v2200, %v2332
      %2334 = vrot.lane.b32.xlu0 %v1844, 56
      %v2335 = vpop.permute.xlu0 %2334
      %2336 = vrot.lane.b32.xlu0 %v1854, 56
      %v2337 = vpop.permute.xlu0 %2336
      %2338 = vrot.lane.b32.xlu0 %v1863, 56
      %v2339 = vpop.permute.xlu0 %2338
      %2340 = vrot.lane.b32.xlu0 %v1872, 56
      %v2341 = vpop.permute.xlu0 %2340
      %2342 = vrot.lane.b32.xlu0 %v1881, 56
      %v2343 = vpop.permute.xlu0 %2342
      %2344 = vrot.lane.b32.xlu0 %v1890, 56
      %v2345 = vpop.permute.xlu0 %2344
      %2346 = vrot.lane.b32.xlu0 %v1899, 56
      %v2347 = vpop.permute.xlu0 %2346
      %2348 = vrot.lane.b32.xlu0 %v1908, 56
      %v2349 = vpop.permute.xlu0 %2348
      %2350 = vrot.lane.b32.xlu0 %v1917, 56
      %v2351 = vpop.permute.xlu0 %2350
      %2352 = vrot.lane.b32.xlu0 %v1926, 56
      %v2353 = vpop.permute.xlu0 %2352
      %2354 = vrot.lane.b32.xlu0 %v1935, 56
      %v2355 = vpop.permute.xlu0 %2354
      %2356 = vrot.lane.b32.xlu0 %v1944, 56
      %v2357 = vpop.permute.xlu0 %2356
      %2358 = vrot.lane.b32.xlu0 %v1953, 56
      %v2359 = vpop.permute.xlu0 %2358
      %2360 = vrot.lane.b32.xlu0 %v1962, 56
      %v2361 = vpop.permute.xlu0 %2360
      %2362 = vrot.lane.b32.xlu0 %v2201, 56
      %v2363 = vpop.permute.xlu0 %2362
      %2364 = vrot.lane.b32.xlu0 %v2333, 56
      %v2365 = vpop.permute.xlu0 %2364
      %2366 = vrot.lane.b32.xlu0 %v2332, 56
      %v2367 = vpop.permute.xlu0 %2366
      %v2370 = vunpack.c.l.b16 %v1655
      %v2371 = vunpack.c.l.b16 %v1656
      %v2372 = vpack.c.b16 %v2370, %v2239
      %v2373 = vpack.c.b16 %v2371, %v2371
      %v2374 = vrot.slane %v2372, 5
      %v2375 = vsel %vm2080, %v2242, %v2374
      %v2376 = vrot.slane %v2373, 5
      %v2377 = vsel %vm2080, %v2374, %v2376
      %2378 = vrot.lane.b32.xlu0 %v2084, 64
      %v2379 = vpop.permute.xlu0 %2378
      %2380 = vrot.lane.b32.xlu0 %v2087, 64
      %v2381 = vpop.permute.xlu0 %2380
      %2382 = vrot.lane.b32.xlu0 %v2089, 64
      %v2383 = vpop.permute.xlu0 %2382
      %2384 = vrot.lane.b32.xlu0 %v2091, 64
      %v2385 = vpop.permute.xlu0 %2384
      %2386 = vrot.lane.b32.xlu0 %v2093, 64
      %v2387 = vpop.permute.xlu0 %2386
      %2388 = vrot.lane.b32.xlu0 %v2095, 64
      %v2389 = vpop.permute.xlu0 %2388
      %2390 = vrot.lane.b32.xlu0 %v2097, 64
      %v2391 = vpop.permute.xlu0 %2390
      %2392 = vrot.lane.b32.xlu0 %v2099, 64
      %v2393 = vpop.permute.xlu0 %2392
      %2394 = vrot.lane.b32.xlu0 %v2101, 64
      %v2395 = vpop.permute.xlu0 %2394
      %2396 = vrot.lane.b32.xlu0 %v2103, 64
      %v2397 = vpop.permute.xlu0 %2396
      %2398 = vrot.lane.b32.xlu0 %v2105, 64
      %v2399 = vpop.permute.xlu0 %2398
      %2400 = vrot.lane.b32.xlu0 %v2107, 64
      %v2401 = vpop.permute.xlu0 %2400
      %2402 = vrot.lane.b32.xlu0 %v2109, 64
      %v2403 = vpop.permute.xlu0 %2402
      %2404 = vrot.lane.b32.xlu0 %v2111, 64
      %v2405 = vpop.permute.xlu0 %2404
      %2406 = vrot.lane.b32.xlu0 %v2243, 64
      %v2407 = vpop.permute.xlu0 %2406
      %2408 = vrot.lane.b32.xlu0 %v2375, 64
      %v2409 = vpop.permute.xlu0 %2408
      %2410 = vrot.lane.b32.xlu0 %v2377, 64
      %v2411 = vpop.permute.xlu0 %2410
      %vm2412 = vcmask 64512
      %v2415 = vsel %vm2412, %v1723, %v1964
      %v2418 = vsel %vm2412, %v1724, %v1966
      %v2421 = vsel %vm2412, %v1725, %v1968
      %v2424 = vsel %vm2412, %v1726, %v1970
      %v2427 = vsel %vm2412, %v1727, %v1972
      %v2430 = vsel %vm2412, %v1728, %v1974
      %v2433 = vsel %vm2412, %v1729, %v1976
      %v2436 = vsel %vm2412, %v1730, %v1978
      %v2439 = vsel %vm2412, %v1731, %v1980
      %v2442 = vsel %vm2412, %v1732, %v1982
      %v2445 = vsel %vm2412, %v1733, %v1984
      %v2448 = vsel %vm2412, %v1734, %v1986
      %v2451 = vsel %vm2412, %v1735, %v1988
      %v2454 = vsel %vm2412, %v1736, %v1990
      %v2457 = vsel %vm2412, %v1737, %v1992
      %v2460 = vsel %vm2412, %v1738, %v1994
      %v2463 = vsel %vm2412, %v1739, %v1996
      %v2465 = vsel %vm481, %v2415, %v2115
      %v2467 = vsel %vm481, %v2418, %v2117
      %v2469 = vsel %vm481, %v2421, %v2119
      %v2471 = vsel %vm481, %v2424, %v2121
      %v2473 = vsel %vm481, %v2427, %v2123
      %v2475 = vsel %vm481, %v2430, %v2125
      %v2477 = vsel %vm481, %v2433, %v2127
      %v2479 = vsel %vm481, %v2436, %v2129
      %v2481 = vsel %vm481, %v2439, %v2131
      %v2483 = vsel %vm481, %v2442, %v2133
      %v2485 = vsel %vm481, %v2445, %v2135
      %v2487 = vsel %vm481, %v2448, %v2137
      %v2489 = vsel %vm481, %v2451, %v2139
      %v2491 = vsel %vm481, %v2454, %v2141
      %v2493 = vsel %vm481, %v2457, %v2143
      %v2495 = vsel %vm481, %v2460, %v2145
      %v2497 = vsel %vm481, %v2463, %v2147
      %vm2498 = vcmask 195584
      %v2500 = vsel %vm2498, %v2465, %v2155
      %v2502 = vsel %vm2498, %v2467, %v2157
      %v2504 = vsel %vm2498, %v2469, %v2159
      %v2506 = vsel %vm2498, %v2471, %v2161
      %v2508 = vsel %vm2498, %v2473, %v2163
      %v2510 = vsel %vm2498, %v2475, %v2165
      %v2512 = vsel %vm2498, %v2477, %v2167
      %v2514 = vsel %vm2498, %v2479, %v2169
      %v2516 = vsel %vm2498, %v2481, %v2171
      %v2518 = vsel %vm2498, %v2483, %v2173
      %v2520 = vsel %vm2498, %v2485, %v2175
      %v2522 = vsel %vm2498, %v2487, %v2177
      %v2524 = vsel %vm2498, %v2489, %v2179
      %v2526 = vsel %vm2498, %v2491, %v2181
      %v2528 = vsel %vm2498, %v2493, %v2183
      %v2530 = vsel %vm2498, %v2495, %v2185
      %v2532 = vsel %vm2498, %v2497, %v2187
      %v2534 = vsel %vm488, %v2500, %v2203
      %v2536 = vsel %vm488, %v2502, %v2205
      %v2538 = vsel %vm488, %v2504, %v2207
      %v2540 = vsel %vm488, %v2506, %v2209
      %v2542 = vsel %vm488, %v2508, %v2211
      %v2544 = vsel %vm488, %v2510, %v2213
      %v2546 = vsel %vm488, %v2512, %v2215
      %v2548 = vsel %vm488, %v2514, %v2217
      %v2550 = vsel %vm488, %v2516, %v2219
      %v2552 = vsel %vm488, %v2518, %v2221
      %v2554 = vsel %vm488, %v2520, %v2223
      %v2556 = vsel %vm488, %v2522, %v2225
      %v2558 = vsel %vm488, %v2524, %v2227
      %v2560 = vsel %vm488, %v2526, %v2229
      %v2562 = vsel %vm488, %v2528, %v2231
      %v2564 = vsel %vm488, %v2530, %v2233
      %v2566 = vsel %vm488, %v2532, %v2235
      %vm2567 = vcmask 326656
      %v2569 = vsel %vm2567, %v2534, %v2247
      %v2571 = vsel %vm2567, %v2536, %v2249
      %v2573 = vsel %vm2567, %v2538, %v2251
      %v2575 = vsel %vm2567, %v2540, %v2253
      %v2577 = vsel %vm2567, %v2542, %v2255
      %v2579 = vsel %vm2567, %v2544, %v2257
      %v2581 = vsel %vm2567, %v2546, %v2259
      %v2583 = vsel %vm2567, %v2548, %v2261
      %v2585 = vsel %vm2567, %v2550, %v2263
      %v2587 = vsel %vm2567, %v2552, %v2265
      %v2589 = vsel %vm2567, %v2554, %v2267
      %v2591 = vsel %vm2567, %v2556, %v2269
      %v2593 = vsel %vm2567, %v2558, %v2271
      %v2595 = vsel %vm2567, %v2560, %v2273
      %v2597 = vsel %vm2567, %v2562, %v2275
      %v2599 = vsel %vm2567, %v2564, %v2277
      %v2601 = vsel %vm2567, %v2566, %v2279
      %vm2602 = vcmask 392192
      %v2604 = vsel %vm2602, %v2569, %v2287
      %v2606 = vsel %vm2602, %v2571, %v2289
      %v2608 = vsel %vm2602, %v2573, %v2291
      %v2610 = vsel %vm2602, %v2575, %v2293
      %v2612 = vsel %vm2602, %v2577, %v2295
      %v2614 = vsel %vm2602, %v2579, %v2297
      %v2616 = vsel %vm2602, %v2581, %v2299
      %v2618 = vsel %vm2602, %v2583, %v2301
      %v2620 = vsel %vm2602, %v2585, %v2303
      %v2622 = vsel %vm2602, %v2587, %v2305
      %v2624 = vsel %vm2602, %v2589, %v2307
      %v2626 = vsel %vm2602, %v2591, %v2309
      %v2628 = vsel %vm2602, %v2593, %v2311
      %v2630 = vsel %vm2602, %v2595, %v2313
      %v2632 = vsel %vm2602, %v2597, %v2315
      %v2634 = vsel %vm2602, %v2599, %v2317
      %v2636 = vsel %vm2602, %v2601, %v2319
      %vm2637 = vcmask 457728
      %v2639 = vsel %vm2637, %v2604, %v2335
      %v2641 = vsel %vm2637, %v2606, %v2337
      %v2643 = vsel %vm2637, %v2608, %v2339
      %v2645 = vsel %vm2637, %v2610, %v2341
      %v2647 = vsel %vm2637, %v2612, %v2343
      %v2649 = vsel %vm2637, %v2614, %v2345
      %v2651 = vsel %vm2637, %v2616, %v2347
      %v2653 = vsel %vm2637, %v2618, %v2349
      %v2655 = vsel %vm2637, %v2620, %v2351
      %v2657 = vsel %vm2637, %v2622, %v2353
      %v2659 = vsel %vm2637, %v2624, %v2355
      %v2661 = vsel %vm2637, %v2626, %v2357
      %v2663 = vsel %vm2637, %v2628, %v2359
      %v2665 = vsel %vm2637, %v2630, %v2361
      %v2667 = vsel %vm2637, %v2632, %v2363
      %v2669 = vsel %vm2637, %v2634, %v2365
      %v2671 = vsel %vm2637, %v2636, %v2367
      %vm2672 = vcmask 523264
      %v2674 = vsel %vm2672, %v2639, %v2379
      %v2676 = vsel %vm2672, %v2641, %v2381
      %v2678 = vsel %vm2672, %v2643, %v2383
      %v2680 = vsel %vm2672, %v2645, %v2385
      %v2682 = vsel %vm2672, %v2647, %v2387
      %v2684 = vsel %vm2672, %v2649, %v2389
      %v2686 = vsel %vm2672, %v2651, %v2391
      %v2688 = vsel %vm2672, %v2653, %v2393
      %v2690 = vsel %vm2672, %v2655, %v2395
      %v2692 = vsel %vm2672, %v2657, %v2397
      %v2694 = vsel %vm2672, %v2659, %v2399
      %v2696 = vsel %vm2672, %v2661, %v2401
      %v2698 = vsel %vm2672, %v2663, %v2403
      %v2700 = vsel %vm2672, %v2665, %v2405
      %v2702 = vsel %vm2672, %v2667, %v2407
      %v2704 = vsel %vm2672, %v2669, %v2409
      %v2706 = vsel %vm2672, %v2671, %v2411
      %v2707 = vld [vmem:[%s1] sm:$0xf]
      %v2708 = vld [vmem:[%s1 + $0x4] sm:$0xf]
      %v2709 = vld [vmem:[%s1 + $0x8] sm:$0xf]
      %v2710 = vld [vmem:[%s1 + $0xc] sm:$0xf]
      %v2711 = vld [vmem:[%s1 + $0x10] sm:$0xf]
      %v2712 = vld [vmem:[%s1 + $0x14] sm:$0xf]
      %v2713 = vld [vmem:[%s1 + $0x18] sm:$0xf]
      %v2714 = vld [vmem:[%s1 + $0x1c] sm:$0xf]
      %v2715 = vld [vmem:[%s1 + $0x20] sm:$0xf]
      %v2716 = vld [vmem:[%s2] sm:$0x1]
      %v2718 = vlaneseq
      %v2719 = vshrl.u32 %v2718, 7
      %v2720 = vsub.s32 0, %v2719
      %v2721 = vrot.slane %v2716, %v2720
      %vm2723 = vsmask.f32 4352
      %v2724 = vshrl.u32 %v2674, 16
      %v2726 = vrot.slane %v2724, 3
      %v2727 = vshll.u32 %v2674, 16
      %v2729 = vrot.slane %v2727, 4
      %v2730 = vor.u32 %v2726, %v2729
      %v2731 = vshrl.u32 %v2676, 16
      %v2733 = vrot.slane %v2731, 3
      %v2734 = vshll.u32 %v2676, 16
      %v2736 = vrot.slane %v2734, 4
      %v2737 = vor.u32 %v2733, %v2736
      %v2738 = vsel %vm2723, %v2730, %v2737
      %v2739 = vshrl.u32 %v2678, 16
      %v2741 = vrot.slane %v2739, 3
      %v2742 = vshll.u32 %v2678, 16
      %v2744 = vrot.slane %v2742, 4
      %v2745 = vor.u32 %v2741, %v2744
      %v2746 = vsel %vm2723, %v2737, %v2745
      %v2747 = vshrl.u32 %v2680, 16
      %v2749 = vrot.slane %v2747, 3
      %v2750 = vshll.u32 %v2680, 16
      %v2752 = vrot.slane %v2750, 4
      %v2753 = vor.u32 %v2749, %v2752
      %v2754 = vsel %vm2723, %v2745, %v2753
      %v2755 = vshrl.u32 %v2682, 16
      %v2757 = vrot.slane %v2755, 3
      %v2758 = vshll.u32 %v2682, 16
      %v2760 = vrot.slane %v2758, 4
      %v2761 = vor.u32 %v2757, %v2760
      %v2762 = vsel %vm2723, %v2753, %v2761
      %v2763 = vshrl.u32 %v2684, 16
      %v2765 = vrot.slane %v2763, 3
      %v2766 = vshll.u32 %v2684, 16
      %v2768 = vrot.slane %v2766, 4
      %v2769 = vor.u32 %v2765, %v2768
      %v2770 = vsel %vm2723, %v2761, %v2769
      %v2771 = vshrl.u32 %v2686, 16
      %v2773 = vrot.slane %v2771, 3
      %v2774 = vshll.u32 %v2686, 16
      %v2776 = vrot.slane %v2774, 4
      %v2777 = vor.u32 %v2773, %v2776
      %v2778 = vsel %vm2723, %v2769, %v2777
      %v2779 = vshrl.u32 %v2688, 16
      %v2781 = vrot.slane %v2779, 3
      %v2782 = vshll.u32 %v2688, 16
      %v2784 = vrot.slane %v2782, 4
      %v2785 = vor.u32 %v2781, %v2784
      %v2786 = vsel %vm2723, %v2777, %v2785
      %v2787 = vshrl.u32 %v2690, 16
      %v2789 = vrot.slane %v2787, 3
      %v2790 = vshll.u32 %v2690, 16
      %v2792 = vrot.slane %v2790, 4
      %v2793 = vor.u32 %v2789, %v2792
      %v2794 = vsel %vm2723, %v2785, %v2793
      %v2795 = vshrl.u32 %v2692, 16
      %v2797 = vrot.slane %v2795, 3
      %v2798 = vshll.u32 %v2692, 16
      %v2800 = vrot.slane %v2798, 4
      %v2801 = vor.u32 %v2797, %v2800
      %v2802 = vsel %vm2723, %v2793, %v2801
      %v2803 = vshrl.u32 %v2694, 16
      %v2805 = vrot.slane %v2803, 3
      %v2806 = vshll.u32 %v2694, 16
      %v2808 = vrot.slane %v2806, 4
      %v2809 = vor.u32 %v2805, %v2808
      %v2810 = vsel %vm2723, %v2801, %v2809
      %v2811 = vshrl.u32 %v2696, 16
      %v2813 = vrot.slane %v2811, 3
      %v2814 = vshll.u32 %v2696, 16
      %v2816 = vrot.slane %v2814, 4
      %v2817 = vor.u32 %v2813, %v2816
      %v2818 = vsel %vm2723, %v2809, %v2817
      %v2819 = vshrl.u32 %v2698, 16
      %v2821 = vrot.slane %v2819, 3
      %v2822 = vshll.u32 %v2698, 16
      %v2824 = vrot.slane %v2822, 4
      %v2825 = vor.u32 %v2821, %v2824
      %v2826 = vsel %vm2723, %v2817, %v2825
      %v2827 = vshrl.u32 %v2700, 16
      %v2829 = vrot.slane %v2827, 3
      %v2830 = vshll.u32 %v2700, 16
      %v2832 = vrot.slane %v2830, 4
      %v2833 = vor.u32 %v2829, %v2832
      %v2834 = vsel %vm2723, %v2825, %v2833
      %v2835 = vshrl.u32 %v2702, 16
      %v2837 = vrot.slane %v2835, 3
      %v2838 = vshll.u32 %v2702, 16
      %v2840 = vrot.slane %v2838, 4
      %v2841 = vor.u32 %v2837, %v2840
      %v2842 = vsel %vm2723, %v2833, %v2841
      %v2843 = vshrl.u32 %v2704, 16
      %v2845 = vrot.slane %v2843, 3
      %v2846 = vshll.u32 %v2704, 16
      %v2848 = vrot.slane %v2846, 4
      %v2849 = vor.u32 %v2845, %v2848
      %v2850 = vsel %vm2723, %v2841, %v2849
      %v2851 = vshrl.u32 %v2706, 16
      %v2853 = vrot.slane %v2851, 3
      %v2854 = vshll.u32 %v2706, 16
      %v2856 = vrot.slane %v2854, 4
      %v2857 = vor.u32 %v2853, %v2856
      %v2858 = vsel %vm2723, %v2849, %v2857
      %v2868 = vunpack.c.l.b16 %v2707
      %v2869 = vunpack.c.l.b16 %v2708
      %v2870 = vunpack.c.l.b16 %v2709
      %v2871 = vunpack.c.l.b16 %v2710
      %v2872 = vunpack.c.l.b16 %v2711
      %v2873 = vunpack.c.l.b16 %v2712
      %v2874 = vunpack.c.l.b16 %v2713
      %v2875 = vunpack.c.l.b16 %v2714
      %v2876 = vunpack.c.l.b16 %v2715
      %v2877 = vpack.c.b16 %v2869, %v2868
      %v2878 = vpack.c.b16 %v2871, %v2870
      %v2879 = vpack.c.b16 %v2873, %v2872
      %v2880 = vpack.c.b16 %v2875, %v2874
      %v2881 = vpack.c.b16 %v2876, %v2876
      %vm2886 = vcmask 588800
      %v2888 = vsel %vm2886, %v2738, 0
      %v2891 = vsel %vm2886, %v2746, 0
      %v2894 = vsel %vm2886, %v2754, 0
      %v2897 = vsel %vm2886, %v2762, 0
      %v2900 = vsel %vm2886, %v2770, 0
      %v2903 = vsel %vm2886, %v2778, 0
      %v2906 = vsel %vm2886, %v2786, 0
      %v2909 = vsel %vm2886, %v2794, 0
      %v2912 = vsel %vm2886, %v2802, 0
      %v2915 = vsel %vm2886, %v2810, 0
      %v2918 = vsel %vm2886, %v2818, 0
      %v2921 = vsel %vm2886, %v2826, 0
      %v2924 = vsel %vm2886, %v2834, 0
      %v2927 = vsel %vm2886, %v2842, 0
      %v2930 = vsel %vm2886, %v2850, 0
      %v2933 = vsel %vm2886, %v2858, 0
      %vm2935 = vcmask 1043456
      %v2937 = vsel %vm2935, %v2881, 0
      %2939 = vmatprep.subr.bf16.mxu0 0
      %2940 = vmatpush1.bf16.msra.mxu0 %v2877
      %2941 = vmatprep.subr.bf16.mxu0 0
      %2942 = vmatpush1.bf16.msra.mxu0 %v2878
      %2943 = vmatprep.subr.bf16.mxu0 0
      %2944 = vmatpush1.bf16.msra.mxu0 %v2879
      %2945 = vmatprep.subr.bf16.mxu0 0
      %2946 = vmatpush1.bf16.msra.mxu0 %v2880
      %2947 = vmatprep.subr.bf16.mxu0 0
      %2948 = vmatpush1.bf16.msra.mxu0 %v2937
      %2949 = vmatprep.subr.bf16.mxu0 0
      %2950 = vmatpush1.bf16.msra.mxu0 0
      %2951 = vmatprep.subr.bf16.mxu0 0
      %2952 = vmatpush1.bf16.msra.mxu0 0
      %2953 = vmatprep.subr.bf16.mxu0 0
      %2954 = vmatpush1.bf16.msra.mxu0 0
      %2955 = vmatprep.subr.bf16.mxu0 0
      %2956 = vmatpush1.bf16.msra.mxu0 0
      %2957 = vmatprep.subr.bf16.mxu0 0
      %2958 = vmatpush1.bf16.msra.mxu0 0
      %2959 = vmatprep.subr.bf16.mxu0 0
      %2960 = vmatpush1.bf16.msra.mxu0 0
      %2961 = vmatprep.subr.bf16.mxu0 0
      %2962 = vmatpush1.bf16.msra.mxu0 0
      %2963 = vmatprep.subr.bf16.mxu0 0
      %2964 = vmatpush1.bf16.msra.mxu0 0
      %2965 = vmatprep.subr.bf16.mxu0 0
      %2966 = vmatpush1.bf16.msra.mxu0 0
      %2967 = vmatprep.subr.bf16.mxu0 0
      %2968 = vmatpush1.bf16.msra.mxu0 0
      %2969 = vmatprep.subr.bf16.mxu0 0
      %2970 = vmatpush1.bf16.msra.mxu0 0
      %2971 = vmatprep.mubr.bf16.mxu0 0
      %2972 = vmatmul.mubr.bf16.gmra.mrb[0].mxu0 %v2888
      %v2973 = vpop.f32.mrb[0].mxu0
      %v2974 = vadd.f32 %v2721, %v2973
      %v2975 = vpop.f32.mrb[0].mxu0
      %v2976 = vpop.f32.mrb[0].mxu0
      %v2977 = vadd.f32 %v2721, %v2976
      %v2978 = vpop.f32.mrb[0].mxu0
      %2979 = vmatprep.mubr.bf16.mxu0 0
      %2980 = vmatmul.mubr.bf16.gmra.mrb[0].mxu0 %v2891
      %v2981 = vpop.f32.mrb[0].mxu0
      %v2982 = vadd.f32 %v2721, %v2981
      %v2983 = vpop.f32.mrb[0].mxu0
      %v2984 = vpop.f32.mrb[0].mxu0
      %v2985 = vadd.f32 %v2721, %v2984
      %v2986 = vpop.f32.mrb[0].mxu0
      %2987 = vmatprep.mubr.bf16.mxu0 0
      %2988 = vmatmul.mubr.bf16.gmra.mrb[0].mxu0 %v2894
      %v2989 = vpop.f32.mrb[0].mxu0
      %v2990 = vadd.f32 %v2721, %v2989
      %v2991 = vpop.f32.mrb[0].mxu0
      %v2992 = vpop.f32.mrb[0].mxu0
      %v2993 = vadd.f32 %v2721, %v2992
      %v2994 = vpop.f32.mrb[0].mxu0
      %2995 = vmatprep.mubr.bf16.mxu0 0
      %2996 = vmatmul.mubr.bf16.gmra.mrb[0].mxu0 %v2897
      %v2997 = vpop.f32.mrb[0].mxu0
      %v2998 = vadd.f32 %v2721, %v2997
      %v2999 = vpop.f32.mrb[0].mxu0
      %v3000 = vpop.f32.mrb[0].mxu0
      %v3001 = vadd.f32 %v2721, %v3000
      %v3002 = vpop.f32.mrb[0].mxu0
      %3003 = vmatprep.mubr.bf16.mxu0 0
      %3004 = vmatmul.mubr.bf16.gmra.mrb[0].mxu0 %v2900
      %v3005 = vpop.f32.mrb[0].mxu0
      %v3006 = vadd.f32 %v2721, %v3005
      %v3007 = vpop.f32.mrb[0].mxu0
      %v3008 = vpop.f32.mrb[0].mxu0
      %v3009 = vadd.f32 %v2721, %v3008
      %v3010 = vpop.f32.mrb[0].mxu0
      %3011 = vmatprep.mubr.bf16.mxu0 0
      %3012 = vmatmul.mubr.bf16.gmra.mrb[0].mxu0 %v2903
      %v3013 = vpop.f32.mrb[0].mxu0
      %v3014 = vadd.f32 %v2721, %v3013
      %v3015 = vpop.f32.mrb[0].mxu0
      %v3016 = vpop.f32.mrb[0].mxu0
      %v3017 = vadd.f32 %v2721, %v3016
      %v3018 = vpop.f32.mrb[0].mxu0
      %3019 = vmatprep.mubr.bf16.mxu0 0
      %3020 = vmatmul.mubr.bf16.gmra.mrb[0].mxu0 %v2906
      %v3021 = vpop.f32.mrb[0].mxu0
      %v3022 = vadd.f32 %v2721, %v3021
      %v3023 = vpop.f32.mrb[0].mxu0
      %v3024 = vpop.f32.mrb[0].mxu0
      %v3025 = vadd.f32 %v2721, %v3024
      %v3026 = vpop.f32.mrb[0].mxu0
      %3027 = vmatprep.mubr.bf16.mxu0 0
      %3028 = vmatmul.mubr.bf16.gmra.mrb[0].mxu0 %v2909
      %v3029 = vpop.f32.mrb[0].mxu0
      %v3030 = vadd.f32 %v2721, %v3029
      %v3031 = vpop.f32.mrb[0].mxu0
      %v3032 = vpop.f32.mrb[0].mxu0
      %v3033 = vadd.f32 %v2721, %v3032
      %v3034 = vpop.f32.mrb[0].mxu0
      %3035 = vmatprep.mubr.bf16.mxu0 0
      %3036 = vmatmul.mubr.bf16.gmra.mrb[0].mxu0 %v2912
      %v3037 = vpop.f32.mrb[0].mxu0
      %v3038 = vadd.f32 %v2721, %v3037
      %v3039 = vpop.f32.mrb[0].mxu0
      %v3040 = vpop.f32.mrb[0].mxu0
      %v3041 = vadd.f32 %v2721, %v3040
      %v3042 = vpop.f32.mrb[0].mxu0
      %3043 = vmatprep.mubr.bf16.mxu0 0
      %3044 = vmatmul.mubr.bf16.gmra.mrb[0].mxu0 %v2915
      %v3045 = vpop.f32.mrb[0].mxu0
      %v3046 = vadd.f32 %v2721, %v3045
      %v3047 = vpop.f32.mrb[0].mxu0
      %v3048 = vpop.f32.mrb[0].mxu0
      %v3049 = vadd.f32 %v2721, %v3048
      %v3050 = vpop.f32.mrb[0].mxu0
      %3051 = vmatprep.mubr.bf16.mxu0 0
      %3052 = vmatmul.mubr.bf16.gmra.mrb[0].mxu0 %v2918
      %v3053 = vpop.f32.mrb[0].mxu0
      %v3054 = vadd.f32 %v2721, %v3053
      %v3055 = vpop.f32.mrb[0].mxu0
      %v3056 = vpop.f32.mrb[0].mxu0
      %v3057 = vadd.f32 %v2721, %v3056
      %v3058 = vpop.f32.mrb[0].mxu0
      %3059 = vmatprep.mubr.bf16.mxu0 0
      %3060 = vmatmul.mubr.bf16.gmra.mrb[0].mxu0 %v2921
      %v3061 = vpop.f32.mrb[0].mxu0
      %v3062 = vadd.f32 %v2721, %v3061
      %v3063 = vpop.f32.mrb[0].mxu0
      %v3064 = vpop.f32.mrb[0].mxu0
      %v3065 = vadd.f32 %v2721, %v3064
      %v3066 = vpop.f32.mrb[0].mxu0
      %3067 = vmatprep.mubr.bf16.mxu0 0
      %3068 = vmatmul.mubr.bf16.gmra.mrb[0].mxu0 %v2924
      %v3069 = vpop.f32.mrb[0].mxu0
      %v3070 = vadd.f32 %v2721, %v3069
      %v3071 = vpop.f32.mrb[0].mxu0
      %v3072 = vpop.f32.mrb[0].mxu0
      %v3073 = vadd.f32 %v2721, %v3072
      %v3074 = vpop.f32.mrb[0].mxu0
      %3075 = vmatprep.mubr.bf16.mxu0 0
      %3076 = vmatmul.mubr.bf16.gmra.mrb[0].mxu0 %v2927
      %v3077 = vpop.f32.mrb[0].mxu0
      %v3078 = vadd.f32 %v2721, %v3077
      %v3079 = vpop.f32.mrb[0].mxu0
      %v3080 = vpop.f32.mrb[0].mxu0
      %v3081 = vadd.f32 %v2721, %v3080
      %v3082 = vpop.f32.mrb[0].mxu0
      %3083 = vmatprep.mubr.bf16.mxu0 0
      %3084 = vmatmul.mubr.bf16.gmra.mrb[0].mxu0 %v2930
      %v3085 = vpop.f32.mrb[0].mxu0
      %v3086 = vadd.f32 %v2721, %v3085
      %v3087 = vpop.f32.mrb[0].mxu0
      %v3088 = vpop.f32.mrb[0].mxu0
      %v3089 = vadd.f32 %v2721, %v3088
      %v3090 = vpop.f32.mrb[0].mxu0
      %3091 = vmatprep.mubr.bf16.mxu0 0
      %3092 = vmatmul.mubr.bf16.gmra.mrb[0].mxu0 %v2933
      %v3093 = vpop.f32.mrb[0].mxu0
      %v3094 = vadd.f32 %v2721, %v3093
      %v3095 = vpop.f32.mrb[0].mxu0
      %v3096 = vpop.f32.mrb[0].mxu0
      %v3097 = vadd.f32 %v2721, %v3096
      %v3098 = vpop.f32.mrb[0].mxu0
      %3099 = vdwg.mxu0
      %v3100 = vmax.f32 %v2974, 0.0
      %v3101 = vmax.f32 %v2977, 0.0
      %v3102 = vmax.f32 %v2982, 0.0
      %v3103 = vmax.f32 %v2985, 0.0
      %v3104 = vmax.f32 %v2990, 0.0
      %v3105 = vmax.f32 %v2993, 0.0
      %v3106 = vmax.f32 %v2998, 0.0
      %v3107 = vmax.f32 %v3001, 0.0
      %v3108 = vmax.f32 %v3006, 0.0
      %v3109 = vmax.f32 %v3009, 0.0
      %v3110 = vmax.f32 %v3014, 0.0
      %v3111 = vmax.f32 %v3017, 0.0
      %v3112 = vmax.f32 %v3022, 0.0
      %v3113 = vmax.f32 %v3025, 0.0
      %v3114 = vmax.f32 %v3030, 0.0
      %v3115 = vmax.f32 %v3033, 0.0
      %v3116 = vmax.f32 %v3038, 0.0
      %v3117 = vmax.f32 %v3041, 0.0
      %v3118 = vmax.f32 %v3046, 0.0
      %v3119 = vmax.f32 %v3049, 0.0
      %v3120 = vmax.f32 %v3054, 0.0
      %v3121 = vmax.f32 %v3057, 0.0
      %v3122 = vmax.f32 %v3062, 0.0
      %v3123 = vmax.f32 %v3065, 0.0
      %v3124 = vmax.f32 %v3070, 0.0
      %v3125 = vmax.f32 %v3073, 0.0
      %v3126 = vmax.f32 %v3078, 0.0
      %v3127 = vmax.f32 %v3081, 0.0
      %v3128 = vmax.f32 %v3086, 0.0
      %v3129 = vmax.f32 %v3089, 0.0
      %v3130 = vmax.f32 %v3094, 0.0
      %v3131 = vmax.f32 %v3097, 0.0
      %v3132 = vmin.f32 %v3100, 6.0
      %v3133 = vmin.f32 %v3101, 6.0
      %v3134 = vmin.f32 %v3102, 6.0
      %v3135 = vmin.f32 %v3103, 6.0
      %v3136 = vmin.f32 %v3104, 6.0
      %v3137 = vmin.f32 %v3105, 6.0
      %v3138 = vmin.f32 %v3106, 6.0
      %v3139 = vmin.f32 %v3107, 6.0
      %v3140 = vmin.f32 %v3108, 6.0
      %v3141 = vmin.f32 %v3109, 6.0
      %v3142 = vmin.f32 %v3110, 6.0
      %v3143 = vmin.f32 %v3111, 6.0
      %v3144 = vmin.f32 %v3112, 6.0
      %v3145 = vmin.f32 %v3113, 6.0
      %v3146 = vmin.f32 %v3114, 6.0
      %v3147 = vmin.f32 %v3115, 6.0
      %v3148 = vmin.f32 %v3116, 6.0
      %v3149 = vmin.f32 %v3117, 6.0
      %v3150 = vmin.f32 %v3118, 6.0
      %v3151 = vmin.f32 %v3119, 6.0
      %v3152 = vmin.f32 %v3120, 6.0
      %v3153 = vmin.f32 %v3121, 6.0
      %v3154 = vmin.f32 %v3122, 6.0
      %v3155 = vmin.f32 %v3123, 6.0
      %v3156 = vmin.f32 %v3124, 6.0
      %v3157 = vmin.f32 %v3125, 6.0
      %v3158 = vmin.f32 %v3126, 6.0
      %v3159 = vmin.f32 %v3127, 6.0
      %v3160 = vmin.f32 %v3128, 6.0
      %v3161 = vmin.f32 %v3129, 6.0
      %v3162 = vmin.f32 %v3130, 6.0
      %v3163 = vmin.f32 %v3131, 6.0
      %3164 = vst.msk [vmem:[#allocation2 + $0x18] sm:$0xff] %vm481, %v3132
      %3165 = vst.msk [vmem:[#allocation2 + $0x20] sm:$0xff] %vm481, %v3133
      %3166 = vst.msk [vmem:[#allocation2 + $0x28] sm:$0xff] %vm481, %v3134
      %3167 = vst.msk [vmem:[#allocation2 + $0x30] sm:$0xff] %vm481, %v3135
      %3168 = vst.msk [vmem:[#allocation2 + $0x38] sm:$0xff] %vm481, %v3136
      %3169 = vst.msk [vmem:[#allocation2 + $0x40] sm:$0xff] %vm481, %v3137
      %3170 = vst.msk [vmem:[#allocation2 + $0x48] sm:$0xff] %vm481, %v3138
      %3171 = vst.msk [vmem:[#allocation2 + $0x50] sm:$0xff] %vm481, %v3139
      %3172 = vst.msk [vmem:[#allocation2 + $0x58] sm:$0xff] %vm481, %v3140
      %3173 = vst.msk [vmem:[#allocation2 + $0x60] sm:$0xff] %vm481, %v3141
      %3174 = vst.msk [vmem:[#allocation2 + $0x68] sm:$0xff] %vm481, %v3142
      %3175 = vst.msk [vmem:[#allocation2 + $0x70] sm:$0xff] %vm481, %v3143
      %3176 = vst.msk [vmem:[#allocation2 + $0x78] sm:$0xff] %vm481, %v3144
      %3177 = vst.msk [vmem:[#allocation2 + $0x80] sm:$0xff] %vm481, %v3145
      %3178 = vst.msk [vmem:[#allocation2 + $0x88] sm:$0xff] %vm481, %v3146
      %3179 = vst.msk [vmem:[#allocation2 + $0x90] sm:$0xff] %vm481, %v3147
      %3180 = vst.msk [vmem:[#allocation2 + $0x98] sm:$0xff] %vm481, %v3148
      %3181 = vst.msk [vmem:[#allocation2 + $0xa0] sm:$0xff] %vm481, %v3149
      %3182 = vst.msk [vmem:[#allocation2 + $0xa8] sm:$0xff] %vm481, %v3150
      %3183 = vst.msk [vmem:[#allocation2 + $0xb0] sm:$0xff] %vm481, %v3151
      %3184 = vst.msk [vmem:[#allocation2 + $0xb8] sm:$0xff] %vm481, %v3152
      %3185 = vst.msk [vmem:[#allocation2 + $0xc0] sm:$0xff] %vm481, %v3153
      %3186 = vst.msk [vmem:[#allocation2 + $0xc8] sm:$0xff] %vm481, %v3154
      %3187 = vst.msk [vmem:[#allocation2 + $0xd0] sm:$0xff] %vm481, %v3155
      %3188 = vst.msk [vmem:[#allocation2 + $0xd8] sm:$0xff] %vm481, %v3156
      %3189 = vst.msk [vmem:[#allocation2 + $0xe0] sm:$0xff] %vm481, %v3157
      %3190 = vst.msk [vmem:[#allocation2 + $0xe8] sm:$0xff] %vm481, %v3158
      %3191 = vst.msk [vmem:[#allocation2 + $0xf0] sm:$0xff] %vm481, %v3159
      %3192 = vst.msk [vmem:[#allocation2 + $0xf8] sm:$0xff] %vm481, %v3160
      %3193 = vst.msk [vmem:[#allocation2 + $0x100] sm:$0xff] %vm481, %v3161
      %3194 = vst.msk [vmem:[#allocation2 + $0x108] sm:$0xff] %vm481, %v3162
      %3195 = vst.msk [vmem:[#allocation2 + $0x110] sm:$0xff] %vm481, %v3163
      %v3196 = vld [vmem:[#allocation2] sm:$0xff]
      %v3197 = vld [vmem:[#allocation2 + $0x8] sm:$0xff]
      %v3198 = vld [vmem:[#allocation2 + $0x10] sm:$0xff]
      %v3199 = vld [vmem:[#allocation2 + $0x18] sm:$0xff]
      %v3200 = vld [vmem:[#allocation2 + $0x20] sm:$0xff]
      %v3201 = vld [vmem:[#allocation2 + $0x28] sm:$0xff]
      %v3202 = vld [vmem:[#allocation2 + $0x30] sm:$0xff]
      %v3203 = vld [vmem:[#allocation2 + $0x38] sm:$0xff]
      %v3204 = vld [vmem:[#allocation2 + $0x40] sm:$0xff]
      %v3205 = vld [vmem:[#allocation2 + $0x48] sm:$0xff]
      %v3206 = vld [vmem:[#allocation2 + $0x50] sm:$0xff]
      %v3207 = vld [vmem:[#allocation2 + $0x58] sm:$0xff]
      %v3208 = vld [vmem:[#allocation2 + $0x60] sm:$0xff]
      %v3209 = vld [vmem:[#allocation2 + $0x68] sm:$0xff]
      %v3210 = vld [vmem:[#allocation2 + $0x70] sm:$0xff]
      %v3211 = vld [vmem:[#allocation2 + $0x78] sm:$0xff]
      %v3212 = vld [vmem:[#allocation2 + $0x80] sm:$0xff]
      %v3213 = vld [vmem:[#allocation2 + $0x88] sm:$0xff]
      %v3214 = vld [vmem:[#allocation2 + $0x90] sm:$0xff]
      %v3215 = vld [vmem:[#allocation2 + $0x98] sm:$0xff]
      %v3216 = vld [vmem:[#allocation2 + $0xa0] sm:$0xff]
      %v3217 = vld [vmem:[#allocation2 + $0xa8] sm:$0xff]
      %v3218 = vld [vmem:[#allocation2 + $0xb0] sm:$0xff]
      %v3219 = vld [vmem:[#allocation2 + $0xb8] sm:$0xff]
      %v3220 = vld [vmem:[#allocation2 + $0xc0] sm:$0xff]
      %v3221 = vld [vmem:[#allocation2 + $0xc8] sm:$0xff]
      %v3222 = vld [vmem:[#allocation2 + $0xd0] sm:$0xff]
      %v3223 = vld [vmem:[#allocation2 + $0xd8] sm:$0xff]
      %v3224 = vld [vmem:[#allocation2 + $0xe0] sm:$0xff]
      %v3225 = vld [vmem:[#allocation2 + $0xe8] sm:$0xff]
      %v3226 = vld [vmem:[#allocation2 + $0xf0] sm:$0xff]
      %v3227 = vld [vmem:[#allocation2 + $0xf8] sm:$0xff]
      %v3228 = vld [vmem:[#allocation2 + $0x100] sm:$0xff]
      %v3229 = vld [vmem:[#allocation2 + $0x108] sm:$0xff]
      %v3230 = vld [vmem:[#allocation2 + $0x110] sm:$0xff]
      %v3231 = vld [vmem:[#allocation2 + $0x118] sm:$0xff]
      %v3232 = vld [vmem:[#allocation2 + $0x120] sm:$0xff]
      %v3233 = vld [vmem:[#allocation2 + $0x128] sm:$0xff]
      %vm3271 = vcmask 1040384
      %v3272 = vrot.slane %v3196, 7
      %v3273 = vrot.slane %v3197, 7
      %v3274 = vsel %vm3271, %v3272, %v3273
      %v3275 = vrot.slane %v3198, 7
      %v3276 = vsel %vm3271, %v3273, %v3275
      %v3277 = vrot.slane %v3199, 7
      %v3278 = vsel %vm3271, %v3275, %v3277
      %v3279 = vrot.slane %v3200, 7
      %v3280 = vsel %vm3271, %v3277, %v3279
      %v3281 = vrot.slane %v3201, 7
      %v3282 = vsel %vm3271, %v3279, %v3281
      %v3283 = vrot.slane %v3202, 7
      %v3284 = vsel %vm3271, %v3281, %v3283
      %v3285 = vrot.slane %v3203, 7
      %v3286 = vsel %vm3271, %v3283, %v3285
      %v3287 = vrot.slane %v3204, 7
      %v3288 = vsel %vm3271, %v3285, %v3287
      %v3289 = vrot.slane %v3205, 7
      %v3290 = vsel %vm3271, %v3287, %v3289
      %v3291 = vrot.slane %v3206, 7
      %v3292 = vsel %vm3271, %v3289, %v3291
      %v3293 = vrot.slane %v3207, 7
      %v3294 = vsel %vm3271, %v3291, %v3293
      %v3295 = vrot.slane %v3208, 7
      %v3296 = vsel %vm3271, %v3293, %v3295
      %v3297 = vrot.slane %v3209, 7
      %v3298 = vsel %vm3271, %v3295, %v3297
      %v3299 = vrot.slane %v3210, 7
      %v3300 = vsel %vm3271, %v3297, %v3299
      %v3301 = vrot.slane %v3211, 7
      %v3302 = vsel %vm3271, %v3299, %v3301
      %v3303 = vrot.slane %v3212, 7
      %v3304 = vsel %vm3271, %v3301, %v3303
      %v3305 = vrot.slane %v3213, 7
      %v3306 = vsel %vm3271, %v3303, %v3305
      %v3307 = vrot.slane %v3214, 7
      %v3308 = vsel %vm3271, %v3305, %v3307
      %v3309 = vrot.slane %v3215, 7
      %v3310 = vsel %vm3271, %v3307, %v3309
      %v3311 = vrot.slane %v3216, 7
      %v3312 = vsel %vm3271, %v3309, %v3311
      %v3313 = vrot.slane %v3217, 7
      %v3314 = vsel %vm3271, %v3311, %v3313
      %v3315 = vrot.slane %v3218, 7
      %v3316 = vsel %vm3271, %v3313, %v3315
      %v3317 = vrot.slane %v3219, 7
      %v3318 = vsel %vm3271, %v3315, %v3317
      %v3319 = vrot.slane %v3220, 7
      %v3320 = vsel %vm3271, %v3317, %v3319
      %v3321 = vrot.slane %v3221, 7
      %v3322 = vsel %vm3271, %v3319, %v3321
      %v3323 = vrot.slane %v3222, 7
      %v3324 = vsel %vm3271, %v3321, %v3323
      %v3325 = vrot.slane %v3223, 7
      %v3326 = vsel %vm3271, %v3323, %v3325
      %v3327 = vrot.slane %v3224, 7
      %v3328 = vsel %vm3271, %v3325, %v3327
      %v3329 = vrot.slane %v3225, 7
      %v3330 = vsel %vm3271, %v3327, %v3329
      %v3331 = vrot.slane %v3226, 7
      %v3332 = vsel %vm3271, %v3329, %v3331
      %v3333 = vrot.slane %v3227, 7
      %v3334 = vsel %vm3271, %v3331, %v3333
      %v3335 = vrot.slane %v3228, 7
      %v3336 = vsel %vm3271, %v3333, %v3335
      %v3337 = vrot.slane %v3229, 7
      %v3338 = vsel %vm3271, %v3335, %v3337
      %v3339 = vrot.slane %v3230, 7
      %v3340 = vsel %vm3271, %v3337, %v3339
      %v3341 = vrot.slane %v3231, 7
      %v3342 = vsel %vm3271, %v3339, %v3341
      %v3343 = vrot.slane %v3232, 7
      %v3344 = vsel %vm3271, %v3341, %v3343
      %v3381 = vsel %vm569, %v3274, 0.0
      %v3382 = vsel %vm570, %v3276, 0.0
      %v3383 = vsel %vm571, %v3278, 0.0
      %v3384 = vsel %vm572, %v3280, 0.0
      %v3385 = vsel %vm573, %v3282, 0.0
      %v3386 = vsel %vm574, %v3284, 0.0
      %v3387 = vsel %vm575, %v3286, 0.0
      %v3388 = vsel %vm576, %v3288, 0.0
      %v3389 = vsel %vm577, %v3290, 0.0
      %v3390 = vsel %vm578, %v3292, 0.0
      %v3391 = vsel %vm579, %v3294, 0.0
      %v3392 = vsel %vm580, %v3296, 0.0
      %v3393 = vsel %vm581, %v3298, 0.0
      %v3394 = vsel %vm582, %v3300, 0.0
      %v3395 = vsel %vm583, %v3302, 0.0
      %v3396 = vsel %vm584, %v3304, 0.0
      %v3397 = vsel %vm585, %v3306, 0.0
      %v3398 = vsel %vm586, %v3308, 0.0
      %v3399 = vsel %vm587, %v3310, 0.0
      %v3400 = vsel %vm588, %v3312, 0.0
      %v3401 = vsel %vm589, %v3314, 0.0
      %v3402 = vsel %vm590, %v3316, 0.0
      %v3403 = vsel %vm591, %v3318, 0.0
      %v3404 = vsel %vm592, %v3320, 0.0
      %v3405 = vsel %vm593, %v3322, 0.0
      %v3406 = vsel %vm594, %v3324, 0.0
      %v3407 = vsel %vm595, %v3326, 0.0
      %v3408 = vsel %vm596, %v3328, 0.0
      %v3409 = vsel %vm597, %v3330, 0.0
      %v3410 = vsel %vm598, %v3332, 0.0
      %v3411 = vsel %vm599, %v3334, 0.0
      %v3412 = vsel %vm600, %v3336, 0.0
      %v3413 = vsel %vm601, %v3338, 0.0
      %v3414 = vsel %vm602, %v3340, 0.0
      %v3415 = vsel %vm603, %v3342, 0.0
      %v3416 = vsel %vm604, %v3344, 0.0
      %vm3418 = vcmask 1046528
      %v3419 = vrot.slane %v3197, 1
      %v3420 = vrot.slane %v3198, 1
      %v3421 = vsel %vm3418, %v3419, %v3420
      %v3422 = vrot.slane %v3199, 1
      %v3423 = vsel %vm3418, %v3420, %v3422
      %v3424 = vrot.slane %v3200, 1
      %v3425 = vsel %vm3418, %v3422, %v3424
      %v3426 = vrot.slane %v3201, 1
      %v3427 = vsel %vm3418, %v3424, %v3426
      %v3428 = vrot.slane %v3202, 1
      %v3429 = vsel %vm3418, %v3426, %v3428
      %v3430 = vrot.slane %v3203, 1
      %v3431 = vsel %vm3418, %v3428, %v3430
      %v3432 = vrot.slane %v3204, 1
      %v3433 = vsel %vm3418, %v3430, %v3432
      %v3434 = vrot.slane %v3205, 1
      %v3435 = vsel %vm3418, %v3432, %v3434
      %v3436 = vrot.slane %v3206, 1
      %v3437 = vsel %vm3418, %v3434, %v3436
      %v3438 = vrot.slane %v3207, 1
      %v3439 = vsel %vm3418, %v3436, %v3438
      %v3440 = vrot.slane %v3208, 1
      %v3441 = vsel %vm3418, %v3438, %v3440
      %v3442 = vrot.slane %v3209, 1
      %v3443 = vsel %vm3418, %v3440, %v3442
      %v3444 = vrot.slane %v3210, 1
      %v3445 = vsel %vm3418, %v3442, %v3444
      %v3446 = vrot.slane %v3211, 1
      %v3447 = vsel %vm3418, %v3444, %v3446
      %v3448 = vrot.slane %v3212, 1
      %v3449 = vsel %vm3418, %v3446, %v3448
      %v3450 = vrot.slane %v3213, 1
      %v3451 = vsel %vm3418, %v3448, %v3450
      %v3452 = vrot.slane %v3214, 1
      %v3453 = vsel %vm3418, %v3450, %v3452
      %v3454 = vrot.slane %v3215, 1
      %v3455 = vsel %vm3418, %v3452, %v3454
      %v3456 = vrot.slane %v3216, 1
      %v3457 = vsel %vm3418, %v3454, %v3456
      %v3458 = vrot.slane %v3217, 1
      %v3459 = vsel %vm3418, %v3456, %v3458
      %v3460 = vrot.slane %v3218, 1
      %v3461 = vsel %vm3418, %v3458, %v3460
      %v3462 = vrot.slane %v3219, 1
      %v3463 = vsel %vm3418, %v3460, %v3462
      %v3464 = vrot.slane %v3220, 1
      %v3465 = vsel %vm3418, %v3462, %v3464
      %v3466 = vrot.slane %v3221, 1
      %v3467 = vsel %vm3418, %v3464, %v3466
      %v3468 = vrot.slane %v3222, 1
      %v3469 = vsel %vm3418, %v3466, %v3468
      %v3470 = vrot.slane %v3223, 1
      %v3471 = vsel %vm3418, %v3468, %v3470
      %v3472 = vrot.slane %v3224, 1
      %v3473 = vsel %vm3418, %v3470, %v3472
      %v3474 = vrot.slane %v3225, 1
      %v3475 = vsel %vm3418, %v3472, %v3474
      %v3476 = vrot.slane %v3226, 1
      %v3477 = vsel %vm3418, %v3474, %v3476
      %v3478 = vrot.slane %v3227, 1
      %v3479 = vsel %vm3418, %v3476, %v3478
      %v3480 = vrot.slane %v3228, 1
      %v3481 = vsel %vm3418, %v3478, %v3480
      %v3482 = vrot.slane %v3229, 1
      %v3483 = vsel %vm3418, %v3480, %v3482
      %v3484 = vrot.slane %v3230, 1
      %v3485 = vsel %vm3418, %v3482, %v3484
      %v3486 = vrot.slane %v3231, 1
      %v3487 = vsel %vm3418, %v3484, %v3486
      %v3488 = vrot.slane %v3232, 1
      %v3489 = vsel %vm3418, %v3486, %v3488
      %v3490 = vrot.slane %v3233, 1
      %v3491 = vsel %vm3418, %v3488, %v3490
      %v3528 = vsel %vm1149, %v3421, 0.0
      %v3529 = vsel %vm1150, %v3423, 0.0
      %v3530 = vsel %vm1151, %v3425, 0.0
      %v3531 = vsel %vm1152, %v3427, 0.0
      %v3532 = vsel %vm1153, %v3429, 0.0
      %v3533 = vsel %vm1154, %v3431, 0.0
      %v3534 = vsel %vm1155, %v3433, 0.0
      %v3535 = vsel %vm1156, %v3435, 0.0
      %v3536 = vsel %vm1157, %v3437, 0.0
      %v3537 = vsel %vm1158, %v3439, 0.0
      %v3538 = vsel %vm1159, %v3441, 0.0
      %v3539 = vsel %vm1160, %v3443, 0.0
      %v3540 = vsel %vm1161, %v3445, 0.0
      %v3541 = vsel %vm1162, %v3447, 0.0
      %v3542 = vsel %vm1163, %v3449, 0.0
      %v3543 = vsel %vm1164, %v3451, 0.0
      %v3544 = vsel %vm1165, %v3453, 0.0
      %v3545 = vsel %vm1166, %v3455, 0.0
      %v3546 = vsel %vm1167, %v3457, 0.0
      %v3547 = vsel %vm1168, %v3459, 0.0
      %v3548 = vsel %vm1169, %v3461, 0.0
      %v3549 = vsel %vm1170, %v3463, 0.0
      %v3550 = vsel %vm1171, %v3465, 0.0
      %v3551 = vsel %vm1172, %v3467, 0.0
      %v3552 = vsel %vm1173, %v3469, 0.0
      %v3553 = vsel %vm1174, %v3471, 0.0
      %v3554 = vsel %vm1175, %v3473, 0.0
      %v3555 = vsel %vm1176, %v3475, 0.0
      %v3556 = vsel %vm1177, %v3477, 0.0
      %v3557 = vsel %vm1178, %v3479, 0.0
      %v3558 = vsel %vm1179, %v3481, 0.0
      %v3559 = vsel %vm1180, %v3483, 0.0
      %v3560 = vsel %vm1181, %v3485, 0.0
      %v3561 = vsel %vm1182, %v3487, 0.0
      %v3562 = vsel %vm1183, %v3489, 0.0
      %v3563 = vsel %vm1184, %v3491, 0.0
      %v3564 = vld [vmem:[%s3] sm:$0x1]
      %v3566 = vlaneseq
      %v3567 = vshrl.u32 %v3566, 7
      %v3568 = vsub.s32 0, %v3567
      %v3569 = vrot.slane %v3564, %v3568
      %v3571 = vmul.f32 %v3381, %v3569
      %v3572 = vmul.f32 %v3382, %v3569
      %v3573 = vmul.f32 %v3383, %v3569
      %v3574 = vmul.f32 %v3384, %v3569
      %v3575 = vmul.f32 %v3385, %v3569
      %v3576 = vmul.f32 %v3386, %v3569
      %v3577 = vmul.f32 %v3387, %v3569
      %v3578 = vmul.f32 %v3388, %v3569
      %v3579 = vmul.f32 %v3389, %v3569
      %v3580 = vmul.f32 %v3390, %v3569
      %v3581 = vmul.f32 %v3391, %v3569
      %v3582 = vmul.f32 %v3392, %v3569
      %v3583 = vmul.f32 %v3393, %v3569
      %v3584 = vmul.f32 %v3394, %v3569
      %v3585 = vmul.f32 %v3395, %v3569
      %v3586 = vmul.f32 %v3396, %v3569
      %v3587 = vmul.f32 %v3397, %v3569
      %v3588 = vmul.f32 %v3398, %v3569
      %v3589 = vmul.f32 %v3399, %v3569
      %v3590 = vmul.f32 %v3400, %v3569
      %v3591 = vmul.f32 %v3401, %v3569
      %v3592 = vmul.f32 %v3402, %v3569
      %v3593 = vmul.f32 %v3403, %v3569
      %v3594 = vmul.f32 %v3404, %v3569
      %v3595 = vmul.f32 %v3405, %v3569
      %v3596 = vmul.f32 %v3406, %v3569
      %v3597 = vmul.f32 %v3407, %v3569
      %v3598 = vmul.f32 %v3408, %v3569
      %v3599 = vmul.f32 %v3409, %v3569
      %v3600 = vmul.f32 %v3410, %v3569
      %v3601 = vmul.f32 %v3411, %v3569
      %v3602 = vmul.f32 %v3412, %v3569
      %s3603 = scalar_lea.vmem %s3, 1
      %v3604 = vld [vmem:[%s3603] sm:$0x1]
      %v3606 = vlaneseq
      %v3607 = vshrl.u32 %v3606, 7
      %v3608 = vsub.s32 0, %v3607
      %v3609 = vrot.slane %v3604, %v3608
      %v3611 = vmul.f32 %v3197, %v3609
      %v3612 = vmul.f32 %v3198, %v3609
      %v3613 = vmul.f32 %v3199, %v3609
      %v3614 = vmul.f32 %v3200, %v3609
      %v3615 = vmul.f32 %v3201, %v3609
      %v3616 = vmul.f32 %v3202, %v3609
      %v3617 = vmul.f32 %v3203, %v3609
      %v3618 = vmul.f32 %v3204, %v3609
      %v3619 = vmul.f32 %v3205, %v3609
      %v3620 = vmul.f32 %v3206, %v3609
      %v3621 = vmul.f32 %v3207, %v3609
      %v3622 = vmul.f32 %v3208, %v3609
      %v3623 = vmul.f32 %v3209, %v3609
      %v3624 = vmul.f32 %v3210, %v3609
      %v3625 = vmul.f32 %v3211, %v3609
      %v3626 = vmul.f32 %v3212, %v3609
      %v3627 = vmul.f32 %v3213, %v3609
      %v3628 = vmul.f32 %v3214, %v3609
      %v3629 = vmul.f32 %v3215, %v3609
      %v3630 = vmul.f32 %v3216, %v3609
      %v3631 = vmul.f32 %v3217, %v3609
      %v3632 = vmul.f32 %v3218, %v3609
      %v3633 = vmul.f32 %v3219, %v3609
      %v3634 = vmul.f32 %v3220, %v3609
      %v3635 = vmul.f32 %v3221, %v3609
      %v3636 = vmul.f32 %v3222, %v3609
      %v3637 = vmul.f32 %v3223, %v3609
      %v3638 = vmul.f32 %v3224, %v3609
      %v3639 = vmul.f32 %v3225, %v3609
      %v3640 = vmul.f32 %v3226, %v3609
      %v3641 = vmul.f32 %v3227, %v3609
      %v3642 = vmul.f32 %v3228, %v3609
      %v3643 = vadd.f32 %v3571, %v3611
      %v3644 = vadd.f32 %v3572, %v3612
      %v3645 = vadd.f32 %v3573, %v3613
      %v3646 = vadd.f32 %v3574, %v3614
      %v3647 = vadd.f32 %v3575, %v3615
      %v3648 = vadd.f32 %v3576, %v3616
      %v3649 = vadd.f32 %v3577, %v3617
      %v3650 = vadd.f32 %v3578, %v3618
      %v3651 = vadd.f32 %v3579, %v3619
      %v3652 = vadd.f32 %v3580, %v3620
      %v3653 = vadd.f32 %v3581, %v3621
      %v3654 = vadd.f32 %v3582, %v3622
      %v3655 = vadd.f32 %v3583, %v3623
      %v3656 = vadd.f32 %v3584, %v3624
      %v3657 = vadd.f32 %v3585, %v3625
      %v3658 = vadd.f32 %v3586, %v3626
      %v3659 = vadd.f32 %v3587, %v3627
      %v3660 = vadd.f32 %v3588, %v3628
      %v3661 = vadd.f32 %v3589, %v3629
      %v3662 = vadd.f32 %v3590, %v3630
      %v3663 = vadd.f32 %v3591, %v3631
      %v3664 = vadd.f32 %v3592, %v3632
      %v3665 = vadd.f32 %v3593, %v3633
      %v3666 = vadd.f32 %v3594, %v3634
      %v3667 = vadd.f32 %v3595, %v3635
      %v3668 = vadd.f32 %v3596, %v3636
      %v3669 = vadd.f32 %v3597, %v3637
      %v3670 = vadd.f32 %v3598, %v3638
      %v3671 = vadd.f32 %v3599, %v3639
      %v3672 = vadd.f32 %v3600, %v3640
      %v3673 = vadd.f32 %v3601, %v3641
      %v3674 = vadd.f32 %v3602, %v3642
      %s3675 = scalar_lea.vmem %s3, 2
      %v3676 = vld [vmem:[%s3675] sm:$0x1]
      %v3678 = vlaneseq
      %v3679 = vshrl.u32 %v3678, 7
      %v3680 = vsub.s32 0, %v3679
      %v3681 = vrot.slane %v3676, %v3680
      %v3683 = vmul.f32 %v3528, %v3681
      %v3684 = vmul.f32 %v3529, %v3681
      %v3685 = vmul.f32 %v3530, %v3681
      %v3686 = vmul.f32 %v3531, %v3681
      %v3687 = vmul.f32 %v3532, %v3681
      %v3688 = vmul.f32 %v3533, %v3681
      %v3689 = vmul.f32 %v3534, %v3681
      %v3690 = vmul.f32 %v3535, %v3681
      %v3691 = vmul.f32 %v3536, %v3681
      %v3692 = vmul.f32 %v3537, %v3681
      %v3693 = vmul.f32 %v3538, %v3681
      %v3694 = vmul.f32 %v3539, %v3681
      %v3695 = vmul.f32 %v3540, %v3681
      %v3696 = vmul.f32 %v3541, %v3681
      %v3697 = vmul.f32 %v3542, %v3681
      %v3698 = vmul.f32 %v3543, %v3681
      %v3699 = vmul.f32 %v3544, %v3681
      %v3700 = vmul.f32 %v3545, %v3681
      %v3701 = vmul.f32 %v3546, %v3681
      %v3702 = vmul.f32 %v3547, %v3681
      %v3703 = vmul.f32 %v3548, %v3681
      %v3704 = vmul.f32 %v3549, %v3681
      %v3705 = vmul.f32 %v3550, %v3681
      %v3706 = vmul.f32 %v3551, %v3681
      %v3707 = vmul.f32 %v3552, %v3681
      %v3708 = vmul.f32 %v3553, %v3681
      %v3709 = vmul.f32 %v3554, %v3681
      %v3710 = vmul.f32 %v3555, %v3681
      %v3711 = vmul.f32 %v3556, %v3681
      %v3712 = vmul.f32 %v3557, %v3681
      %v3713 = vmul.f32 %v3558, %v3681
      %v3714 = vmul.f32 %v3559, %v3681
      %v3715 = vadd.f32 %v3643, %v3683
      %v3716 = vadd.f32 %v3644, %v3684
      %v3717 = vadd.f32 %v3645, %v3685
      %v3718 = vadd.f32 %v3646, %v3686
      %v3719 = vadd.f32 %v3647, %v3687
      %v3720 = vadd.f32 %v3648, %v3688
      %v3721 = vadd.f32 %v3649, %v3689
      %v3722 = vadd.f32 %v3650, %v3690
      %v3723 = vadd.f32 %v3651, %v3691
      %v3724 = vadd.f32 %v3652, %v3692
      %v3725 = vadd.f32 %v3653, %v3693
      %v3726 = vadd.f32 %v3654, %v3694
      %v3727 = vadd.f32 %v3655, %v3695
      %v3728 = vadd.f32 %v3656, %v3696
      %v3729 = vadd.f32 %v3657, %v3697
      %v3730 = vadd.f32 %v3658, %v3698
      %v3731 = vadd.f32 %v3659, %v3699
      %v3732 = vadd.f32 %v3660, %v3700
      %v3733 = vadd.f32 %v3661, %v3701
      %v3734 = vadd.f32 %v3662, %v3702
      %v3735 = vadd.f32 %v3663, %v3703
      %v3736 = vadd.f32 %v3664, %v3704
      %v3737 = vadd.f32 %v3665, %v3705
      %v3738 = vadd.f32 %v3666, %v3706
      %v3739 = vadd.f32 %v3667, %v3707
      %v3740 = vadd.f32 %v3668, %v3708
      %v3741 = vadd.f32 %v3669, %v3709
      %v3742 = vadd.f32 %v3670, %v3710
      %v3743 = vadd.f32 %v3671, %v3711
      %v3744 = vadd.f32 %v3672, %v3712
      %v3745 = vadd.f32 %v3673, %v3713
      %v3746 = vadd.f32 %v3674, %v3714
      %s3747 = scalar_lea.vmem %s3, 3
      %v3748 = vld [vmem:[%s3747] sm:$0x1]
      %v3750 = vlaneseq
      %v3751 = vshrl.u32 %v3750, 7
      %v3752 = vsub.s32 0, %v3751
      %v3753 = vrot.slane %v3748, %v3752
      %v3755 = vmul.f32 %v3383, %v3753
      %v3756 = vmul.f32 %v3384, %v3753
      %v3757 = vmul.f32 %v3385, %v3753
      %v3758 = vmul.f32 %v3386, %v3753
      %v3759 = vmul.f32 %v3387, %v3753
      %v3760 = vmul.f32 %v3388, %v3753
      %v3761 = vmul.f32 %v3389, %v3753
      %v3762 = vmul.f32 %v3390, %v3753
      %v3763 = vmul.f32 %v3391, %v3753
      %v3764 = vmul.f32 %v3392, %v3753
      %v3765 = vmul.f32 %v3393, %v3753
      %v3766 = vmul.f32 %v3394, %v3753
      %v3767 = vmul.f32 %v3395, %v3753
      %v3768 = vmul.f32 %v3396, %v3753
      %v3769 = vmul.f32 %v3397, %v3753
      %v3770 = vmul.f32 %v3398, %v3753
      %v3771 = vmul.f32 %v3399, %v3753
      %v3772 = vmul.f32 %v3400, %v3753
      %v3773 = vmul.f32 %v3401, %v3753
      %v3774 = vmul.f32 %v3402, %v3753
      %v3775 = vmul.f32 %v3403, %v3753
      %v3776 = vmul.f32 %v3404, %v3753
      %v3777 = vmul.f32 %v3405, %v3753
      %v3778 = vmul.f32 %v3406, %v3753
      %v3779 = vmul.f32 %v3407, %v3753
      %v3780 = vmul.f32 %v3408, %v3753
      %v3781 = vmul.f32 %v3409, %v3753
      %v3782 = vmul.f32 %v3410, %v3753
      %v3783 = vmul.f32 %v3411, %v3753
      %v3784 = vmul.f32 %v3412, %v3753
      %v3785 = vmul.f32 %v3413, %v3753
      %v3786 = vmul.f32 %v3414, %v3753
      %v3787 = vadd.f32 %v3715, %v3755
      %v3788 = vadd.f32 %v3716, %v3756
      %v3789 = vadd.f32 %v3717, %v3757
      %v3790 = vadd.f32 %v3718, %v3758
      %v3791 = vadd.f32 %v3719, %v3759
      %v3792 = vadd.f32 %v3720, %v3760
      %v3793 = vadd.f32 %v3721, %v3761
      %v3794 = vadd.f32 %v3722, %v3762
      %v3795 = vadd.f32 %v3723, %v3763
      %v3796 = vadd.f32 %v3724, %v3764
      %v3797 = vadd.f32 %v3725, %v3765
      %v3798 = vadd.f32 %v3726, %v3766
      %v3799 = vadd.f32 %v3727, %v3767
      %v3800 = vadd.f32 %v3728, %v3768
      %v3801 = vadd.f32 %v3729, %v3769
      %v3802 = vadd.f32 %v3730, %v3770
      %v3803 = vadd.f32 %v3731, %v3771
      %v3804 = vadd.f32 %v3732, %v3772
      %v3805 = vadd.f32 %v3733, %v3773
      %v3806 = vadd.f32 %v3734, %v3774
      %v3807 = vadd.f32 %v3735, %v3775
      %v3808 = vadd.f32 %v3736, %v3776
      %v3809 = vadd.f32 %v3737, %v3777
      %v3810 = vadd.f32 %v3738, %v3778
      %v3811 = vadd.f32 %v3739, %v3779
      %v3812 = vadd.f32 %v3740, %v3780
      %v3813 = vadd.f32 %v3741, %v3781
      %v3814 = vadd.f32 %v3742, %v3782
      %v3815 = vadd.f32 %v3743, %v3783
      %v3816 = vadd.f32 %v3744, %v3784
      %v3817 = vadd.f32 %v3745, %v3785
      %v3818 = vadd.f32 %v3746, %v3786
      %s3819 = scalar_lea.vmem %s3, 4
      %v3820 = vld [vmem:[%s3819] sm:$0x1]
      %v3822 = vlaneseq
      %v3823 = vshrl.u32 %v3822, 7
      %v3824 = vsub.s32 0, %v3823
      %v3825 = vrot.slane %v3820, %v3824
      %v3827 = vmul.f32 %v3199, %v3825
      %v3828 = vmul.f32 %v3200, %v3825
      %v3829 = vmul.f32 %v3201, %v3825
      %v3830 = vmul.f32 %v3202, %v3825
      %v3831 = vmul.f32 %v3203, %v3825
      %v3832 = vmul.f32 %v3204, %v3825
      %v3833 = vmul.f32 %v3205, %v3825
      %v3834 = vmul.f32 %v3206, %v3825
      %v3835 = vmul.f32 %v3207, %v3825
      %v3836 = vmul.f32 %v3208, %v3825
      %v3837 = vmul.f32 %v3209, %v3825
      %v3838 = vmul.f32 %v3210, %v3825
      %v3839 = vmul.f32 %v3211, %v3825
      %v3840 = vmul.f32 %v3212, %v3825
      %v3841 = vmul.f32 %v3213, %v3825
      %v3842 = vmul.f32 %v3214, %v3825
      %v3843 = vmul.f32 %v3215, %v3825
      %v3844 = vmul.f32 %v3216, %v3825
      %v3845 = vmul.f32 %v3217, %v3825
      %v3846 = vmul.f32 %v3218, %v3825
      %v3847 = vmul.f32 %v3219, %v3825
      %v3848 = vmul.f32 %v3220, %v3825
      %v3849 = vmul.f32 %v3221, %v3825
      %v3850 = vmul.f32 %v3222, %v3825
      %v3851 = vmul.f32 %v3223, %v3825
      %v3852 = vmul.f32 %v3224, %v3825
      %v3853 = vmul.f32 %v3225, %v3825
      %v3854 = vmul.f32 %v3226, %v3825
      %v3855 = vmul.f32 %v3227, %v3825
      %v3856 = vmul.f32 %v3228, %v3825
      %v3857 = vmul.f32 %v3229, %v3825
      %v3858 = vmul.f32 %v3230, %v3825
      %v3859 = vadd.f32 %v3787, %v3827
      %v3860 = vadd.f32 %v3788, %v3828
      %v3861 = vadd.f32 %v3789, %v3829
      %v3862 = vadd.f32 %v3790, %v3830
      %v3863 = vadd.f32 %v3791, %v3831
      %v3864 = vadd.f32 %v3792, %v3832
      %v3865 = vadd.f32 %v3793, %v3833
      %v3866 = vadd.f32 %v3794, %v3834
      %v3867 = vadd.f32 %v3795, %v3835
      %v3868 = vadd.f32 %v3796, %v3836
      %v3869 = vadd.f32 %v3797, %v3837
      %v3870 = vadd.f32 %v3798, %v3838
      %v3871 = vadd.f32 %v3799, %v3839
      %v3872 = vadd.f32 %v3800, %v3840
      %v3873 = vadd.f32 %v3801, %v3841
      %v3874 = vadd.f32 %v3802, %v3842
      %v3875 = vadd.f32 %v3803, %v3843
      %v3876 = vadd.f32 %v3804, %v3844
      %v3877 = vadd.f32 %v3805, %v3845
      %v3878 = vadd.f32 %v3806, %v3846
      %v3879 = vadd.f32 %v3807, %v3847
      %v3880 = vadd.f32 %v3808, %v3848
      %v3881 = vadd.f32 %v3809, %v3849
      %v3882 = vadd.f32 %v3810, %v3850
      %v3883 = vadd.f32 %v3811, %v3851
      %v3884 = vadd.f32 %v3812, %v3852
      %v3885 = vadd.f32 %v3813, %v3853
      %v3886 = vadd.f32 %v3814, %v3854
      %v3887 = vadd.f32 %v3815, %v3855
      %v3888 = vadd.f32 %v3816, %v3856
      %v3889 = vadd.f32 %v3817, %v3857
      %v3890 = vadd.f32 %v3818, %v3858
      %s3891 = scalar_lea.vmem %s3, 5
      %v3892 = vld [vmem:[%s3891] sm:$0x1]
      %v3894 = vlaneseq
      %v3895 = vshrl.u32 %v3894, 7
      %v3896 = vsub.s32 0, %v3895
      %v3897 = vrot.slane %v3892, %v3896
      %v3899 = vmul.f32 %v3530, %v3897
      %v3900 = vmul.f32 %v3531, %v3897
      %v3901 = vmul.f32 %v3532, %v3897
      %v3902 = vmul.f32 %v3533, %v3897
      %v3903 = vmul.f32 %v3534, %v3897
      %v3904 = vmul.f32 %v3535, %v3897
      %v3905 = vmul.f32 %v3536, %v3897
      %v3906 = vmul.f32 %v3537, %v3897
      %v3907 = vmul.f32 %v3538, %v3897
      %v3908 = vmul.f32 %v3539, %v3897
      %v3909 = vmul.f32 %v3540, %v3897
      %v3910 = vmul.f32 %v3541, %v3897
      %v3911 = vmul.f32 %v3542, %v3897
      %v3912 = vmul.f32 %v3543, %v3897
      %v3913 = vmul.f32 %v3544, %v3897
      %v3914 = vmul.f32 %v3545, %v3897
      %v3915 = vmul.f32 %v3546, %v3897
      %v3916 = vmul.f32 %v3547, %v3897
      %v3917 = vmul.f32 %v3548, %v3897
      %v3918 = vmul.f32 %v3549, %v3897
      %v3919 = vmul.f32 %v3550, %v3897
      %v3920 = vmul.f32 %v3551, %v3897
      %v3921 = vmul.f32 %v3552, %v3897
      %v3922 = vmul.f32 %v3553, %v3897
      %v3923 = vmul.f32 %v3554, %v3897
      %v3924 = vmul.f32 %v3555, %v3897
      %v3925 = vmul.f32 %v3556, %v3897
      %v3926 = vmul.f32 %v3557, %v3897
      %v3927 = vmul.f32 %v3558, %v3897
      %v3928 = vmul.f32 %v3559, %v3897
      %v3929 = vmul.f32 %v3560, %v3897
      %v3930 = vmul.f32 %v3561, %v3897
      %v3931 = vadd.f32 %v3859, %v3899
      %v3932 = vadd.f32 %v3860, %v3900
      %v3933 = vadd.f32 %v3861, %v3901
      %v3934 = vadd.f32 %v3862, %v3902
      %v3935 = vadd.f32 %v3863, %v3903
      %v3936 = vadd.f32 %v3864, %v3904
      %v3937 = vadd.f32 %v3865, %v3905
      %v3938 = vadd.f32 %v3866, %v3906
      %v3939 = vadd.f32 %v3867, %v3907
      %v3940 = vadd.f32 %v3868, %v3908
      %v3941 = vadd.f32 %v3869, %v3909
      %v3942 = vadd.f32 %v3870, %v3910
      %v3943 = vadd.f32 %v3871, %v3911
      %v3944 = vadd.f32 %v3872, %v3912
      %v3945 = vadd.f32 %v3873, %v3913
      %v3946 = vadd.f32 %v3874, %v3914
      %v3947 = vadd.f32 %v3875, %v3915
      %v3948 = vadd.f32 %v3876, %v3916
      %v3949 = vadd.f32 %v3877, %v3917
      %v3950 = vadd.f32 %v3878, %v3918
      %v3951 = vadd.f32 %v3879, %v3919
      %v3952 = vadd.f32 %v3880, %v3920
      %v3953 = vadd.f32 %v3881, %v3921
      %v3954 = vadd.f32 %v3882, %v3922
      %v3955 = vadd.f32 %v3883, %v3923
      %v3956 = vadd.f32 %v3884, %v3924
      %v3957 = vadd.f32 %v3885, %v3925
      %v3958 = vadd.f32 %v3886, %v3926
      %v3959 = vadd.f32 %v3887, %v3927
      %v3960 = vadd.f32 %v3888, %v3928
      %v3961 = vadd.f32 %v3889, %v3929
      %v3962 = vadd.f32 %v3890, %v3930
      %s3963 = scalar_lea.vmem %s3, 6
      %v3964 = vld [vmem:[%s3963] sm:$0x1]
      %v3966 = vlaneseq
      %v3967 = vshrl.u32 %v3966, 7
      %v3968 = vsub.s32 0, %v3967
      %v3969 = vrot.slane %v3964, %v3968
      %v3971 = vmul.f32 %v3385, %v3969
      %v3972 = vmul.f32 %v3386, %v3969
      %v3973 = vmul.f32 %v3387, %v3969
      %v3974 = vmul.f32 %v3388, %v3969
      %v3975 = vmul.f32 %v3389, %v3969
      %v3976 = vmul.f32 %v3390, %v3969
      %v3977 = vmul.f32 %v3391, %v3969
      %v3978 = vmul.f32 %v3392, %v3969
      %v3979 = vmul.f32 %v3393, %v3969
      %v3980 = vmul.f32 %v3394, %v3969
      %v3981 = vmul.f32 %v3395, %v3969
      %v3982 = vmul.f32 %v3396, %v3969
      %v3983 = vmul.f32 %v3397, %v3969
      %v3984 = vmul.f32 %v3398, %v3969
      %v3985 = vmul.f32 %v3399, %v3969
      %v3986 = vmul.f32 %v3400, %v3969
      %v3987 = vmul.f32 %v3401, %v3969
      %v3988 = vmul.f32 %v3402, %v3969
      %v3989 = vmul.f32 %v3403, %v3969
      %v3990 = vmul.f32 %v3404, %v3969
      %v3991 = vmul.f32 %v3405, %v3969
      %v3992 = vmul.f32 %v3406, %v3969
      %v3993 = vmul.f32 %v3407, %v3969
      %v3994 = vmul.f32 %v3408, %v3969
      %v3995 = vmul.f32 %v3409, %v3969
      %v3996 = vmul.f32 %v3410, %v3969
      %v3997 = vmul.f32 %v3411, %v3969
      %v3998 = vmul.f32 %v3412, %v3969
      %v3999 = vmul.f32 %v3413, %v3969
      %v4000 = vmul.f32 %v3414, %v3969
      %v4001 = vmul.f32 %v3415, %v3969
      %v4002 = vmul.f32 %v3416, %v3969
      %v4003 = vadd.f32 %v3931, %v3971
      %v4004 = vadd.f32 %v3932, %v3972
      %v4005 = vadd.f32 %v3933, %v3973
      %v4006 = vadd.f32 %v3934, %v3974
      %v4007 = vadd.f32 %v3935, %v3975
      %v4008 = vadd.f32 %v3936, %v3976
      %v4009 = vadd.f32 %v3937, %v3977
      %v4010 = vadd.f32 %v3938, %v3978
      %v4011 = vadd.f32 %v3939, %v3979
      %v4012 = vadd.f32 %v3940, %v3980
      %v4013 = vadd.f32 %v3941, %v3981
      %v4014 = vadd.f32 %v3942, %v3982
      %v4015 = vadd.f32 %v3943, %v3983
      %v4016 = vadd.f32 %v3944, %v3984
      %v4017 = vadd.f32 %v3945, %v3985
      %v4018 = vadd.f32 %v3946, %v3986
      %v4019 = vadd.f32 %v3947, %v3987
      %v4020 = vadd.f32 %v3948, %v3988
      %v4021 = vadd.f32 %v3949, %v3989
      %v4022 = vadd.f32 %v3950, %v3990
      %v4023 = vadd.f32 %v3951, %v3991
      %v4024 = vadd.f32 %v3952, %v3992
      %v4025 = vadd.f32 %v3953, %v3993
      %v4026 = vadd.f32 %v3954, %v3994
      %v4027 = vadd.f32 %v3955, %v3995
      %v4028 = vadd.f32 %v3956, %v3996
      %v4029 = vadd.f32 %v3957, %v3997
      %v4030 = vadd.f32 %v3958, %v3998
      %v4031 = vadd.f32 %v3959, %v3999
      %v4032 = vadd.f32 %v3960, %v4000
      %v4033 = vadd.f32 %v3961, %v4001
      %v4034 = vadd.f32 %v3962, %v4002
      %s4035 = scalar_lea.vmem %s3, 7
      %v4036 = vld [vmem:[%s4035] sm:$0x1]
      %v4038 = vlaneseq
      %v4039 = vshrl.u32 %v4038, 7
      %v4040 = vsub.s32 0, %v4039
      %v4041 = vrot.slane %v4036, %v4040
      %v4043 = vmul.f32 %v3201, %v4041
      %v4044 = vmul.f32 %v3202, %v4041
      %v4045 = vmul.f32 %v3203, %v4041
      %v4046 = vmul.f32 %v3204, %v4041
      %v4047 = vmul.f32 %v3205, %v4041
      %v4048 = vmul.f32 %v3206, %v4041
      %v4049 = vmul.f32 %v3207, %v4041
      %v4050 = vmul.f32 %v3208, %v4041
      %v4051 = vmul.f32 %v3209, %v4041
      %v4052 = vmul.f32 %v3210, %v4041
      %v4053 = vmul.f32 %v3211, %v4041
      %v4054 = vmul.f32 %v3212, %v4041
      %v4055 = vmul.f32 %v3213, %v4041
      %v4056 = vmul.f32 %v3214, %v4041
      %v4057 = vmul.f32 %v3215, %v4041
      %v4058 = vmul.f32 %v3216, %v4041
      %v4059 = vmul.f32 %v3217, %v4041
      %v4060 = vmul.f32 %v3218, %v4041
      %v4061 = vmul.f32 %v3219, %v4041
      %v4062 = vmul.f32 %v3220, %v4041
      %v4063 = vmul.f32 %v3221, %v4041
      %v4064 = vmul.f32 %v3222, %v4041
      %v4065 = vmul.f32 %v3223, %v4041
      %v4066 = vmul.f32 %v3224, %v4041
      %v4067 = vmul.f32 %v3225, %v4041
      %v4068 = vmul.f32 %v3226, %v4041
      %v4069 = vmul.f32 %v3227, %v4041
      %v4070 = vmul.f32 %v3228, %v4041
      %v4071 = vmul.f32 %v3229, %v4041
      %v4072 = vmul.f32 %v3230, %v4041
      %v4073 = vmul.f32 %v3231, %v4041
      %v4074 = vmul.f32 %v3232, %v4041
      %v4075 = vadd.f32 %v4003, %v4043
      %v4076 = vadd.f32 %v4004, %v4044
      %v4077 = vadd.f32 %v4005, %v4045
      %v4078 = vadd.f32 %v4006, %v4046
      %v4079 = vadd.f32 %v4007, %v4047
      %v4080 = vadd.f32 %v4008, %v4048
      %v4081 = vadd.f32 %v4009, %v4049
      %v4082 = vadd.f32 %v4010, %v4050
      %v4083 = vadd.f32 %v4011, %v4051
      %v4084 = vadd.f32 %v4012, %v4052
      %v4085 = vadd.f32 %v4013, %v4053
      %v4086 = vadd.f32 %v4014, %v4054
      %v4087 = vadd.f32 %v4015, %v4055
      %v4088 = vadd.f32 %v4016, %v4056
      %v4089 = vadd.f32 %v4017, %v4057
      %v4090 = vadd.f32 %v4018, %v4058
      %v4091 = vadd.f32 %v4019, %v4059
      %v4092 = vadd.f32 %v4020, %v4060
      %v4093 = vadd.f32 %v4021, %v4061
      %v4094 = vadd.f32 %v4022, %v4062
      %v4095 = vadd.f32 %v4023, %v4063
      %v4096 = vadd.f32 %v4024, %v4064
      %v4097 = vadd.f32 %v4025, %v4065
      %v4098 = vadd.f32 %v4026, %v4066
      %v4099 = vadd.f32 %v4027, %v4067
      %v4100 = vadd.f32 %v4028, %v4068
      %v4101 = vadd.f32 %v4029, %v4069
      %v4102 = vadd.f32 %v4030, %v4070
      %v4103 = vadd.f32 %v4031, %v4071
      %v4104 = vadd.f32 %v4032, %v4072
      %v4105 = vadd.f32 %v4033, %v4073
      %v4106 = vadd.f32 %v4034, %v4074
      %s4107 = scalar_lea.vmem %s3, 8
      %v4108 = vld [vmem:[%s4107] sm:$0x1]
      %v4110 = vlaneseq
      %v4111 = vshrl.u32 %v4110, 7
      %v4112 = vsub.s32 0, %v4111
      %v4113 = vrot.slane %v4108, %v4112
      %v4115 = vmul.f32 %v3532, %v4113
      %v4116 = vmul.f32 %v3533, %v4113
      %v4117 = vmul.f32 %v3534, %v4113
      %v4118 = vmul.f32 %v3535, %v4113
      %v4119 = vmul.f32 %v3536, %v4113
      %v4120 = vmul.f32 %v3537, %v4113
      %v4121 = vmul.f32 %v3538, %v4113
      %v4122 = vmul.f32 %v3539, %v4113
      %v4123 = vmul.f32 %v3540, %v4113
      %v4124 = vmul.f32 %v3541, %v4113
      %v4125 = vmul.f32 %v3542, %v4113
      %v4126 = vmul.f32 %v3543, %v4113
      %v4127 = vmul.f32 %v3544, %v4113
      %v4128 = vmul.f32 %v3545, %v4113
      %v4129 = vmul.f32 %v3546, %v4113
      %v4130 = vmul.f32 %v3547, %v4113
      %v4131 = vmul.f32 %v3548, %v4113
      %v4132 = vmul.f32 %v3549, %v4113
      %v4133 = vmul.f32 %v3550, %v4113
      %v4134 = vmul.f32 %v3551, %v4113
      %v4135 = vmul.f32 %v3552, %v4113
      %v4136 = vmul.f32 %v3553, %v4113
      %v4137 = vmul.f32 %v3554, %v4113
      %v4138 = vmul.f32 %v3555, %v4113
      %v4139 = vmul.f32 %v3556, %v4113
      %v4140 = vmul.f32 %v3557, %v4113
      %v4141 = vmul.f32 %v3558, %v4113
      %v4142 = vmul.f32 %v3559, %v4113
      %v4143 = vmul.f32 %v3560, %v4113
      %v4144 = vmul.f32 %v3561, %v4113
      %v4145 = vmul.f32 %v3562, %v4113
      %v4146 = vmul.f32 %v3563, %v4113
      %v4147 = vadd.f32 %v4075, %v4115
      %v4148 = vadd.f32 %v4076, %v4116
      %v4149 = vadd.f32 %v4077, %v4117
      %v4150 = vadd.f32 %v4078, %v4118
      %v4151 = vadd.f32 %v4079, %v4119
      %v4152 = vadd.f32 %v4080, %v4120
      %v4153 = vadd.f32 %v4081, %v4121
      %v4154 = vadd.f32 %v4082, %v4122
      %v4155 = vadd.f32 %v4083, %v4123
      %v4156 = vadd.f32 %v4084, %v4124
      %v4157 = vadd.f32 %v4085, %v4125
      %v4158 = vadd.f32 %v4086, %v4126
      %v4159 = vadd.f32 %v4087, %v4127
      %v4160 = vadd.f32 %v4088, %v4128
      %v4161 = vadd.f32 %v4089, %v4129
      %v4162 = vadd.f32 %v4090, %v4130
      %v4163 = vadd.f32 %v4091, %v4131
      %v4164 = vadd.f32 %v4092, %v4132
      %v4165 = vadd.f32 %v4093, %v4133
      %v4166 = vadd.f32 %v4094, %v4134
      %v4167 = vadd.f32 %v4095, %v4135
      %v4168 = vadd.f32 %v4096, %v4136
      %v4169 = vadd.f32 %v4097, %v4137
      %v4170 = vadd.f32 %v4098, %v4138
      %v4171 = vadd.f32 %v4099, %v4139
      %v4172 = vadd.f32 %v4100, %v4140
      %v4173 = vadd.f32 %v4101, %v4141
      %v4174 = vadd.f32 %v4102, %v4142
      %v4175 = vadd.f32 %v4103, %v4143
      %v4176 = vadd.f32 %v4104, %v4144
      %v4177 = vadd.f32 %v4105, %v4145
      %v4178 = vadd.f32 %v4106, %v4146
      %v4179 = vld [vmem:[%s4] sm:$0x1]
      %v4181 = vlaneseq
      %v4182 = vshrl.u32 %v4181, 7
      %v4183 = vsub.s32 0, %v4182
      %v4184 = vrot.slane %v4179, %v4183
      %v4186 = vadd.f32 %v4147, %v4184
      %v4187 = vadd.f32 %v4148, %v4184
      %v4188 = vadd.f32 %v4149, %v4184
      %v4189 = vadd.f32 %v4150, %v4184
      %v4190 = vadd.f32 %v4151, %v4184
      %v4191 = vadd.f32 %v4152, %v4184
      %v4192 = vadd.f32 %v4153, %v4184
      %v4193 = vadd.f32 %v4154, %v4184
      %v4194 = vadd.f32 %v4155, %v4184
      %v4195 = vadd.f32 %v4156, %v4184
      %v4196 = vadd.f32 %v4157, %v4184
      %v4197 = vadd.f32 %v4158, %v4184
      %v4198 = vadd.f32 %v4159, %v4184
      %v4199 = vadd.f32 %v4160, %v4184
      %v4200 = vadd.f32 %v4161, %v4184
      %v4201 = vadd.f32 %v4162, %v4184
      %v4202 = vadd.f32 %v4163, %v4184
      %v4203 = vadd.f32 %v4164, %v4184
      %v4204 = vadd.f32 %v4165, %v4184
      %v4205 = vadd.f32 %v4166, %v4184
      %v4206 = vadd.f32 %v4167, %v4184
      %v4207 = vadd.f32 %v4168, %v4184
      %v4208 = vadd.f32 %v4169, %v4184
      %v4209 = vadd.f32 %v4170, %v4184
      %v4210 = vadd.f32 %v4171, %v4184
      %v4211 = vadd.f32 %v4172, %v4184
      %v4212 = vadd.f32 %v4173, %v4184
      %v4213 = vadd.f32 %v4174, %v4184
      %v4214 = vadd.f32 %v4175, %v4184
      %v4215 = vadd.f32 %v4176, %v4184
      %v4216 = vadd.f32 %v4177, %v4184
      %v4217 = vadd.f32 %v4178, %v4184
      %v4218 = vmax.f32 %v4186, 0.0
      %v4219 = vmax.f32 %v4187, 0.0
      %v4220 = vmax.f32 %v4188, 0.0
      %v4221 = vmax.f32 %v4189, 0.0
      %v4222 = vmax.f32 %v4190, 0.0
      %v4223 = vmax.f32 %v4191, 0.0
      %v4224 = vmax.f32 %v4192, 0.0
      %v4225 = vmax.f32 %v4193, 0.0
      %v4226 = vmax.f32 %v4194, 0.0
      %v4227 = vmax.f32 %v4195, 0.0
      %v4228 = vmax.f32 %v4196, 0.0
      %v4229 = vmax.f32 %v4197, 0.0
      %v4230 = vmax.f32 %v4198, 0.0
      %v4231 = vmax.f32 %v4199, 0.0
      %v4232 = vmax.f32 %v4200, 0.0
      %v4233 = vmax.f32 %v4201, 0.0
      %v4234 = vmax.f32 %v4202, 0.0
      %v4235 = vmax.f32 %v4203, 0.0
      %v4236 = vmax.f32 %v4204, 0.0
      %v4237 = vmax.f32 %v4205, 0.0
      %v4238 = vmax.f32 %v4206, 0.0
      %v4239 = vmax.f32 %v4207, 0.0
      %v4240 = vmax.f32 %v4208, 0.0
      %v4241 = vmax.f32 %v4209, 0.0
      %v4242 = vmax.f32 %v4210, 0.0
      %v4243 = vmax.f32 %v4211, 0.0
      %v4244 = vmax.f32 %v4212, 0.0
      %v4245 = vmax.f32 %v4213, 0.0
      %v4246 = vmax.f32 %v4214, 0.0
      %v4247 = vmax.f32 %v4215, 0.0
      %v4248 = vmax.f32 %v4216, 0.0
      %v4249 = vmax.f32 %v4217, 0.0
      %v4250 = vmin.f32 %v4218, 6.0
      %v4251 = vmin.f32 %v4219, 6.0
      %v4252 = vmin.f32 %v4220, 6.0
      %v4253 = vmin.f32 %v4221, 6.0
      %v4254 = vmin.f32 %v4222, 6.0
      %v4255 = vmin.f32 %v4223, 6.0
      %v4256 = vmin.f32 %v4224, 6.0
      %v4257 = vmin.f32 %v4225, 6.0
      %v4258 = vmin.f32 %v4226, 6.0
      %v4259 = vmin.f32 %v4227, 6.0
      %v4260 = vmin.f32 %v4228, 6.0
      %v4261 = vmin.f32 %v4229, 6.0
      %v4262 = vmin.f32 %v4230, 6.0
      %v4263 = vmin.f32 %v4231, 6.0
      %v4264 = vmin.f32 %v4232, 6.0
      %v4265 = vmin.f32 %v4233, 6.0
      %v4266 = vmin.f32 %v4234, 6.0
      %v4267 = vmin.f32 %v4235, 6.0
      %v4268 = vmin.f32 %v4236, 6.0
      %v4269 = vmin.f32 %v4237, 6.0
      %v4270 = vmin.f32 %v4238, 6.0
      %v4271 = vmin.f32 %v4239, 6.0
      %v4272 = vmin.f32 %v4240, 6.0
      %v4273 = vmin.f32 %v4241, 6.0
      %v4274 = vmin.f32 %v4242, 6.0
      %v4275 = vmin.f32 %v4243, 6.0
      %v4276 = vmin.f32 %v4244, 6.0
      %v4277 = vmin.f32 %v4245, 6.0
      %v4278 = vmin.f32 %v4246, 6.0
      %v4279 = vmin.f32 %v4247, 6.0
      %v4280 = vmin.f32 %v4248, 6.0
      %v4281 = vmin.f32 %v4249, 6.0
      %v4282 = vpack.c.bf16 %v4251, %v4250
      %v4283 = vpack.c.bf16 %v4253, %v4252
      %v4284 = vpack.c.bf16 %v4255, %v4254
      %v4285 = vpack.c.bf16 %v4257, %v4256
      %v4286 = vpack.c.bf16 %v4259, %v4258
      %v4287 = vpack.c.bf16 %v4261, %v4260
      %v4288 = vpack.c.bf16 %v4263, %v4262
      %v4289 = vpack.c.bf16 %v4265, %v4264
      %v4290 = vpack.c.bf16 %v4267, %v4266
      %v4291 = vpack.c.bf16 %v4269, %v4268
      %v4292 = vpack.c.bf16 %v4271, %v4270
      %v4293 = vpack.c.bf16 %v4273, %v4272
      %v4294 = vpack.c.bf16 %v4275, %v4274
      %v4295 = vpack.c.bf16 %v4277, %v4276
      %v4296 = vpack.c.bf16 %v4279, %v4278
      %v4297 = vpack.c.bf16 %v4281, %v4280
      %v4298 = vld [vmem:[%s5] sm:$0xf]
      %v4299 = vld [vmem:[%s5 + $0x4] sm:$0xf]
      %v4300 = vld [vmem:[%s6] sm:$0x1]
      %v4302 = vlaneseq
      %v4303 = vshrl.u32 %v4302, 7
      %v4304 = vsub.s32 0, %v4303
      %v4305 = vrot.slane %v4300, %v4304
      %v4309 = vunpack.c.l.b16 %v4298
      %v4310 = vunpack.c.l.b16 %v4299
      %v4311 = vpack.c.b16 %v4310, %v4309
      %v4314 = vsel %vm481, %v4282, 0
      %v4317 = vsel %vm481, %v4283, 0
      %v4320 = vsel %vm481, %v4284, 0
      %v4323 = vsel %vm481, %v4285, 0
      %v4326 = vsel %vm481, %v4286, 0
      %v4329 = vsel %vm481, %v4287, 0
      %v4332 = vsel %vm481, %v4288, 0
      %v4335 = vsel %vm481, %v4289, 0
      %v4338 = vsel %vm481, %v4290, 0
      %v4341 = vsel %vm481, %v4291, 0
      %v4344 = vsel %vm481, %v4292, 0
      %v4347 = vsel %vm481, %v4293, 0
      %v4350 = vsel %vm481, %v4294, 0
      %v4353 = vsel %vm481, %v4295, 0
      %v4356 = vsel %vm481, %v4296, 0
      %v4359 = vsel %vm481, %v4297, 0
      %4361 = vmatprep.subr.bf16.mxu0 0
      %4362 = vmatpush1.bf16.msra.mxu0 %v4311
      %4363 = vmatprep.subr.bf16.mxu0 0
      %4364 = vmatpush1.bf16.msra.mxu0 0
      %4365 = vmatprep.subr.bf16.mxu0 0
      %4366 = vmatpush1.bf16.msra.mxu0 0
      %4367 = vmatprep.subr.bf16.mxu0 0
      %4368 = vmatpush1.bf16.msra.mxu0 0
      %4369 = vmatprep.subr.bf16.mxu0 0
      %4370 = vmatpush1.bf16.msra.mxu0 0
      %4371 = vmatprep.subr.bf16.mxu0 0
      %4372 = vmatpush1.bf16.msra.mxu0 0
      %4373 = vmatprep.subr.bf16.mxu0 0
      %4374 = vmatpush1.bf16.msra.mxu0 0
      %4375 = vmatprep.subr.bf16.mxu0 0
      %4376 = vmatpush1.bf16.msra.mxu0 0
      %4377 = vmatprep.subr.bf16.mxu0 0
      %4378 = vmatpush1.bf16.msra.mxu0 0
      %4379 = vmatprep.subr.bf16.mxu0 0
      %4380 = vmatpush1.bf16.msra.mxu0 0
      %4381 = vmatprep.subr.bf16.mxu0 0
      %4382 = vmatpush1.bf16.msra.mxu0 0
      %4383 = vmatprep.subr.bf16.mxu0 0
      %4384 = vmatpush1.bf16.msra.mxu0 0
      %4385 = vmatprep.subr.bf16.mxu0 0
      %4386 = vmatpush1.bf16.msra.mxu0 0
      %4387 = vmatprep.subr.bf16.mxu0 0
      %4388 = vmatpush1.bf16.msra.mxu0 0
      %4389 = vmatprep.subr.bf16.mxu0 0
      %4390 = vmatpush1.bf16.msra.mxu0 0
      %4391 = vmatprep.subr.bf16.mxu0 0
      %4392 = vmatpush1.bf16.msra.mxu0 0
      %4393 = vmatprep.mubr.bf16.mxu0 0
      %4394 = vmatmul.mubr.bf16.gmra.mrb[0].mxu0 %v4314
      %v4395 = vpop.f32.mrb[0].mxu0
      %v4396 = vadd.f32 %v4305, %v4395
      %v4397 = vpop.f32.mrb[0].mxu0
      %v4398 = vpop.f32.mrb[0].mxu0
      %v4399 = vadd.f32 %v4305, %v4398
      %v4400 = vpop.f32.mrb[0].mxu0
      %4401 = vmatprep.mubr.bf16.mxu0 0
      %4402 = vmatmul.mubr.bf16.gmra.mrb[0].mxu0 %v4317
      %v4403 = vpop.f32.mrb[0].mxu0
      %v4404 = vadd.f32 %v4305, %v4403
      %v4405 = vpop.f32.mrb[0].mxu0
      %v4406 = vpop.f32.mrb[0].mxu0
      %v4407 = vadd.f32 %v4305, %v4406
      %v4408 = vpop.f32.mrb[0].mxu0
      %4409 = vmatprep.mubr.bf16.mxu0 0
      %4410 = vmatmul.mubr.bf16.gmra.mrb[0].mxu0 %v4320
      %v4411 = vpop.f32.mrb[0].mxu0
      %v4412 = vadd.f32 %v4305, %v4411
      %v4413 = vpop.f32.mrb[0].mxu0
      %v4414 = vpop.f32.mrb[0].mxu0
      %v4415 = vadd.f32 %v4305, %v4414
      %v4416 = vpop.f32.mrb[0].mxu0
      %4417 = vmatprep.mubr.bf16.mxu0 0
      %4418 = vmatmul.mubr.bf16.gmra.mrb[0].mxu0 %v4323
      %v4419 = vpop.f32.mrb[0].mxu0
      %v4420 = vadd.f32 %v4305, %v4419
      %v4421 = vpop.f32.mrb[0].mxu0
      %v4422 = vpop.f32.mrb[0].mxu0
      %v4423 = vadd.f32 %v4305, %v4422
      %v4424 = vpop.f32.mrb[0].mxu0
      %4425 = vmatprep.mubr.bf16.mxu0 0
      %4426 = vmatmul.mubr.bf16.gmra.mrb[0].mxu0 %v4326
      %v4427 = vpop.f32.mrb[0].mxu0
      %v4428 = vadd.f32 %v4305, %v4427
      %v4429 = vpop.f32.mrb[0].mxu0
      %v4430 = vpop.f32.mrb[0].mxu0
      %v4431 = vadd.f32 %v4305, %v4430
      %v4432 = vpop.f32.mrb[0].mxu0
      %4433 = vmatprep.mubr.bf16.mxu0 0
      %4434 = vmatmul.mubr.bf16.gmra.mrb[0].mxu0 %v4329
      %v4435 = vpop.f32.mrb[0].mxu0
      %v4436 = vadd.f32 %v4305, %v4435
      %v4437 = vpop.f32.mrb[0].mxu0
      %v4438 = vpop.f32.mrb[0].mxu0
      %v4439 = vadd.f32 %v4305, %v4438
      %v4440 = vpop.f32.mrb[0].mxu0
      %4441 = vmatprep.mubr.bf16.mxu0 0
      %4442 = vmatmul.mubr.bf16.gmra.mrb[0].mxu0 %v4332
      %v4443 = vpop.f32.mrb[0].mxu0
      %v4444 = vadd.f32 %v4305, %v4443
      %v4445 = vpop.f32.mrb[0].mxu0
      %v4446 = vpop.f32.mrb[0].mxu0
      %v4447 = vadd.f32 %v4305, %v4446
      %v4448 = vpop.f32.mrb[0].mxu0
      %4449 = vmatprep.mubr.bf16.mxu0 0
      %4450 = vmatmul.mubr.bf16.gmra.mrb[0].mxu0 %v4335
      %v4451 = vpop.f32.mrb[0].mxu0
      %v4452 = vadd.f32 %v4305, %v4451
      %v4453 = vpop.f32.mrb[0].mxu0
      %v4454 = vpop.f32.mrb[0].mxu0
      %v4455 = vadd.f32 %v4305, %v4454
      %v4456 = vpop.f32.mrb[0].mxu0
      %4457 = vmatprep.mubr.bf16.mxu0 0
      %4458 = vmatmul.mubr.bf16.gmra.mrb[0].mxu0 %v4338
      %v4459 = vpop.f32.mrb[0].mxu0
      %v4460 = vadd.f32 %v4305, %v4459
      %v4461 = vpop.f32.mrb[0].mxu0
      %v4462 = vpop.f32.mrb[0].mxu0
      %v4463 = vadd.f32 %v4305, %v4462
      %v4464 = vpop.f32.mrb[0].mxu0
      %4465 = vmatprep.mubr.bf16.mxu0 0
      %4466 = vmatmul.mubr.bf16.gmra.mrb[0].mxu0 %v4341
      %v4467 = vpop.f32.mrb[0].mxu0
      %v4468 = vadd.f32 %v4305, %v4467
      %v4469 = vpop.f32.mrb[0].mxu0
      %v4470 = vpop.f32.mrb[0].mxu0
      %v4471 = vadd.f32 %v4305, %v4470
      %v4472 = vpop.f32.mrb[0].mxu0
      %4473 = vmatprep.mubr.bf16.mxu0 0
      %4474 = vmatmul.mubr.bf16.gmra.mrb[0].mxu0 %v4344
      %v4475 = vpop.f32.mrb[0].mxu0
      %v4476 = vadd.f32 %v4305, %v4475
      %v4477 = vpop.f32.mrb[0].mxu0
      %v4478 = vpop.f32.mrb[0].mxu0
      %v4479 = vadd.f32 %v4305, %v4478
      %v4480 = vpop.f32.mrb[0].mxu0
      %4481 = vmatprep.mubr.bf16.mxu0 0
      %4482 = vmatmul.mubr.bf16.gmra.mrb[0].mxu0 %v4347
      %v4483 = vpop.f32.mrb[0].mxu0
      %v4484 = vadd.f32 %v4305, %v4483
      %v4485 = vpop.f32.mrb[0].mxu0
      %v4486 = vpop.f32.mrb[0].mxu0
      %v4487 = vadd.f32 %v4305, %v4486
      %v4488 = vpop.f32.mrb[0].mxu0
      %4489 = vmatprep.mubr.bf16.mxu0 0
      %4490 = vmatmul.mubr.bf16.gmra.mrb[0].mxu0 %v4350
      %v4491 = vpop.f32.mrb[0].mxu0
      %v4492 = vadd.f32 %v4305, %v4491
      %v4493 = vpop.f32.mrb[0].mxu0
      %v4494 = vpop.f32.mrb[0].mxu0
      %v4495 = vadd.f32 %v4305, %v4494
      %v4496 = vpop.f32.mrb[0].mxu0
      %4497 = vmatprep.mubr.bf16.mxu0 0
      %4498 = vmatmul.mubr.bf16.gmra.mrb[0].mxu0 %v4353
      %v4499 = vpop.f32.mrb[0].mxu0
      %v4500 = vadd.f32 %v4305, %v4499
      %v4501 = vpop.f32.mrb[0].mxu0
      %v4502 = vpop.f32.mrb[0].mxu0
      %v4503 = vadd.f32 %v4305, %v4502
      %v4504 = vpop.f32.mrb[0].mxu0
      %4505 = vmatprep.mubr.bf16.mxu0 0
      %4506 = vmatmul.mubr.bf16.gmra.mrb[0].mxu0 %v4356
      %v4507 = vpop.f32.mrb[0].mxu0
      %v4508 = vadd.f32 %v4305, %v4507
      %v4509 = vpop.f32.mrb[0].mxu0
      %v4510 = vpop.f32.mrb[0].mxu0
      %v4511 = vadd.f32 %v4305, %v4510
      %v4512 = vpop.f32.mrb[0].mxu0
      %4513 = vmatprep.mubr.bf16.mxu0 0
      %4514 = vmatmul.mubr.bf16.gmra.mrb[0].mxu0 %v4359
      %v4515 = vpop.f32.mrb[0].mxu0
      %v4516 = vadd.f32 %v4305, %v4515
      %v4517 = vpop.f32.mrb[0].mxu0
      %v4518 = vpop.f32.mrb[0].mxu0
      %v4519 = vadd.f32 %v4305, %v4518
      %v4520 = vpop.f32.mrb[0].mxu0
      %4521 = vdwg.mxu0
      %v4522 = vmax.f32 %v4396, 0.0
      %v4523 = vmax.f32 %v4399, 0.0
      %v4524 = vmax.f32 %v4404, 0.0
      %v4525 = vmax.f32 %v4407, 0.0
      %v4526 = vmax.f32 %v4412, 0.0
      %v4527 = vmax.f32 %v4415, 0.0
      %v4528 = vmax.f32 %v4420, 0.0
      %v4529 = vmax.f32 %v4423, 0.0
      %v4530 = vmax.f32 %v4428, 0.0
      %v4531 = vmax.f32 %v4431, 0.0
      %v4532 = vmax.f32 %v4436, 0.0
      %v4533 = vmax.f32 %v4439, 0.0
      %v4534 = vmax.f32 %v4444, 0.0
      %v4535 = vmax.f32 %v4447, 0.0
      %v4536 = vmax.f32 %v4452, 0.0
      %v4537 = vmax.f32 %v4455, 0.0
      %v4538 = vmax.f32 %v4460, 0.0
      %v4539 = vmax.f32 %v4463, 0.0
      %v4540 = vmax.f32 %v4468, 0.0
      %v4541 = vmax.f32 %v4471, 0.0
      %v4542 = vmax.f32 %v4476, 0.0
      %v4543 = vmax.f32 %v4479, 0.0
      %v4544 = vmax.f32 %v4484, 0.0
      %v4545 = vmax.f32 %v4487, 0.0
      %v4546 = vmax.f32 %v4492, 0.0
      %v4547 = vmax.f32 %v4495, 0.0
      %v4548 = vmax.f32 %v4500, 0.0
      %v4549 = vmax.f32 %v4503, 0.0
      %v4550 = vmax.f32 %v4508, 0.0
      %v4551 = vmax.f32 %v4511, 0.0
      %v4552 = vmax.f32 %v4516, 0.0
      %v4553 = vmax.f32 %v4519, 0.0
      %v4554 = vmin.f32 %v4522, 6.0
      %v4555 = vmin.f32 %v4523, 6.0
      %v4556 = vmin.f32 %v4524, 6.0
      %v4557 = vmin.f32 %v4525, 6.0
      %v4558 = vmin.f32 %v4526, 6.0
      %v4559 = vmin.f32 %v4527, 6.0
      %v4560 = vmin.f32 %v4528, 6.0
      %v4561 = vmin.f32 %v4529, 6.0
      %v4562 = vmin.f32 %v4530, 6.0
      %v4563 = vmin.f32 %v4531, 6.0
      %v4564 = vmin.f32 %v4532, 6.0
      %v4565 = vmin.f32 %v4533, 6.0
      %v4566 = vmin.f32 %v4534, 6.0
      %v4567 = vmin.f32 %v4535, 6.0
      %v4568 = vmin.f32 %v4536, 6.0
      %v4569 = vmin.f32 %v4537, 6.0
      %v4570 = vmin.f32 %v4538, 6.0
      %v4571 = vmin.f32 %v4539, 6.0
      %v4572 = vmin.f32 %v4540, 6.0
      %v4573 = vmin.f32 %v4541, 6.0
      %v4574 = vmin.f32 %v4542, 6.0
      %v4575 = vmin.f32 %v4543, 6.0
      %v4576 = vmin.f32 %v4544, 6.0
      %v4577 = vmin.f32 %v4545, 6.0
      %v4578 = vmin.f32 %v4546, 6.0
      %v4579 = vmin.f32 %v4547, 6.0
      %v4580 = vmin.f32 %v4548, 6.0
      %v4581 = vmin.f32 %v4549, 6.0
      %v4582 = vmin.f32 %v4550, 6.0
      %v4583 = vmin.f32 %v4551, 6.0
      %v4584 = vmin.f32 %v4552, 6.0
      %v4585 = vmin.f32 %v4553, 6.0
      %v4586 = vpack.c.bf16 %v4555, %v4554
      %v4587 = vpack.c.bf16 %v4557, %v4556
      %v4588 = vpack.c.bf16 %v4559, %v4558
      %v4589 = vpack.c.bf16 %v4561, %v4560
      %v4590 = vpack.c.bf16 %v4563, %v4562
      %v4591 = vpack.c.bf16 %v4565, %v4564
      %v4592 = vpack.c.bf16 %v4567, %v4566
      %v4593 = vpack.c.bf16 %v4569, %v4568
      %v4594 = vpack.c.bf16 %v4571, %v4570
      %v4595 = vpack.c.bf16 %v4573, %v4572
      %v4596 = vpack.c.bf16 %v4575, %v4574
      %v4597 = vpack.c.bf16 %v4577, %v4576
      %v4598 = vpack.c.bf16 %v4579, %v4578
      %v4599 = vpack.c.bf16 %v4581, %v4580
      %v4600 = vpack.c.bf16 %v4583, %v4582
      %v4601 = vpack.c.bf16 %v4585, %v4584
      %vm4618 = vcmask 1043456
      %v4619 = vrot.slane %v4586, 4
      %v4620 = vrot.slane %v4587, 4
      %v4621 = vsel %vm4618, %v4619, %v4620
      %v4622 = vrot.slane %v4588, 4
      %v4623 = vsel %vm4618, %v4620, %v4622
      %v4624 = vrot.slane %v4589, 4
      %v4625 = vsel %vm4618, %v4622, %v4624
      %v4626 = vrot.slane %v4590, 4
      %v4627 = vsel %vm4618, %v4624, %v4626
      %v4628 = vrot.slane %v4591, 4
      %v4629 = vsel %vm4618, %v4626, %v4628
      %v4630 = vrot.slane %v4592, 4
      %v4631 = vsel %vm4618, %v4628, %v4630
      %v4632 = vrot.slane %v4593, 4
      %v4633 = vsel %vm4618, %v4630, %v4632
      %v4634 = vrot.slane %v4594, 4
      %v4635 = vsel %vm4618, %v4632, %v4634
      %v4636 = vrot.slane %v4595, 4
      %v4637 = vsel %vm4618, %v4634, %v4636
      %v4638 = vrot.slane %v4596, 4
      %v4639 = vsel %vm4618, %v4636, %v4638
      %v4640 = vrot.slane %v4597, 4
      %v4641 = vsel %vm4618, %v4638, %v4640
      %v4642 = vrot.slane %v4598, 4
      %v4643 = vsel %vm4618, %v4640, %v4642
      %v4644 = vrot.slane %v4599, 4
      %v4645 = vsel %vm4618, %v4642, %v4644
      %v4646 = vrot.slane %v4600, 4
      %v4647 = vsel %vm4618, %v4644, %v4646
      %v4648 = vrot.slane %v4601, 4
      %v4649 = vsel %vm4618, %v4646, %v4648
      %4667 = vst.msk [vmem:[#allocation3 + $0x8] sm:$0xf0] %vm492, %v4619
      %4668 = vst.msk [vmem:[#allocation3 + $0x10] sm:$0xff] %vm488, %v4621
      %4669 = vst.msk [vmem:[#allocation3 + $0x18] sm:$0xff] %vm488, %v4623
      %4670 = vst.msk [vmem:[#allocation3 + $0x20] sm:$0xff] %vm488, %v4625
      %4671 = vst.msk [vmem:[#allocation3 + $0x28] sm:$0xff] %vm488, %v4627
      %4672 = vst.msk [vmem:[#allocation3 + $0x30] sm:$0xff] %vm488, %v4629
      %4673 = vst.msk [vmem:[#allocation3 + $0x38] sm:$0xff] %vm488, %v4631
      %4674 = vst.msk [vmem:[#allocation3 + $0x40] sm:$0xff] %vm488, %v4633
      %4675 = vst.msk [vmem:[#allocation3 + $0x48] sm:$0xff] %vm488, %v4635
      %4676 = vst.msk [vmem:[#allocation3 + $0x50] sm:$0xff] %vm488, %v4637
      %4677 = vst.msk [vmem:[#allocation3 + $0x58] sm:$0xff] %vm488, %v4639
      %4678 = vst.msk [vmem:[#allocation3 + $0x60] sm:$0xff] %vm488, %v4641
      %4679 = vst.msk [vmem:[#allocation3 + $0x68] sm:$0xff] %vm488, %v4643
      %4680 = vst.msk [vmem:[#allocation3 + $0x70] sm:$0xff] %vm488, %v4645
      %4681 = vst.msk [vmem:[#allocation3 + $0x78] sm:$0xff] %vm488, %v4647
      %4682 = vst.msk [vmem:[#allocation3 + $0x80] sm:$0xff] %vm488, %v4649
      %4683 = vst.msk [vmem:[#allocation3 + $0x88] sm:$0xf] %vm490, %v4648
      %v4684 = vld [vmem:[#allocation3] sm:$0xff]
      %v4685 = vld [vmem:[#allocation3 + $0x8] sm:$0xff]
      %v4686 = vld [vmem:[#allocation3 + $0x10] sm:$0xff]
      %v4687 = vld [vmem:[#allocation3 + $0x18] sm:$0xff]
      %v4688 = vld [vmem:[#allocation3 + $0x20] sm:$0xff]
      %v4689 = vld [vmem:[#allocation3 + $0x28] sm:$0xff]
      %v4690 = vld [vmem:[#allocation3 + $0x30] sm:$0xff]
      %v4691 = vld [vmem:[#allocation3 + $0x38] sm:$0xff]
      %v4692 = vld [vmem:[#allocation3 + $0x40] sm:$0xff]
      %v4693 = vld [vmem:[#allocation3 + $0x48] sm:$0xff]
      %v4694 = vld [vmem:[#allocation3 + $0x50] sm:$0xff]
      %v4695 = vld [vmem:[#allocation3 + $0x58] sm:$0xff]
      %v4696 = vld [vmem:[#allocation3 + $0x60] sm:$0xff]
      %v4697 = vld [vmem:[#allocation3 + $0x68] sm:$0xff]
      %v4698 = vld [vmem:[#allocation3 + $0x70] sm:$0xff]
      %v4699 = vld [vmem:[#allocation3 + $0x78] sm:$0xff]
      %v4700 = vld [vmem:[#allocation3 + $0x80] sm:$0xff]
      %v4701 = vld [vmem:[#allocation3 + $0x88] sm:$0xff]
      %v4702 = vld [vmem:[#allocation3 + $0x90] sm:$0xff]
      %v4703 = vunpack.c.l.b16 %v641
      %v4704 = vunpack.c.l.b16 %v642
      %v4705 = vunpack.c.l.b16 %v643
      %v4706 = vunpack.c.l.b16 %v644
      %v4707 = vunpack.c.l.b16 %v645
      %v4708 = vunpack.c.l.b16 %v646
      %v4709 = vunpack.c.l.b16 %v647
      %v4710 = vunpack.c.l.b16 %v648
      %v4711 = vunpack.c.l.b16 %v649
      %v4712 = vunpack.c.l.b16 %v650
      %v4713 = vunpack.c.l.b16 %v651
      %v4714 = vunpack.c.l.b16 %v652
      %v4715 = vunpack.c.l.b16 %v653
      %v4716 = vunpack.c.l.b16 %v654
      %v4717 = vunpack.c.l.b16 %v655
      %v4718 = vunpack.c.l.b16 %v656
      %v4719 = vunpack.c.l.b16 %v657
      %v4720 = vunpack.c.l.b16 %v658
      %v4721 = vunpack.c.l.b16 %v659
      %v4722 = vunpack.c.l.b16 %v660
      %v4723 = vunpack.c.l.b16 %v661
      %v4724 = vunpack.c.l.b16 %v662
      %v4725 = vunpack.c.l.b16 %v663
      %v4726 = vunpack.c.l.b16 %v664
      %v4727 = vunpack.c.l.b16 %v665
      %v4728 = vunpack.c.l.b16 %v666
      %v4729 = vunpack.c.l.b16 %v667
      %v4730 = vunpack.c.l.b16 %v668
      %v4731 = vunpack.c.l.b16 %v669
      %v4732 = vunpack.c.l.b16 %v670
      %v4733 = vunpack.c.l.b16 %v671
      %v4734 = vunpack.c.l.b16 %v672
      %v4735 = vunpack.c.l.b16 %v673
      %v4736 = vunpack.c.l.b16 %v674
      %v4737 = vunpack.c.l.b16 %v675
      %v4738 = vunpack.c.l.b16 %v676
      %v4739 = vpack.c.b16 %v4704, %v4703
      %v4740 = vpack.c.b16 %v4706, %v4705
      %v4741 = vpack.c.b16 %v4708, %v4707
      %v4742 = vpack.c.b16 %v4710, %v4709
      %v4743 = vpack.c.b16 %v4712, %v4711
      %v4744 = vpack.c.b16 %v4714, %v4713
      %v4745 = vpack.c.b16 %v4716, %v4715
      %v4746 = vpack.c.b16 %v4718, %v4717
      %v4747 = vpack.c.b16 %v4720, %v4719
      %v4748 = vpack.c.b16 %v4722, %v4721
      %v4749 = vpack.c.b16 %v4724, %v4723
      %v4750 = vpack.c.b16 %v4726, %v4725
      %v4751 = vpack.c.b16 %v4728, %v4727
      %v4752 = vpack.c.b16 %v4730, %v4729
      %v4753 = vpack.c.b16 %v4732, %v4731
      %v4754 = vpack.c.b16 %v4734, %v4733
      %v4755 = vpack.c.b16 %v4736, %v4735
      %v4756 = vpack.c.b16 %v4738, %v4737
      %v4758 = vshrl.u32 %v4739, 16
      %v4760 = vrot.slane %v4758, 4
      %v4761 = vshll.u32 %v4739, 16
      %v4763 = vrot.slane %v4761, 5
      %v4764 = vor.u32 %v4760, %v4763
      %v4766 = vshrl.u32 %v4740, 16
      %v4768 = vrot.slane %v4766, 4
      %v4769 = vshll.u32 %v4740, 16
      %v4771 = vrot.slane %v4769, 5
      %v4772 = vor.u32 %v4768, %v4771
      %v4773 = vsel %vm677, %v4764, %v4772
      %v4775 = vshrl.u32 %v4741, 16
      %v4777 = vrot.slane %v4775, 4
      %v4778 = vshll.u32 %v4741, 16
      %v4780 = vrot.slane %v4778, 5
      %v4781 = vor.u32 %v4777, %v4780
      %v4782 = vsel %vm677, %v4772, %v4781
      %v4784 = vshrl.u32 %v4742, 16
      %v4786 = vrot.slane %v4784, 4
      %v4787 = vshll.u32 %v4742, 16
      %v4789 = vrot.slane %v4787, 5
      %v4790 = vor.u32 %v4786, %v4789
      %v4791 = vsel %vm677, %v4781, %v4790
      %v4793 = vshrl.u32 %v4743, 16
      %v4795 = vrot.slane %v4793, 4
      %v4796 = vshll.u32 %v4743, 16
      %v4798 = vrot.slane %v4796, 5
      %v4799 = vor.u32 %v4795, %v4798
      %v4800 = vsel %vm677, %v4790, %v4799
      %v4802 = vshrl.u32 %v4744, 16
      %v4804 = vrot.slane %v4802, 4
      %v4805 = vshll.u32 %v4744, 16
      %v4807 = vrot.slane %v4805, 5
      %v4808 = vor.u32 %v4804, %v4807
      %v4809 = vsel %vm677, %v4799, %v4808
      %v4811 = vshrl.u32 %v4745, 16
      %v4813 = vrot.slane %v4811, 4
      %v4814 = vshll.u32 %v4745, 16
      %v4816 = vrot.slane %v4814, 5
      %v4817 = vor.u32 %v4813, %v4816
      %v4818 = vsel %vm677, %v4808, %v4817
      %v4820 = vshrl.u32 %v4746, 16
      %v4822 = vrot.slane %v4820, 4
      %v4823 = vshll.u32 %v4746, 16
      %v4825 = vrot.slane %v4823, 5
      %v4826 = vor.u32 %v4822, %v4825
      %v4827 = vsel %vm677, %v4817, %v4826
      %v4829 = vshrl.u32 %v4747, 16
      %v4831 = vrot.slane %v4829, 4
      %v4832 = vshll.u32 %v4747, 16
      %v4834 = vrot.slane %v4832, 5
      %v4835 = vor.u32 %v4831, %v4834
      %v4836 = vsel %vm677, %v4826, %v4835
      %v4838 = vshrl.u32 %v4748, 16
      %v4840 = vrot.slane %v4838, 4
      %v4841 = vshll.u32 %v4748, 16
      %v4843 = vrot.slane %v4841, 5
      %v4844 = vor.u32 %v4840, %v4843
      %v4845 = vsel %vm677, %v4835, %v4844
      %v4847 = vshrl.u32 %v4749, 16
      %v4849 = vrot.slane %v4847, 4
      %v4850 = vshll.u32 %v4749, 16
      %v4852 = vrot.slane %v4850, 5
      %v4853 = vor.u32 %v4849, %v4852
      %v4854 = vsel %vm677, %v4844, %v4853
      %v4856 = vshrl.u32 %v4750, 16
      %v4858 = vrot.slane %v4856, 4
      %v4859 = vshll.u32 %v4750, 16
      %v4861 = vrot.slane %v4859, 5
      %v4862 = vor.u32 %v4858, %v4861
      %v4863 = vsel %vm677, %v4853, %v4862
      %v4865 = vshrl.u32 %v4751, 16
      %v4867 = vrot.slane %v4865, 4
      %v4868 = vshll.u32 %v4751, 16
      %v4870 = vrot.slane %v4868, 5
      %v4871 = vor.u32 %v4867, %v4870
      %v4872 = vsel %vm677, %v4862, %v4871
      %v4874 = vshrl.u32 %v4752, 16
      %v4876 = vrot.slane %v4874, 4
      %v4877 = vshll.u32 %v4752, 16
      %v4879 = vrot.slane %v4877, 5
      %v4880 = vor.u32 %v4876, %v4879
      %v4881 = vsel %vm677, %v4871, %v4880
      %v4883 = vshrl.u32 %v4753, 16
      %v4885 = vrot.slane %v4883, 4
      %v4886 = vshll.u32 %v4753, 16
      %v4888 = vrot.slane %v4886, 5
      %v4889 = vor.u32 %v4885, %v4888
      %v4890 = vsel %vm677, %v4880, %v4889
      %v4892 = vshrl.u32 %v4754, 16
      %v4894 = vrot.slane %v4892, 4
      %v4895 = vshll.u32 %v4754, 16
      %v4897 = vrot.slane %v4895, 5
      %v4898 = vor.u32 %v4894, %v4897
      %v4899 = vsel %vm677, %v4889, %v4898
      %v4901 = vshrl.u32 %v4755, 16
      %v4903 = vrot.slane %v4901, 4
      %v4904 = vshll.u32 %v4755, 16
      %v4906 = vrot.slane %v4904, 5
      %v4907 = vor.u32 %v4903, %v4906
      %v4908 = vsel %vm677, %v4898, %v4907
      %v4910 = vshrl.u32 %v4756, 16
      %v4912 = vrot.slane %v4910, 4
      %v4913 = vshll.u32 %v4756, 16
      %v4915 = vrot.slane %v4913, 5
      %v4916 = vor.u32 %v4912, %v4915
      %v4917 = vsel %vm677, %v4907, %v4916
      %vm4918 = vcmp.ne.s16.totalorder %v4764, 0
      %vm4919 = vcmp.ne.s16.totalorder %v4773, 0
      %vm4920 = vcmp.ne.s16.totalorder %v4782, 0
      %vm4921 = vcmp.ne.s16.totalorder %v4791, 0
      %vm4922 = vcmp.ne.s16.totalorder %v4800, 0
      %vm4923 = vcmp.ne.s16.totalorder %v4809, 0
      %vm4924 = vcmp.ne.s16.totalorder %v4818, 0
      %vm4925 = vcmp.ne.s16.totalorder %v4827, 0
      %vm4926 = vcmp.ne.s16.totalorder %v4836, 0
      %vm4927 = vcmp.ne.s16.totalorder %v4845, 0
      %vm4928 = vcmp.ne.s16.totalorder %v4854, 0
      %vm4929 = vcmp.ne.s16.totalorder %v4863, 0
      %vm4930 = vcmp.ne.s16.totalorder %v4872, 0
      %vm4931 = vcmp.ne.s16.totalorder %v4881, 0
      %vm4932 = vcmp.ne.s16.totalorder %v4890, 0
      %vm4933 = vcmp.ne.s16.totalorder %v4899, 0
      %vm4934 = vcmp.ne.s16.totalorder %v4908, 0
      %vm4935 = vcmp.ne.s16.totalorder %v4917, 0
      %vm4936 = vcmp.ne.s16.totalorder %v4916, 0
      %v4937 = vsel %vm4918, %v4684, 0
      %v4938 = vsel %vm4919, %v4685, 0
      %v4939 = vsel %vm4920, %v4686, 0
      %v4940 = vsel %vm4921, %v4687, 0
      %v4941 = vsel %vm4922, %v4688, 0
      %v4942 = vsel %vm4923, %v4689, 0
      %v4943 = vsel %vm4924, %v4690, 0
      %v4944 = vsel %vm4925, %v4691, 0
      %v4945 = vsel %vm4926, %v4692, 0
      %v4946 = vsel %vm4927, %v4693, 0
      %v4947 = vsel %vm4928, %v4694, 0
      %v4948 = vsel %vm4929, %v4695, 0
      %v4949 = vsel %vm4930, %v4696, 0
      %v4950 = vsel %vm4931, %v4697, 0
      %v4951 = vsel %vm4932, %v4698, 0
      %v4952 = vsel %vm4933, %v4699, 0
      %v4953 = vsel %vm4934, %v4700, 0
      %v4954 = vsel %vm4935, %v4701, 0
      %v4955 = vsel %vm4936, %v4702, 0
      %v4956 = vunpack.c.l.b16 %v1221
      %v4957 = vunpack.c.l.b16 %v1222
      %v4958 = vunpack.c.l.b16 %v1223
      %v4959 = vunpack.c.l.b16 %v1224
      %v4960 = vunpack.c.l.b16 %v1225
      %v4961 = vunpack.c.l.b16 %v1226
      %v4962 = vunpack.c.l.b16 %v1227
      %v4963 = vunpack.c.l.b16 %v1228
      %v4964 = vunpack.c.l.b16 %v1229
      %v4965 = vunpack.c.l.b16 %v1230
      %v4966 = vunpack.c.l.b16 %v1231
      %v4967 = vunpack.c.l.b16 %v1232
      %v4968 = vunpack.c.l.b16 %v1233
      %v4969 = vunpack.c.l.b16 %v1234
      %v4970 = vunpack.c.l.b16 %v1235
      %v4971 = vunpack.c.l.b16 %v1236
      %v4972 = vunpack.c.l.b16 %v1237
      %v4973 = vunpack.c.l.b16 %v1238
      %v4974 = vunpack.c.l.b16 %v1239
      %v4975 = vunpack.c.l.b16 %v1240
      %v4976 = vunpack.c.l.b16 %v1241
      %v4977 = vunpack.c.l.b16 %v1242
      %v4978 = vunpack.c.l.b16 %v1243
      %v4979 = vunpack.c.l.b16 %v1244
      %v4980 = vunpack.c.l.b16 %v1245
      %v4981 = vunpack.c.l.b16 %v1246
      %v4982 = vunpack.c.l.b16 %v1247
      %v4983 = vunpack.c.l.b16 %v1248
      %v4984 = vunpack.c.l.b16 %v1249
      %v4985 = vunpack.c.l.b16 %v1250
      %v4986 = vunpack.c.l.b16 %v1251
      %v4987 = vunpack.c.l.b16 %v1252
      %v4988 = vunpack.c.l.b16 %v1253
      %v4989 = vunpack.c.l.b16 %v1254
      %v4990 = vunpack.c.l.b16 %v1255
      %v4991 = vunpack.c.l.b16 %v1256
      %v4992 = vpack.c.b16 %v4957, %v4956
      %v4993 = vpack.c.b16 %v4959, %v4958
      %v4994 = vpack.c.b16 %v4961, %v4960
      %v4995 = vpack.c.b16 %v4963, %v4962
      %v4996 = vpack.c.b16 %v4965, %v4964
      %v4997 = vpack.c.b16 %v4967, %v4966
      %v4998 = vpack.c.b16 %v4969, %v4968
      %v4999 = vpack.c.b16 %v4971, %v4970
      %v5000 = vpack.c.b16 %v4973, %v4972
      %v5001 = vpack.c.b16 %v4975, %v4974
      %v5002 = vpack.c.b16 %v4977, %v4976
      %v5003 = vpack.c.b16 %v4979, %v4978
      %v5004 = vpack.c.b16 %v4981, %v4980
      %v5005 = vpack.c.b16 %v4983, %v4982
      %v5006 = vpack.c.b16 %v4985, %v4984
      %v5007 = vpack.c.b16 %v4987, %v4986
      %v5008 = vpack.c.b16 %v4989, %v4988
      %v5009 = vpack.c.b16 %v4991, %v4990
      %v5011 = vshrl.u32 %v4992, 16
      %v5013 = vrot.slane %v5011, 3
      %v5014 = vshll.u32 %v4992, 16
      %v5016 = vrot.slane %v5014, 4
      %v5017 = vor.u32 %v5013, %v5016
      %v5019 = vshrl.u32 %v4993, 16
      %v5021 = vrot.slane %v5019, 3
      %v5022 = vshll.u32 %v4993, 16
      %v5024 = vrot.slane %v5022, 4
      %v5025 = vor.u32 %v5021, %v5024
      %v5026 = vsel %vm2723, %v5017, %v5025
      %v5028 = vshrl.u32 %v4994, 16
      %v5030 = vrot.slane %v5028, 3
      %v5031 = vshll.u32 %v4994, 16
      %v5033 = vrot.slane %v5031, 4
      %v5034 = vor.u32 %v5030, %v5033
      %v5035 = vsel %vm2723, %v5025, %v5034
      %v5037 = vshrl.u32 %v4995, 16
      %v5039 = vrot.slane %v5037, 3
      %v5040 = vshll.u32 %v4995, 16
      %v5042 = vrot.slane %v5040, 4
      %v5043 = vor.u32 %v5039, %v5042
      %v5044 = vsel %vm2723, %v5034, %v5043
      %v5046 = vshrl.u32 %v4996, 16
      %v5048 = vrot.slane %v5046, 3
      %v5049 = vshll.u32 %v4996, 16
      %v5051 = vrot.slane %v5049, 4
      %v5052 = vor.u32 %v5048, %v5051
      %v5053 = vsel %vm2723, %v5043, %v5052
      %v5055 = vshrl.u32 %v4997, 16
      %v5057 = vrot.slane %v5055, 3
      %v5058 = vshll.u32 %v4997, 16
      %v5060 = vrot.slane %v5058, 4
      %v5061 = vor.u32 %v5057, %v5060
      %v5062 = vsel %vm2723, %v5052, %v5061
      %v5064 = vshrl.u32 %v4998, 16
      %v5066 = vrot.slane %v5064, 3
      %v5067 = vshll.u32 %v4998, 16
      %v5069 = vrot.slane %v5067, 4
      %v5070 = vor.u32 %v5066, %v5069
      %v5071 = vsel %vm2723, %v5061, %v5070
      %v5073 = vshrl.u32 %v4999, 16
      %v5075 = vrot.slane %v5073, 3
      %v5076 = vshll.u32 %v4999, 16
      %v5078 = vrot.slane %v5076, 4
      %v5079 = vor.u32 %v5075, %v5078
      %v5080 = vsel %vm2723, %v5070, %v5079
      %v5082 = vshrl.u32 %v5000, 16
      %v5084 = vrot.slane %v5082, 3
      %v5085 = vshll.u32 %v5000, 16
      %v5087 = vrot.slane %v5085, 4
      %v5088 = vor.u32 %v5084, %v5087
      %v5089 = vsel %vm2723, %v5079, %v5088
      %v5091 = vshrl.u32 %v5001, 16
      %v5093 = vrot.slane %v5091, 3
      %v5094 = vshll.u32 %v5001, 16
      %v5096 = vrot.slane %v5094, 4
      %v5097 = vor.u32 %v5093, %v5096
      %v5098 = vsel %vm2723, %v5088, %v5097
      %v5100 = vshrl.u32 %v5002, 16
      %v5102 = vrot.slane %v5100, 3
      %v5103 = vshll.u32 %v5002, 16
      %v5105 = vrot.slane %v5103, 4
      %v5106 = vor.u32 %v5102, %v5105
      %v5107 = vsel %vm2723, %v5097, %v5106
      %v5109 = vshrl.u32 %v5003, 16
      %v5111 = vrot.slane %v5109, 3
      %v5112 = vshll.u32 %v5003, 16
      %v5114 = vrot.slane %v5112, 4
      %v5115 = vor.u32 %v5111, %v5114
      %v5116 = vsel %vm2723, %v5106, %v5115
      %v5118 = vshrl.u32 %v5004, 16
      %v5120 = vrot.slane %v5118, 3
      %v5121 = vshll.u32 %v5004, 16
      %v5123 = vrot.slane %v5121, 4
      %v5124 = vor.u32 %v5120, %v5123
      %v5125 = vsel %vm2723, %v5115, %v5124
      %v5127 = vshrl.u32 %v5005, 16
      %v5129 = vrot.slane %v5127, 3
      %v5130 = vshll.u32 %v5005, 16
      %v5132 = vrot.slane %v5130, 4
      %v5133 = vor.u32 %v5129, %v5132
      %v5134 = vsel %vm2723, %v5124, %v5133
      %v5136 = vshrl.u32 %v5006, 16
      %v5138 = vrot.slane %v5136, 3
      %v5139 = vshll.u32 %v5006, 16
      %v5141 = vrot.slane %v5139, 4
      %v5142 = vor.u32 %v5138, %v5141
      %v5143 = vsel %vm2723, %v5133, %v5142
      %v5145 = vshrl.u32 %v5007, 16
      %v5147 = vrot.slane %v5145, 3
      %v5148 = vshll.u32 %v5007, 16
      %v5150 = vrot.slane %v5148, 4
      %v5151 = vor.u32 %v5147, %v5150
      %v5152 = vsel %vm2723, %v5142, %v5151
      %v5154 = vshrl.u32 %v5008, 16
      %v5156 = vrot.slane %v5154, 3
      %v5157 = vshll.u32 %v5008, 16
      %v5159 = vrot.slane %v5157, 4
      %v5160 = vor.u32 %v5156, %v5159
      %v5161 = vsel %vm2723, %v5151, %v5160
      %v5163 = vshrl.u32 %v5009, 16
      %v5165 = vrot.slane %v5163, 3
      %v5166 = vshll.u32 %v5009, 16
      %v5168 = vrot.slane %v5166, 4
      %v5169 = vor.u32 %v5165, %v5168
      %v5170 = vsel %vm2723, %v5160, %v5169
      %vm5171 = vcmp.ne.s16.totalorder %v5017, 0
      %vm5172 = vcmp.ne.s16.totalorder %v5026, 0
      %vm5173 = vcmp.ne.s16.totalorder %v5035, 0
      %vm5174 = vcmp.ne.s16.totalorder %v5044, 0
      %vm5175 = vcmp.ne.s16.totalorder %v5053, 0
      %vm5176 = vcmp.ne.s16.totalorder %v5062, 0
      %vm5177 = vcmp.ne.s16.totalorder %v5071, 0
      %vm5178 = vcmp.ne.s16.totalorder %v5080, 0
      %vm5179 = vcmp.ne.s16.totalorder %v5089, 0
      %vm5180 = vcmp.ne.s16.totalorder %v5098, 0
      %vm5181 = vcmp.ne.s16.totalorder %v5107, 0
      %vm5182 = vcmp.ne.s16.totalorder %v5116, 0
      %vm5183 = vcmp.ne.s16.totalorder %v5125, 0
      %vm5184 = vcmp.ne.s16.totalorder %v5134, 0
      %vm5185 = vcmp.ne.s16.totalorder %v5143, 0
      %vm5186 = vcmp.ne.s16.totalorder %v5152, 0
      %vm5187 = vcmp.ne.s16.totalorder %v5161, 0
      %vm5188 = vcmp.ne.s16.totalorder %v5170, 0
      %vm5189 = vcmp.ne.s16.totalorder %v5169, 0
      %v5190 = vsel %vm5171, %v4684, 0
      %v5191 = vsel %vm5172, %v4685, 0
      %v5192 = vsel %vm5173, %v4686, 0
      %v5193 = vsel %vm5174, %v4687, 0
      %v5194 = vsel %vm5175, %v4688, 0
      %v5195 = vsel %vm5176, %v4689, 0
      %v5196 = vsel %vm5177, %v4690, 0
      %v5197 = vsel %vm5178, %v4691, 0
      %v5198 = vsel %vm5179, %v4692, 0
      %v5199 = vsel %vm5180, %v4693, 0
      %v5200 = vsel %vm5181, %v4694, 0
      %v5201 = vsel %vm5182, %v4695, 0
      %v5202 = vsel %vm5183, %v4696, 0
      %v5203 = vsel %vm5184, %v4697, 0
      %v5204 = vsel %vm5185, %v4698, 0
      %v5205 = vsel %vm5186, %v4699, 0
      %v5206 = vsel %vm5187, %v4700, 0
      %v5207 = vsel %vm5188, %v4701, 0
      %v5208 = vsel %vm5189, %v4702, 0
      %vm5209 = vsmask.f32 7424
      %v5211 = vshrl.u32 %v4684, 16
      %v5213 = vshll.u32 %v4684, 16
      %v5215 = vrot.slane %v5213, 1
      %v5216 = vor.u32 %v5211, %v5215
      %v5218 = vshll.u32 %v4685, 16
      %v5220 = vrot.slane %v5218, 1
      %v5221 = vsel %vm5209, %v5216, %v5220
      %v5222 = vshrl.u32 %v4685, 16
      %v5224 = vor.u32 %v5222, %v5220
      %v5226 = vshll.u32 %v4686, 16
      %v5228 = vrot.slane %v5226, 1
      %v5229 = vsel %vm5209, %v5224, %v5228
      %v5230 = vshrl.u32 %v4686, 16
      %v5232 = vor.u32 %v5230, %v5228
      %v5234 = vshll.u32 %v4687, 16
      %v5236 = vrot.slane %v5234, 1
      %v5237 = vsel %vm5209, %v5232, %v5236
      %v5238 = vshrl.u32 %v4687, 16
      %v5240 = vor.u32 %v5238, %v5236
      %v5242 = vshll.u32 %v4688, 16
      %v5244 = vrot.slane %v5242, 1
      %v5245 = vsel %vm5209, %v5240, %v5244
      %v5246 = vshrl.u32 %v4688, 16
      %v5248 = vor.u32 %v5246, %v5244
      %v5250 = vshll.u32 %v4689, 16
      %v5252 = vrot.slane %v5250, 1
      %v5253 = vsel %vm5209, %v5248, %v5252
      %v5254 = vshrl.u32 %v4689, 16
      %v5256 = vor.u32 %v5254, %v5252
      %v5258 = vshll.u32 %v4690, 16
      %v5260 = vrot.slane %v5258, 1
      %v5261 = vsel %vm5209, %v5256, %v5260
      %v5262 = vshrl.u32 %v4690, 16
      %v5264 = vor.u32 %v5262, %v5260
      %v5266 = vshll.u32 %v4691, 16
      %v5268 = vrot.slane %v5266, 1
      %v5269 = vsel %vm5209, %v5264, %v5268
      %v5270 = vshrl.u32 %v4691, 16
      %v5272 = vor.u32 %v5270, %v5268
      %v5274 = vshll.u32 %v4692, 16
      %v5276 = vrot.slane %v5274, 1
      %v5277 = vsel %vm5209, %v5272, %v5276
      %v5278 = vshrl.u32 %v4692, 16
      %v5280 = vor.u32 %v5278, %v5276
      %v5282 = vshll.u32 %v4693, 16
      %v5284 = vrot.slane %v5282, 1
      %v5285 = vsel %vm5209, %v5280, %v5284
      %v5286 = vshrl.u32 %v4693, 16
      %v5288 = vor.u32 %v5286, %v5284
      %v5290 = vshll.u32 %v4694, 16
      %v5292 = vrot.slane %v5290, 1
      %v5293 = vsel %vm5209, %v5288, %v5292
      %v5294 = vshrl.u32 %v4694, 16
      %v5296 = vor.u32 %v5294, %v5292
      %v5298 = vshll.u32 %v4695, 16
      %v5300 = vrot.slane %v5298, 1
      %v5301 = vsel %vm5209, %v5296, %v5300
      %v5302 = vshrl.u32 %v4695, 16
      %v5304 = vor.u32 %v5302, %v5300
      %v5306 = vshll.u32 %v4696, 16
      %v5308 = vrot.slane %v5306, 1
      %v5309 = vsel %vm5209, %v5304, %v5308
      %v5310 = vshrl.u32 %v4696, 16
      %v5312 = vor.u32 %v5310, %v5308
      %v5314 = vshll.u32 %v4697, 16
      %v5316 = vrot.slane %v5314, 1
      %v5317 = vsel %vm5209, %v5312, %v5316
      %v5318 = vshrl.u32 %v4697, 16
      %v5320 = vor.u32 %v5318, %v5316
      %v5322 = vshll.u32 %v4698, 16
      %v5324 = vrot.slane %v5322, 1
      %v5325 = vsel %vm5209, %v5320, %v5324
      %v5326 = vshrl.u32 %v4698, 16
      %v5328 = vor.u32 %v5326, %v5324
      %v5330 = vshll.u32 %v4699, 16
      %v5332 = vrot.slane %v5330, 1
      %v5333 = vsel %vm5209, %v5328, %v5332
      %v5334 = vshrl.u32 %v4699, 16
      %v5336 = vor.u32 %v5334, %v5332
      %v5338 = vshll.u32 %v4700, 16
      %v5340 = vrot.slane %v5338, 1
      %v5341 = vsel %vm5209, %v5336, %v5340
      %v5342 = vshrl.u32 %v4700, 16
      %v5344 = vor.u32 %v5342, %v5340
      %5345 = vrot.lane.b32.xlu0 %v5221, 32
      %v5346 = vpop.permute.xlu0 %5345
      %5347 = vrot.lane.b32.xlu0 %v5229, 32
      %v5348 = vpop.permute.xlu0 %5347
      %5349 = vrot.lane.b32.xlu0 %v5237, 32
      %v5350 = vpop.permute.xlu0 %5349
      %5351 = vrot.lane.b32.xlu0 %v5245, 32
      %v5352 = vpop.permute.xlu0 %5351
      %5353 = vrot.lane.b32.xlu0 %v5253, 32
      %v5354 = vpop.permute.xlu0 %5353
      %5355 = vrot.lane.b32.xlu0 %v5261, 32
      %v5356 = vpop.permute.xlu0 %5355
      %5357 = vrot.lane.b32.xlu0 %v5269, 32
      %v5358 = vpop.permute.xlu0 %5357
      %5359 = vrot.lane.b32.xlu0 %v5277, 32
      %v5360 = vpop.permute.xlu0 %5359
      %5361 = vrot.lane.b32.xlu0 %v5285, 32
      %v5362 = vpop.permute.xlu0 %5361
      %5363 = vrot.lane.b32.xlu0 %v5293, 32
      %v5364 = vpop.permute.xlu0 %5363
      %5365 = vrot.lane.b32.xlu0 %v5301, 32
      %v5366 = vpop.permute.xlu0 %5365
      %5367 = vrot.lane.b32.xlu0 %v5309, 32
      %v5368 = vpop.permute.xlu0 %5367
      %5369 = vrot.lane.b32.xlu0 %v5317, 32
      %v5370 = vpop.permute.xlu0 %5369
      %5371 = vrot.lane.b32.xlu0 %v5325, 32
      %v5372 = vpop.permute.xlu0 %5371
      %5373 = vrot.lane.b32.xlu0 %v5333, 32
      %v5374 = vpop.permute.xlu0 %5373
      %5375 = vrot.lane.b32.xlu0 %v5341, 32
      %v5376 = vpop.permute.xlu0 %5375
      %5377 = vrot.lane.b32.xlu0 %v5344, 32
      %v5378 = vpop.permute.xlu0 %5377
      %vm5396 = vcmask 1046528
      %v5397 = vrot.slane %v5190, 1
      %v5398 = vrot.slane %v5191, 1
      %v5399 = vsel %vm5396, %v5397, %v5398
      %v5400 = vrot.slane %v5192, 1
      %v5401 = vsel %vm5396, %v5398, %v5400
      %v5402 = vrot.slane %v5193, 1
      %v5403 = vsel %vm5396, %v5400, %v5402
      %v5404 = vrot.slane %v5194, 1
      %v5405 = vsel %vm5396, %v5402, %v5404
      %v5406 = vrot.slane %v5195, 1
      %v5407 = vsel %vm5396, %v5404, %v5406
      %v5408 = vrot.slane %v5196, 1
      %v5409 = vsel %vm5396, %v5406, %v5408
      %v5410 = vrot.slane %v5197, 1
      %v5411 = vsel %vm5396, %v5408, %v5410
      %v5412 = vrot.slane %v5198, 1
      %v5413 = vsel %vm5396, %v5410, %v5412
      %v5414 = vrot.slane %v5199, 1
      %v5415 = vsel %vm5396, %v5412, %v5414
      %v5416 = vrot.slane %v5200, 1
      %v5417 = vsel %vm5396, %v5414, %v5416
      %v5418 = vrot.slane %v5201, 1
      %v5419 = vsel %vm5396, %v5416, %v5418
      %v5420 = vrot.slane %v5202, 1
      %v5421 = vsel %vm5396, %v5418, %v5420
      %v5422 = vrot.slane %v5203, 1
      %v5423 = vsel %vm5396, %v5420, %v5422
      %v5424 = vrot.slane %v5204, 1
      %v5425 = vsel %vm5396, %v5422, %v5424
      %v5426 = vrot.slane %v5205, 1
      %v5427 = vsel %vm5396, %v5424, %v5426
      %v5428 = vrot.slane %v5206, 1
      %v5429 = vsel %vm5396, %v5426, %v5428
      %5430 = vrot.lane.b32.xlu0 %v5399, 64
      %v5431 = vpop.permute.xlu0 %5430
      %5432 = vrot.lane.b32.xlu0 %v5401, 64
      %v5433 = vpop.permute.xlu0 %5432
      %5434 = vrot.lane.b32.xlu0 %v5403, 64
      %v5435 = vpop.permute.xlu0 %5434
      %5436 = vrot.lane.b32.xlu0 %v5405, 64
      %v5437 = vpop.permute.xlu0 %5436
      %5438 = vrot.lane.b32.xlu0 %v5407, 64
      %v5439 = vpop.permute.xlu0 %5438
      %5440 = vrot.lane.b32.xlu0 %v5409, 64
      %v5441 = vpop.permute.xlu0 %5440
      %5442 = vrot.lane.b32.xlu0 %v5411, 64
      %v5443 = vpop.permute.xlu0 %5442
      %5444 = vrot.lane.b32.xlu0 %v5413, 64
      %v5445 = vpop.permute.xlu0 %5444
      %5446 = vrot.lane.b32.xlu0 %v5415, 64
      %v5447 = vpop.permute.xlu0 %5446
      %5448 = vrot.lane.b32.xlu0 %v5417, 64
      %v5449 = vpop.permute.xlu0 %5448
      %5450 = vrot.lane.b32.xlu0 %v5419, 64
      %v5451 = vpop.permute.xlu0 %5450
      %5452 = vrot.lane.b32.xlu0 %v5421, 64
      %v5453 = vpop.permute.xlu0 %5452
      %5454 = vrot.lane.b32.xlu0 %v5423, 64
      %v5455 = vpop.permute.xlu0 %5454
      %5456 = vrot.lane.b32.xlu0 %v5425, 64
      %v5457 = vpop.permute.xlu0 %5456
      %5458 = vrot.lane.b32.xlu0 %v5427, 64
      %v5459 = vpop.permute.xlu0 %5458
      %5460 = vrot.lane.b32.xlu0 %v5429, 64
      %v5461 = vpop.permute.xlu0 %5460
      %5462 = vrot.lane.b32.xlu0 %v5428, 64
      %v5463 = vpop.permute.xlu0 %5462
      %5481 = vrot.lane.b32.xlu0 %v4938, 96
      %v5482 = vpop.permute.xlu0 %5481
      %5483 = vrot.lane.b32.xlu0 %v4939, 96
      %v5484 = vpop.permute.xlu0 %5483
      %5485 = vrot.lane.b32.xlu0 %v4940, 96
      %v5486 = vpop.permute.xlu0 %5485
      %5487 = vrot.lane.b32.xlu0 %v4941, 96
      %v5488 = vpop.permute.xlu0 %5487
      %5489 = vrot.lane.b32.xlu0 %v4942, 96
      %v5490 = vpop.permute.xlu0 %5489
      %5491 = vrot.lane.b32.xlu0 %v4943, 96
      %v5492 = vpop.permute.xlu0 %5491
      %5493 = vrot.lane.b32.xlu0 %v4944, 96
      %v5494 = vpop.permute.xlu0 %5493
      %5495 = vrot.lane.b32.xlu0 %v4945, 96
      %v5496 = vpop.permute.xlu0 %5495
      %5497 = vrot.lane.b32.xlu0 %v4946, 96
      %v5498 = vpop.permute.xlu0 %5497
      %5499 = vrot.lane.b32.xlu0 %v4947, 96
      %v5500 = vpop.permute.xlu0 %5499
      %5501 = vrot.lane.b32.xlu0 %v4948, 96
      %v5502 = vpop.permute.xlu0 %5501
      %5503 = vrot.lane.b32.xlu0 %v4949, 96
      %v5504 = vpop.permute.xlu0 %5503
      %5505 = vrot.lane.b32.xlu0 %v4950, 96
      %v5506 = vpop.permute.xlu0 %5505
      %5507 = vrot.lane.b32.xlu0 %v4951, 96
      %v5508 = vpop.permute.xlu0 %5507
      %5509 = vrot.lane.b32.xlu0 %v4952, 96
      %v5510 = vpop.permute.xlu0 %5509
      %5511 = vrot.lane.b32.xlu0 %v4953, 96
      %v5512 = vpop.permute.xlu0 %5511
      %5513 = vrot.lane.b32.xlu0 %v4954, 96
      %v5514 = vpop.permute.xlu0 %5513
      %v5516 = vshll.u32 %v4701, 16
      %v5518 = vrot.slane %v5516, 1
      %v5519 = vsel %vm5209, %v5344, %v5518
      %v5520 = vshrl.u32 %v4701, 16
      %v5522 = vor.u32 %v5520, %v5518
      %v5524 = vrot.slane %v5207, 1
      %v5525 = vsel %vm5396, %v5428, %v5524
      %5526 = vrot.lane.b32.xlu0 %v5401, 32
      %v5527 = vpop.permute.xlu0 %5526
      %5528 = vrot.lane.b32.xlu0 %v5403, 32
      %v5529 = vpop.permute.xlu0 %5528
      %5530 = vrot.lane.b32.xlu0 %v5405, 32
      %v5531 = vpop.permute.xlu0 %5530
      %5532 = vrot.lane.b32.xlu0 %v5407, 32
      %v5533 = vpop.permute.xlu0 %5532
      %5534 = vrot.lane.b32.xlu0 %v5409, 32
      %v5535 = vpop.permute.xlu0 %5534
      %5536 = vrot.lane.b32.xlu0 %v5411, 32
      %v5537 = vpop.permute.xlu0 %5536
      %5538 = vrot.lane.b32.xlu0 %v5413, 32
      %v5539 = vpop.permute.xlu0 %5538
      %5540 = vrot.lane.b32.xlu0 %v5415, 32
      %v5541 = vpop.permute.xlu0 %5540
      %5542 = vrot.lane.b32.xlu0 %v5417, 32
      %v5543 = vpop.permute.xlu0 %5542
      %5544 = vrot.lane.b32.xlu0 %v5419, 32
      %v5545 = vpop.permute.xlu0 %5544
      %5546 = vrot.lane.b32.xlu0 %v5421, 32
      %v5547 = vpop.permute.xlu0 %5546
      %5548 = vrot.lane.b32.xlu0 %v5423, 32
      %v5549 = vpop.permute.xlu0 %5548
      %5550 = vrot.lane.b32.xlu0 %v5425, 32
      %v5551 = vpop.permute.xlu0 %5550
      %5552 = vrot.lane.b32.xlu0 %v5427, 32
      %v5553 = vpop.permute.xlu0 %5552
      %5554 = vrot.lane.b32.xlu0 %v5429, 32
      %v5555 = vpop.permute.xlu0 %5554
      %5556 = vrot.lane.b32.xlu0 %v5525, 32
      %v5557 = vpop.permute.xlu0 %5556
      %5558 = vrot.lane.b32.xlu0 %v5524, 32
      %v5559 = vpop.permute.xlu0 %5558
      %5561 = vrot.lane.b32.xlu0 %v4939, 64
      %v5562 = vpop.permute.xlu0 %5561
      %5563 = vrot.lane.b32.xlu0 %v4940, 64
      %v5564 = vpop.permute.xlu0 %5563
      %5565 = vrot.lane.b32.xlu0 %v4941, 64
      %v5566 = vpop.permute.xlu0 %5565
      %5567 = vrot.lane.b32.xlu0 %v4942, 64
      %v5568 = vpop.permute.xlu0 %5567
      %5569 = vrot.lane.b32.xlu0 %v4943, 64
      %v5570 = vpop.permute.xlu0 %5569
      %5571 = vrot.lane.b32.xlu0 %v4944, 64
      %v5572 = vpop.permute.xlu0 %5571
      %5573 = vrot.lane.b32.xlu0 %v4945, 64
      %v5574 = vpop.permute.xlu0 %5573
      %5575 = vrot.lane.b32.xlu0 %v4946, 64
      %v5576 = vpop.permute.xlu0 %5575
      %5577 = vrot.lane.b32.xlu0 %v4947, 64
      %v5578 = vpop.permute.xlu0 %5577
      %5579 = vrot.lane.b32.xlu0 %v4948, 64
      %v5580 = vpop.permute.xlu0 %5579
      %5581 = vrot.lane.b32.xlu0 %v4949, 64
      %v5582 = vpop.permute.xlu0 %5581
      %5583 = vrot.lane.b32.xlu0 %v4950, 64
      %v5584 = vpop.permute.xlu0 %5583
      %5585 = vrot.lane.b32.xlu0 %v4951, 64
      %v5586 = vpop.permute.xlu0 %5585
      %5587 = vrot.lane.b32.xlu0 %v4952, 64
      %v5588 = vpop.permute.xlu0 %5587
      %5589 = vrot.lane.b32.xlu0 %v4953, 64
      %v5590 = vpop.permute.xlu0 %5589
      %5591 = vrot.lane.b32.xlu0 %v4954, 64
      %v5592 = vpop.permute.xlu0 %5591
      %5593 = vrot.lane.b32.xlu0 %v4955, 64
      %v5594 = vpop.permute.xlu0 %5593
      %v5596 = vshll.u32 %v4702, 16
      %v5598 = vrot.slane %v5596, 1
      %v5599 = vsel %vm5209, %v5522, %v5598
      %v5600 = vshrl.u32 %v4702, 16
      %v5602 = vor.u32 %v5600, %v5598
      %5603 = vrot.lane.b32.xlu0 %v5237, 96
      %v5604 = vpop.permute.xlu0 %5603
      %5605 = vrot.lane.b32.xlu0 %v5245, 96
      %v5606 = vpop.permute.xlu0 %5605
      %5607 = vrot.lane.b32.xlu0 %v5253, 96
      %v5608 = vpop.permute.xlu0 %5607
      %5609 = vrot.lane.b32.xlu0 %v5261, 96
      %v5610 = vpop.permute.xlu0 %5609
      %5611 = vrot.lane.b32.xlu0 %v5269, 96
      %v5612 = vpop.permute.xlu0 %5611
      %5613 = vrot.lane.b32.xlu0 %v5277, 96
      %v5614 = vpop.permute.xlu0 %5613
      %5615 = vrot.lane.b32.xlu0 %v5285, 96
      %v5616 = vpop.permute.xlu0 %5615
      %5617 = vrot.lane.b32.xlu0 %v5293, 96
      %v5618 = vpop.permute.xlu0 %5617
      %5619 = vrot.lane.b32.xlu0 %v5301, 96
      %v5620 = vpop.permute.xlu0 %5619
      %5621 = vrot.lane.b32.xlu0 %v5309, 96
      %v5622 = vpop.permute.xlu0 %5621
      %5623 = vrot.lane.b32.xlu0 %v5317, 96
      %v5624 = vpop.permute.xlu0 %5623
      %5625 = vrot.lane.b32.xlu0 %v5325, 96
      %v5626 = vpop.permute.xlu0 %5625
      %5627 = vrot.lane.b32.xlu0 %v5333, 96
      %v5628 = vpop.permute.xlu0 %5627
      %5629 = vrot.lane.b32.xlu0 %v5341, 96
      %v5630 = vpop.permute.xlu0 %5629
      %5631 = vrot.lane.b32.xlu0 %v5519, 96
      %v5632 = vpop.permute.xlu0 %5631
      %5633 = vrot.lane.b32.xlu0 %v5599, 96
      %v5634 = vpop.permute.xlu0 %5633
      %5635 = vrot.lane.b32.xlu0 %v5602, 96
      %v5636 = vpop.permute.xlu0 %5635
      %v5638 = vrot.slane %v5208, 1
      %v5639 = vsel %vm5396, %v5524, %v5638
      %v5642 = vsel %vm488, %v4937, %v5346
      %v5645 = vsel %vm488, %v4938, %v5348
      %v5648 = vsel %vm488, %v4939, %v5350
      %v5651 = vsel %vm488, %v4940, %v5352
      %v5654 = vsel %vm488, %v4941, %v5354
      %v5657 = vsel %vm488, %v4942, %v5356
      %v5660 = vsel %vm488, %v4943, %v5358
      %v5663 = vsel %vm488, %v4944, %v5360
      %v5666 = vsel %vm488, %v4945, %v5362
      %v5669 = vsel %vm488, %v4946, %v5364
      %v5672 = vsel %vm488, %v4947, %v5366
      %v5675 = vsel %vm488, %v4948, %v5368
      %v5678 = vsel %vm488, %v4949, %v5370
      %v5681 = vsel %vm488, %v4950, %v5372
      %v5684 = vsel %vm488, %v4951, %v5374
      %v5687 = vsel %vm488, %v4952, %v5376
      %v5690 = vsel %vm488, %v4953, %v5378
      %v5692 = vsel %vm2672, %v5642, %v5431
      %v5694 = vsel %vm2672, %v5645, %v5433
      %v5696 = vsel %vm2672, %v5648, %v5435
      %v5698 = vsel %vm2672, %v5651, %v5437
      %v5700 = vsel %vm2672, %v5654, %v5439
      %v5702 = vsel %vm2672, %v5657, %v5441
      %v5704 = vsel %vm2672, %v5660, %v5443
      %v5706 = vsel %vm2672, %v5663, %v5445
      %v5708 = vsel %vm2672, %v5666, %v5447
      %v5710 = vsel %vm2672, %v5669, %v5449
      %v5712 = vsel %vm2672, %v5672, %v5451
      %v5714 = vsel %vm2672, %v5675, %v5453
      %v5716 = vsel %vm2672, %v5678, %v5455
      %v5718 = vsel %vm2672, %v5681, %v5457
      %v5720 = vsel %vm2672, %v5684, %v5459
      %v5722 = vsel %vm2672, %v5687, %v5461
      %v5724 = vsel %vm2672, %v5690, %v5463
      %vm5725 = vcmask 785408
      %v5727 = vsel %vm5725, %v5692, %v5482
      %v5729 = vsel %vm5725, %v5694, %v5484
      %v5731 = vsel %vm5725, %v5696, %v5486
      %v5733 = vsel %vm5725, %v5698, %v5488
      %v5735 = vsel %vm5725, %v5700, %v5490
      %v5737 = vsel %vm5725, %v5702, %v5492
      %v5739 = vsel %vm5725, %v5704, %v5494
      %v5741 = vsel %vm5725, %v5706, %v5496
      %v5743 = vsel %vm5725, %v5708, %v5498
      %v5745 = vsel %vm5725, %v5710, %v5500
      %v5747 = vsel %vm5725, %v5712, %v5502
      %v5749 = vsel %vm5725, %v5714, %v5504
      %v5751 = vsel %vm5725, %v5716, %v5506
      %v5753 = vsel %vm5725, %v5718, %v5508
      %v5755 = vsel %vm5725, %v5720, %v5510
      %v5757 = vsel %vm5725, %v5722, %v5512
      %v5759 = vsel %vm5725, %v5724, %v5514
      %v5762 = vsel %vm488, %v5229, %v5527
      %v5765 = vsel %vm488, %v5237, %v5529
      %v5768 = vsel %vm488, %v5245, %v5531
      %v5771 = vsel %vm488, %v5253, %v5533
      %v5774 = vsel %vm488, %v5261, %v5535
      %v5777 = vsel %vm488, %v5269, %v5537
      %v5780 = vsel %vm488, %v5277, %v5539
      %v5783 = vsel %vm488, %v5285, %v5541
      %v5786 = vsel %vm488, %v5293, %v5543
      %v5789 = vsel %vm488, %v5301, %v5545
      %v5792 = vsel %vm488, %v5309, %v5547
      %v5795 = vsel %vm488, %v5317, %v5549
      %v5798 = vsel %vm488, %v5325, %v5551
      %v5801 = vsel %vm488, %v5333, %v5553
      %v5804 = vsel %vm488, %v5341, %v5555
      %v5807 = vsel %vm488, %v5519, %v5557
      %v5810 = vsel %vm488, %v5522, %v5559
      %v5812 = vsel %vm2672, %v5762, %v5562
      %v5814 = vsel %vm2672, %v5765, %v5564
      %v5816 = vsel %vm2672, %v5768, %v5566
      %v5818 = vsel %vm2672, %v5771, %v5568
      %v5820 = vsel %vm2672, %v5774, %v5570
      %v5822 = vsel %vm2672, %v5777, %v5572
      %v5824 = vsel %vm2672, %v5780, %v5574
      %v5826 = vsel %vm2672, %v5783, %v5576
      %v5828 = vsel %vm2672, %v5786, %v5578
      %v5830 = vsel %vm2672, %v5789, %v5580
      %v5832 = vsel %vm2672, %v5792, %v5582
      %v5834 = vsel %vm2672, %v5795, %v5584
      %v5836 = vsel %vm2672, %v5798, %v5586
      %v5838 = vsel %vm2672, %v5801, %v5588
      %v5840 = vsel %vm2672, %v5804, %v5590
      %v5842 = vsel %vm2672, %v5807, %v5592
      %v5844 = vsel %vm2672, %v5810, %v5594
      %v5846 = vsel %vm5725, %v5812, %v5604
      %v5848 = vsel %vm5725, %v5814, %v5606
      %v5850 = vsel %vm5725, %v5816, %v5608
      %v5852 = vsel %vm5725, %v5818, %v5610
      %v5854 = vsel %vm5725, %v5820, %v5612
      %v5856 = vsel %vm5725, %v5822, %v5614
      %v5858 = vsel %vm5725, %v5824, %v5616
      %v5860 = vsel %vm5725, %v5826, %v5618
      %v5862 = vsel %vm5725, %v5828, %v5620
      %v5864 = vsel %vm5725, %v5830, %v5622
      %v5866 = vsel %vm5725, %v5832, %v5624
      %v5868 = vsel %vm5725, %v5834, %v5626
      %v5870 = vsel %vm5725, %v5836, %v5628
      %v5872 = vsel %vm5725, %v5838, %v5630
      %v5874 = vsel %vm5725, %v5840, %v5632
      %v5876 = vsel %vm5725, %v5842, %v5634
      %v5878 = vsel %vm5725, %v5844, %v5636
      %v5879 = vld [vmem:[%s7] sm:$0xf]
      %v5880 = vld [vmem:[%s7 + $0x4] sm:$0xf]
      %v5881 = vld [vmem:[%s7 + $0x8] sm:$0xf]
      %v5882 = vld [vmem:[%s7 + $0xc] sm:$0xf]
      %v5883 = vld [vmem:[%s7 + $0x10] sm:$0xf]
      %v5884 = vld [vmem:[%s7 + $0x14] sm:$0xf]
      %v5885 = vld [vmem:[%s7 + $0x18] sm:$0xf]
      %v5886 = vld [vmem:[%s7 + $0x1c] sm:$0xf]
      %v5887 = vld [vmem:[%s7 + $0x20] sm:$0xf]
      %v5888 = vld [vmem:[%s7 + $0x24] sm:$0xf]
      %v5889 = vld [vmem:[%s7 + $0x28] sm:$0xf]
      %v5890 = vld [vmem:[%s7 + $0x2c] sm:$0xf]
      %v5891 = vld [vmem:[%s7 + $0x30] sm:$0xf]
      %v5892 = vld [vmem:[%s7 + $0x34] sm:$0xf]
      %v5893 = vld [vmem:[%s7 + $0x38] sm:$0xf]
      %v5894 = vld [vmem:[%s7 + $0x3c] sm:$0xf]
      %v5895 = vld [vmem:[%s7 + $0x40] sm:$0xf]
      %v5896 = vld [vmem:[%s7 + $0x44] sm:$0xf]
      %v5897 = vld [vmem:[%s7 + $0x48] sm:$0xf]
      %v5898 = vld [vmem:[%s7 + $0x4c] sm:$0xf]
      %v5899 = vld [vmem:[%s7 + $0x50] sm:$0xf]
      %v5900 = vld [vmem:[%s7 + $0x54] sm:$0xf]
      %v5901 = vld [vmem:[%s7 + $0x58] sm:$0xf]
      %v5902 = vld [vmem:[%s7 + $0x5c] sm:$0xf]
      %v5903 = vld [vmem:[%s7 + $0x60] sm:$0xf]
      %v5904 = vld [vmem:[%s7 + $0x64] sm:$0xf]
      %v5905 = vld [vmem:[%s7 + $0x68] sm:$0xf]
      %v5906 = vld [vmem:[%s7 + $0x6c] sm:$0xf]
      %v5907 = vld [vmem:[%s7 + $0x70] sm:$0xf]
      %v5908 = vld [vmem:[%s7 + $0x74] sm:$0xf]
      %v5909 = vld [vmem:[%s7 + $0x78] sm:$0xf]
      %v5910 = vld [vmem:[%s7 + $0x7c] sm:$0xf]
      %v5911 = vld [vmem:[%s7 + $0x80] sm:$0xf]
      %v5912 = vld [vmem:[%s7 + $0x84] sm:$0xf]
      %v5913 = vld [vmem:[%s7 + $0x88] sm:$0xf]
      %v5914 = vld [vmem:[%s7 + $0x8c] sm:$0xf]
      %v5915 = vld [vmem:[%s8] sm:$0x1]
      %v5917 = vlaneseq
      %v5918 = vshrl.u32 %v5917, 7
      %v5919 = vsub.s32 0, %v5918
      %v5920 = vrot.slane %v5915, %v5919
      %v5922 = vshrl.u32 %v5727, 16
      %v5924 = vrot.slane %v5922, 3
      %v5925 = vshll.u32 %v5727, 16
      %v5927 = vrot.slane %v5925, 4
      %v5928 = vor.u32 %v5924, %v5927
      %v5929 = vshrl.u32 %v5729, 16
      %v5931 = vrot.slane %v5929, 3
      %v5932 = vshll.u32 %v5729, 16
      %v5934 = vrot.slane %v5932, 4
      %v5935 = vor.u32 %v5931, %v5934
      %v5936 = vsel %vm2723, %v5928, %v5935
      %v5937 = vshrl.u32 %v5846, 16
      %v5939 = vrot.slane %v5937, 3
      %v5940 = vshll.u32 %v5846, 16
      %v5942 = vrot.slane %v5940, 4
      %v5943 = vor.u32 %v5939, %v5942
      %v5944 = vshrl.u32 %v5848, 16
      %v5946 = vrot.slane %v5944, 3
      %v5947 = vshll.u32 %v5848, 16
      %v5949 = vrot.slane %v5947, 4
      %v5950 = vor.u32 %v5946, %v5949
      %v5951 = vsel %vm2723, %v5943, %v5950
      %v5953 = vshrl.u32 %v5403, 16
      %v5955 = vrot.slane %v5953, 3
      %v5956 = vshll.u32 %v5403, 16
      %v5958 = vrot.slane %v5956, 4
      %v5959 = vor.u32 %v5955, %v5958
      %v5961 = vshrl.u32 %v5405, 16
      %v5963 = vrot.slane %v5961, 3
      %v5964 = vshll.u32 %v5405, 16
      %v5966 = vrot.slane %v5964, 4
      %v5967 = vor.u32 %v5963, %v5966
      %v5968 = vsel %vm2723, %v5959, %v5967
      %v5969 = vshrl.u32 %v5731, 16
      %v5971 = vrot.slane %v5969, 3
      %v5972 = vshll.u32 %v5731, 16
      %v5974 = vrot.slane %v5972, 4
      %v5975 = vor.u32 %v5971, %v5974
      %v5976 = vsel %vm2723, %v5935, %v5975
      %v5977 = vshrl.u32 %v5850, 16
      %v5979 = vrot.slane %v5977, 3
      %v5980 = vshll.u32 %v5850, 16
      %v5982 = vrot.slane %v5980, 4
      %v5983 = vor.u32 %v5979, %v5982
      %v5984 = vsel %vm2723, %v5950, %v5983
      %v5986 = vshrl.u32 %v5407, 16
      %v5988 = vrot.slane %v5986, 3
      %v5989 = vshll.u32 %v5407, 16
      %v5991 = vrot.slane %v5989, 4
      %v5992 = vor.u32 %v5988, %v5991
      %v5993 = vsel %vm2723, %v5967, %v5992
      %v5994 = vshrl.u32 %v5733, 16
      %v5996 = vrot.slane %v5994, 3
      %v5997 = vshll.u32 %v5733, 16
      %v5999 = vrot.slane %v5997, 4
      %v6000 = vor.u32 %v5996, %v5999
      %v6001 = vsel %vm2723, %v5975, %v6000
      %v6002 = vshrl.u32 %v5852, 16
      %v6004 = vrot.slane %v6002, 3
      %v6005 = vshll.u32 %v5852, 16
      %v6007 = vrot.slane %v6005, 4
      %v6008 = vor.u32 %v6004, %v6007
      %v6009 = vsel %vm2723, %v5983, %v6008
      %v6011 = vshrl.u32 %v5409, 16
      %v6013 = vrot.slane %v6011, 3
      %v6014 = vshll.u32 %v5409, 16
      %v6016 = vrot.slane %v6014, 4
      %v6017 = vor.u32 %v6013, %v6016
      %v6018 = vsel %vm2723, %v5992, %v6017
      %v6019 = vshrl.u32 %v5735, 16
      %v6021 = vrot.slane %v6019, 3
      %v6022 = vshll.u32 %v5735, 16
      %v6024 = vrot.slane %v6022, 4
      %v6025 = vor.u32 %v6021, %v6024
      %v6026 = vsel %vm2723, %v6000, %v6025
      %v6027 = vshrl.u32 %v5854, 16
      %v6029 = vrot.slane %v6027, 3
      %v6030 = vshll.u32 %v5854, 16
      %v6032 = vrot.slane %v6030, 4
      %v6033 = vor.u32 %v6029, %v6032
      %v6034 = vsel %vm2723, %v6008, %v6033
      %v6036 = vshrl.u32 %v5411, 16
      %v6038 = vrot.slane %v6036, 3
      %v6039 = vshll.u32 %v5411, 16
      %v6041 = vrot.slane %v6039, 4
      %v6042 = vor.u32 %v6038, %v6041
      %v6043 = vsel %vm2723, %v6017, %v6042
      %v6044 = vshrl.u32 %v5737, 16
      %v6046 = vrot.slane %v6044, 3
      %v6047 = vshll.u32 %v5737, 16
      %v6049 = vrot.slane %v6047, 4
      %v6050 = vor.u32 %v6046, %v6049
      %v6051 = vsel %vm2723, %v6025, %v6050
      %v6052 = vshrl.u32 %v5856, 16
      %v6054 = vrot.slane %v6052, 3
      %v6055 = vshll.u32 %v5856, 16
      %v6057 = vrot.slane %v6055, 4
      %v6058 = vor.u32 %v6054, %v6057
      %v6059 = vsel %vm2723, %v6033, %v6058
      %v6061 = vshrl.u32 %v5413, 16
      %v6063 = vrot.slane %v6061, 3
      %v6064 = vshll.u32 %v5413, 16
      %v6066 = vrot.slane %v6064, 4
      %v6067 = vor.u32 %v6063, %v6066
      %v6068 = vsel %vm2723, %v6042, %v6067
      %v6069 = vshrl.u32 %v5739, 16
      %v6071 = vrot.slane %v6069, 3
      %v6072 = vshll.u32 %v5739, 16
      %v6074 = vrot.slane %v6072, 4
      %v6075 = vor.u32 %v6071, %v6074
      %v6076 = vsel %vm2723, %v6050, %v6075
      %v6077 = vshrl.u32 %v5858, 16
      %v6079 = vrot.slane %v6077, 3
      %v6080 = vshll.u32 %v5858, 16
      %v6082 = vrot.slane %v6080, 4
      %v6083 = vor.u32 %v6079, %v6082
      %v6084 = vsel %vm2723, %v6058, %v6083
      %v6086 = vshrl.u32 %v5415, 16
      %v6088 = vrot.slane %v6086, 3
      %v6089 = vshll.u32 %v5415, 16
      %v6091 = vrot.slane %v6089, 4
      %v6092 = vor.u32 %v6088, %v6091
      %v6093 = vsel %vm2723, %v6067, %v6092
      %v6094 = vshrl.u32 %v5741, 16
      %v6096 = vrot.slane %v6094, 3
      %v6097 = vshll.u32 %v5741, 16
      %v6099 = vrot.slane %v6097, 4
      %v6100 = vor.u32 %v6096, %v6099
      %v6101 = vsel %vm2723, %v6075, %v6100
      %v6102 = vshrl.u32 %v5860, 16
      %v6104 = vrot.slane %v6102, 3
      %v6105 = vshll.u32 %v5860, 16
      %v6107 = vrot.slane %v6105, 4
      %v6108 = vor.u32 %v6104, %v6107
      %v6109 = vsel %vm2723, %v6083, %v6108
      %v6111 = vshrl.u32 %v5417, 16
      %v6113 = vrot.slane %v6111, 3
      %v6114 = vshll.u32 %v5417, 16
      %v6116 = vrot.slane %v6114, 4
      %v6117 = vor.u32 %v6113, %v6116
      %v6118 = vsel %vm2723, %v6092, %v6117
      %v6119 = vshrl.u32 %v5743, 16
      %v6121 = vrot.slane %v6119, 3
      %v6122 = vshll.u32 %v5743, 16
      %v6124 = vrot.slane %v6122, 4
      %v6125 = vor.u32 %v6121, %v6124
      %v6126 = vsel %vm2723, %v6100, %v6125
      %v6127 = vshrl.u32 %v5862, 16
      %v6129 = vrot.slane %v6127, 3
      %v6130 = vshll.u32 %v5862, 16
      %v6132 = vrot.slane %v6130, 4
      %v6133 = vor.u32 %v6129, %v6132
      %v6134 = vsel %vm2723, %v6108, %v6133
      %v6136 = vshrl.u32 %v5419, 16
      %v6138 = vrot.slane %v6136, 3
      %v6139 = vshll.u32 %v5419, 16
      %v6141 = vrot.slane %v6139, 4
      %v6142 = vor.u32 %v6138, %v6141
      %v6143 = vsel %vm2723, %v6117, %v6142
      %v6144 = vshrl.u32 %v5745, 16
      %v6146 = vrot.slane %v6144, 3
      %v6147 = vshll.u32 %v5745, 16
      %v6149 = vrot.slane %v6147, 4
      %v6150 = vor.u32 %v6146, %v6149
      %v6151 = vsel %vm2723, %v6125, %v6150
      %v6152 = vshrl.u32 %v5864, 16
      %v6154 = vrot.slane %v6152, 3
      %v6155 = vshll.u32 %v5864, 16
      %v6157 = vrot.slane %v6155, 4
      %v6158 = vor.u32 %v6154, %v6157
      %v6159 = vsel %vm2723, %v6133, %v6158
      %v6161 = vshrl.u32 %v5421, 16
      %v6163 = vrot.slane %v6161, 3
      %v6164 = vshll.u32 %v5421, 16
      %v6166 = vrot.slane %v6164, 4
      %v6167 = vor.u32 %v6163, %v6166
      %v6168 = vsel %vm2723, %v6142, %v6167
      %v6169 = vshrl.u32 %v5747, 16
      %v6171 = vrot.slane %v6169, 3
      %v6172 = vshll.u32 %v5747, 16
      %v6174 = vrot.slane %v6172, 4
      %v6175 = vor.u32 %v6171, %v6174
      %v6176 = vsel %vm2723, %v6150, %v6175
      %v6177 = vshrl.u32 %v5866, 16
      %v6179 = vrot.slane %v6177, 3
      %v6180 = vshll.u32 %v5866, 16
      %v6182 = vrot.slane %v6180, 4
      %v6183 = vor.u32 %v6179, %v6182
      %v6184 = vsel %vm2723, %v6158, %v6183
      %v6186 = vshrl.u32 %v5423, 16
      %v6188 = vrot.slane %v6186, 3
      %v6189 = vshll.u32 %v5423, 16
      %v6191 = vrot.slane %v6189, 4
      %v6192 = vor.u32 %v6188, %v6191
      %v6193 = vsel %vm2723, %v6167, %v6192
      %v6194 = vshrl.u32 %v5749, 16
      %v6196 = vrot.slane %v6194, 3
      %v6197 = vshll.u32 %v5749, 16
      %v6199 = vrot.slane %v6197, 4
      %v6200 = vor.u32 %v6196, %v6199
      %v6201 = vsel %vm2723, %v6175, %v6200
      %v6202 = vshrl.u32 %v5868, 16
      %v6204 = vrot.slane %v6202, 3
      %v6205 = vshll.u32 %v5868, 16
      %v6207 = vrot.slane %v6205, 4
      %v6208 = vor.u32 %v6204, %v6207
      %v6209 = vsel %vm2723, %v6183, %v6208
      %v6211 = vshrl.u32 %v5425, 16
      %v6213 = vrot.slane %v6211, 3
      %v6214 = vshll.u32 %v5425, 16
      %v6216 = vrot.slane %v6214, 4
      %v6217 = vor.u32 %v6213, %v6216
      %v6218 = vsel %vm2723, %v6192, %v6217
      %v6219 = vshrl.u32 %v5751, 16
      %v6221 = vrot.slane %v6219, 3
      %v6222 = vshll.u32 %v5751, 16
      %v6224 = vrot.slane %v6222, 4
      %v6225 = vor.u32 %v6221, %v6224
      %v6226 = vsel %vm2723, %v6200, %v6225
      %v6227 = vshrl.u32 %v5870, 16
      %v6229 = vrot.slane %v6227, 3
      %v6230 = vshll.u32 %v5870, 16
      %v6232 = vrot.slane %v6230, 4
      %v6233 = vor.u32 %v6229, %v6232
      %v6234 = vsel %vm2723, %v6208, %v6233
      %v6236 = vshrl.u32 %v5427, 16
      %v6238 = vrot.slane %v6236, 3
      %v6239 = vshll.u32 %v5427, 16
      %v6241 = vrot.slane %v6239, 4
      %v6242 = vor.u32 %v6238, %v6241
      %v6243 = vsel %vm2723, %v6217, %v6242
      %v6244 = vshrl.u32 %v5753, 16
      %v6246 = vrot.slane %v6244, 3
      %v6247 = vshll.u32 %v5753, 16
      %v6249 = vrot.slane %v6247, 4
      %v6250 = vor.u32 %v6246, %v6249
      %v6251 = vsel %vm2723, %v6225, %v6250
      %v6252 = vshrl.u32 %v5872, 16
      %v6254 = vrot.slane %v6252, 3
      %v6255 = vshll.u32 %v5872, 16
      %v6257 = vrot.slane %v6255, 4
      %v6258 = vor.u32 %v6254, %v6257
      %v6259 = vsel %vm2723, %v6233, %v6258
      %v6261 = vshrl.u32 %v5429, 16
      %v6263 = vrot.slane %v6261, 3
      %v6264 = vshll.u32 %v5429, 16
      %v6266 = vrot.slane %v6264, 4
      %v6267 = vor.u32 %v6263, %v6266
      %v6268 = vsel %vm2723, %v6242, %v6267
      %v6269 = vshrl.u32 %v5755, 16
      %v6271 = vrot.slane %v6269, 3
      %v6272 = vshll.u32 %v5755, 16
      %v6274 = vrot.slane %v6272, 4
      %v6275 = vor.u32 %v6271, %v6274
      %v6276 = vsel %vm2723, %v6250, %v6275
      %v6277 = vshrl.u32 %v5874, 16
      %v6279 = vrot.slane %v6277, 3
      %v6280 = vshll.u32 %v5874, 16
      %v6282 = vrot.slane %v6280, 4
      %v6283 = vor.u32 %v6279, %v6282
      %v6284 = vsel %vm2723, %v6258, %v6283
      %v6286 = vshrl.u32 %v5525, 16
      %v6288 = vrot.slane %v6286, 3
      %v6289 = vshll.u32 %v5525, 16
      %v6291 = vrot.slane %v6289, 4
      %v6292 = vor.u32 %v6288, %v6291
      %v6293 = vsel %vm2723, %v6267, %v6292
      %v6294 = vshrl.u32 %v5757, 16
      %v6296 = vrot.slane %v6294, 3
      %v6297 = vshll.u32 %v5757, 16
      %v6299 = vrot.slane %v6297, 4
      %v6300 = vor.u32 %v6296, %v6299
      %v6301 = vsel %vm2723, %v6275, %v6300
      %v6302 = vshrl.u32 %v5876, 16
      %v6304 = vrot.slane %v6302, 3
      %v6305 = vshll.u32 %v5876, 16
      %v6307 = vrot.slane %v6305, 4
      %v6308 = vor.u32 %v6304, %v6307
      %v6309 = vsel %vm2723, %v6283, %v6308
      %v6311 = vshrl.u32 %v5639, 16
      %v6313 = vrot.slane %v6311, 3
      %v6314 = vshll.u32 %v5639, 16
      %v6316 = vrot.slane %v6314, 4
      %v6317 = vor.u32 %v6313, %v6316
      %v6318 = vsel %vm2723, %v6292, %v6317
      %v6319 = vshrl.u32 %v5759, 16
      %v6321 = vrot.slane %v6319, 3
      %v6322 = vshll.u32 %v5759, 16
      %v6324 = vrot.slane %v6322, 4
      %v6325 = vor.u32 %v6321, %v6324
      %v6326 = vsel %vm2723, %v6300, %v6325
      %v6327 = vshrl.u32 %v5878, 16
      %v6329 = vrot.slane %v6327, 3
      %v6330 = vshll.u32 %v5878, 16
      %v6332 = vrot.slane %v6330, 4
      %v6333 = vor.u32 %v6329, %v6332
      %v6334 = vsel %vm2723, %v6308, %v6333
      %v6336 = vshrl.u32 %v5638, 16
      %v6338 = vrot.slane %v6336, 3
      %v6339 = vshll.u32 %v5638, 16
      %v6341 = vrot.slane %v6339, 4
      %v6342 = vor.u32 %v6338, %v6341
      %v6343 = vsel %vm2723, %v6317, %v6342
      %v6412 = vunpack.c.l.b16 %v5879
      %v6413 = vunpack.c.l.b16 %v5880
      %v6414 = vunpack.c.l.b16 %v5881
      %v6415 = vunpack.c.l.b16 %v5882
      %v6416 = vunpack.c.l.b16 %v5883
      %v6417 = vunpack.c.l.b16 %v5884
      %v6418 = vunpack.c.l.b16 %v5885
      %v6419 = vunpack.c.l.b16 %v5886
      %v6420 = vunpack.c.l.b16 %v5887
      %v6421 = vunpack.c.l.b16 %v5888
      %v6422 = vunpack.c.l.b16 %v5889
      %v6423 = vunpack.c.l.b16 %v5890
      %v6424 = vunpack.c.l.b16 %v5891
      %v6425 = vunpack.c.l.b16 %v5892
      %v6426 = vunpack.c.l.b16 %v5893
      %v6427 = vunpack.c.l.b16 %v5894
      %v6428 = vunpack.c.l.b16 %v5895
      %v6429 = vunpack.c.l.b16 %v5896
      %v6430 = vunpack.c.l.b16 %v5897
      %v6431 = vunpack.c.l.b16 %v5898
      %v6432 = vunpack.c.l.b16 %v5899
      %v6433 = vunpack.c.l.b16 %v5900
      %v6434 = vunpack.c.l.b16 %v5901
      %v6435 = vunpack.c.l.b16 %v5902
      %v6436 = vunpack.c.l.b16 %v5903
      %v6437 = vunpack.c.l.b16 %v5904
      %v6438 = vunpack.c.l.b16 %v5905
      %v6439 = vunpack.c.l.b16 %v5906
      %v6440 = vunpack.c.l.b16 %v5907
      %v6441 = vunpack.c.l.b16 %v5908
      %v6442 = vunpack.c.l.b16 %v5909
      %v6443 = vunpack.c.l.b16 %v5910
      %v6444 = vunpack.c.l.b16 %v5911
      %v6445 = vunpack.c.l.b16 %v5912
      %v6446 = vunpack.c.l.b16 %v5913
      %v6447 = vunpack.c.l.b16 %v5914
      %v6448 = vpack.c.b16 %v6413, %v6412
      %v6449 = vpack.c.b16 %v6415, %v6414
      %v6450 = vpack.c.b16 %v6417, %v6416
      %v6451 = vpack.c.b16 %v6419, %v6418
      %v6452 = vpack.c.b16 %v6421, %v6420
      %v6453 = vpack.c.b16 %v6423, %v6422
      %v6454 = vpack.c.b16 %v6425, %v6424
      %v6455 = vpack.c.b16 %v6427, %v6426
      %v6456 = vpack.c.b16 %v6429, %v6428
      %v6457 = vpack.c.b16 %v6431, %v6430
      %v6458 = vpack.c.b16 %v6433, %v6432
      %v6459 = vpack.c.b16 %v6435, %v6434
      %v6460 = vpack.c.b16 %v6437, %v6436
      %v6461 = vpack.c.b16 %v6439, %v6438
      %v6462 = vpack.c.b16 %v6441, %v6440
      %v6463 = vpack.c.b16 %v6443, %v6442
      %v6464 = vpack.c.b16 %v6445, %v6444
      %v6465 = vpack.c.b16 %v6447, %v6446
      %v6485 = vsel %vm488, %v5968, 0
      %v6488 = vsel %vm488, %v5993, 0
      %v6491 = vsel %vm488, %v6018, 0
      %v6494 = vsel %vm488, %v6043, 0
      %v6497 = vsel %vm488, %v6068, 0
      %v6500 = vsel %vm488, %v6093, 0
      %v6503 = vsel %vm488, %v6118, 0
      %v6506 = vsel %vm488, %v6143, 0
      %v6509 = vsel %vm488, %v6168, 0
      %v6512 = vsel %vm488, %v6193, 0
      %v6515 = vsel %vm488, %v6218, 0
      %v6518 = vsel %vm488, %v6243, 0
      %v6521 = vsel %vm488, %v6268, 0
      %v6524 = vsel %vm488, %v6293, 0
      %v6527 = vsel %vm488, %v6318, 0
      %v6530 = vsel %vm488, %v6343, 0
      %6532 = vmatprep.subr.bf16.mxu0 0
      %6533 = vmatpush1.bf16.msra.mxu0 %v6448
      %6534 = vmatprep.subr.bf16.mxu0 0
      %6535 = vmatpush1.bf16.msra.mxu0 %v6449
      %6536 = vmatprep.subr.bf16.mxu0 0
      %6537 = vmatpush1.bf16.msra.mxu0 %v6450
      %6538 = vmatprep.subr.bf16.mxu0 0
      %6539 = vmatpush1.bf16.msra.mxu0 %v6451
      %6540 = vmatprep.subr.bf16.mxu0 0
      %6541 = vmatpush1.bf16.msra.mxu0 %v6452
      %6542 = vmatprep.subr.bf16.mxu0 0
      %6543 = vmatpush1.bf16.msra.mxu0 %v6453
      %6544 = vmatprep.subr.bf16.mxu0 0
      %6545 = vmatpush1.bf16.msra.mxu0 %v6454
      %6546 = vmatprep.subr.bf16.mxu0 0
      %6547 = vmatpush1.bf16.msra.mxu0 %v6455
      %6548 = vmatprep.subr.bf16.mxu0 0
      %6549 = vmatpush1.bf16.msra.mxu0 %v6456
      %6550 = vmatprep.subr.bf16.mxu0 0
      %6551 = vmatpush1.bf16.msra.mxu0 %v6457
      %6552 = vmatprep.subr.bf16.mxu0 0
      %6553 = vmatpush1.bf16.msra.mxu0 %v6458
      %6554 = vmatprep.subr.bf16.mxu0 0
      %6555 = vmatpush1.bf16.msra.mxu0 %v6459
      %6556 = vmatprep.subr.bf16.mxu0 0
      %6557 = vmatpush1.bf16.msra.mxu0 %v6460
      %6558 = vmatprep.subr.bf16.mxu0 0
      %6559 = vmatpush1.bf16.msra.mxu0 %v6461
      %6560 = vmatprep.subr.bf16.mxu0 0
      %6561 = vmatpush1.bf16.msra.mxu0 %v6462
      %6562 = vmatprep.subr.bf16.mxu0 0
      %6563 = vmatpush1.bf16.msra.mxu0 %v6463
      %6564 = vmatprep.mubr.bf16.mxu0 %v5951
      %6565 = vmatmul.mubr.bf16.gmra.mrb[0].mxu0 %v5936
      %v6566 = vpop.f32.mrb[0].mxu0
      %v6567 = vadd.f32 %v5920, %v6566
      %v6568 = vpop.f32.mrb[0].mxu0
      %v6569 = vpop.f32.mrb[0].mxu0
      %v6570 = vadd.f32 %v5920, %v6569
      %v6571 = vpop.f32.mrb[0].mxu0
      %6572 = vmatprep.mubr.bf16.mxu0 %v5984
      %6573 = vmatmul.mubr.bf16.gmra.mrb[0].mxu0 %v5976
      %v6574 = vpop.f32.mrb[0].mxu0
      %v6575 = vadd.f32 %v5920, %v6574
      %v6576 = vpop.f32.mrb[0].mxu0
      %v6577 = vpop.f32.mrb[0].mxu0
      %v6578 = vadd.f32 %v5920, %v6577
      %v6579 = vpop.f32.mrb[0].mxu0
      %6580 = vmatprep.mubr.bf16.mxu0 %v6009
      %6581 = vmatmul.mubr.bf16.gmra.mrb[0].mxu0 %v6001
      %v6582 = vpop.f32.mrb[0].mxu0
      %v6583 = vadd.f32 %v5920, %v6582
      %v6584 = vpop.f32.mrb[0].mxu0
      %v6585 = vpop.f32.mrb[0].mxu0
      %v6586 = vadd.f32 %v5920, %v6585
      %v6587 = vpop.f32.mrb[0].mxu0
      %6588 = vmatprep.mubr.bf16.mxu0 %v6034
      %6589 = vmatmul.mubr.bf16.gmra.mrb[0].mxu0 %v6026
      %v6590 = vpop.f32.mrb[0].mxu0
      %v6591 = vadd.f32 %v5920, %v6590
      %v6592 = vpop.f32.mrb[0].mxu0
      %v6593 = vpop.f32.mrb[0].mxu0
      %v6594 = vadd.f32 %v5920, %v6593
      %v6595 = vpop.f32.mrb[0].mxu0
      %6596 = vmatprep.mubr.bf16.mxu0 %v6059
      %6597 = vmatmul.mubr.bf16.gmra.mrb[0].mxu0 %v6051
      %v6598 = vpop.f32.mrb[0].mxu0
      %v6599 = vadd.f32 %v5920, %v6598
      %v6600 = vpop.f32.mrb[0].mxu0
      %v6601 = vpop.f32.mrb[0].mxu0
      %v6602 = vadd.f32 %v5920, %v6601
      %v6603 = vpop.f32.mrb[0].mxu0
      %6604 = vmatprep.mubr.bf16.mxu0 %v6084
      %6605 = vmatmul.mubr.bf16.gmra.mrb[0].mxu0 %v6076
      %v6606 = vpop.f32.mrb[0].mxu0
      %v6607 = vadd.f32 %v5920, %v6606
      %v6608 = vpop.f32.mrb[0].mxu0
      %v6609 = vpop.f32.mrb[0].mxu0
      %v6610 = vadd.f32 %v5920, %v6609
      %v6611 = vpop.f32.mrb[0].mxu0
      %6612 = vmatprep.mubr.bf16.mxu0 %v6109
      %6613 = vmatmul.mubr.bf16.gmra.mrb[0].mxu0 %v6101
      %v6614 = vpop.f32.mrb[0].mxu0
      %v6615 = vadd.f32 %v5920, %v6614
      %v6616 = vpop.f32.mrb[0].mxu0
      %v6617 = vpop.f32.mrb[0].mxu0
      %v6618 = vadd.f32 %v5920, %v6617
      %v6619 = vpop.f32.mrb[0].mxu0
      %6620 = vmatprep.mubr.bf16.mxu0 %v6134
      %6621 = vmatmul.mubr.bf16.gmra.mrb[0].mxu0 %v6126
      %v6622 = vpop.f32.mrb[0].mxu0
      %v6623 = vadd.f32 %v5920, %v6622
      %v6624 = vpop.f32.mrb[0].mxu0
      %v6625 = vpop.f32.mrb[0].mxu0
      %v6626 = vadd.f32 %v5920, %v6625
      %v6627 = vpop.f32.mrb[0].mxu0
      %6628 = vmatprep.mubr.bf16.mxu0 %v6159
      %6629 = vmatmul.mubr.bf16.gmra.mrb[0].mxu0 %v6151
      %v6630 = vpop.f32.mrb[0].mxu0
      %v6631 = vadd.f32 %v5920, %v6630
      %v6632 = vpop.f32.mrb[0].mxu0
      %v6633 = vpop.f32.mrb[0].mxu0
      %v6634 = vadd.f32 %v5920, %v6633
      %v6635 = vpop.f32.mrb[0].mxu0
      %6636 = vmatprep.mubr.bf16.mxu0 %v6184
      %6637 = vmatmul.mubr.bf16.gmra.mrb[0].mxu0 %v6176
      %v6638 = vpop.f32.mrb[0].mxu0
      %v6639 = vadd.f32 %v5920, %v6638
      %v6640 = vpop.f32.mrb[0].mxu0
      %v6641 = vpop.f32.mrb[0].mxu0
      %v6642 = vadd.f32 %v5920, %v6641
      %v6643 = vpop.f32.mrb[0].mxu0
      %6644 = vmatprep.mubr.bf16.mxu0 %v6209
      %6645 = vmatmul.mubr.bf16.gmra.mrb[0].mxu0 %v6201
      %v6646 = vpop.f32.mrb[0].mxu0
      %v6647 = vadd.f32 %v5920, %v6646
      %v6648 = vpop.f32.mrb[0].mxu0
      %v6649 = vpop.f32.mrb[0].mxu0
      %v6650 = vadd.f32 %v5920, %v6649
      %v6651 = vpop.f32.mrb[0].mxu0
      %6652 = vmatprep.mubr.bf16.mxu0 %v6234
      %6653 = vmatmul.mubr.bf16.gmra.mrb[0].mxu0 %v6226
      %v6654 = vpop.f32.mrb[0].mxu0
      %v6655 = vadd.f32 %v5920, %v6654
      %v6656 = vpop.f32.mrb[0].mxu0
      %v6657 = vpop.f32.mrb[0].mxu0
      %v6658 = vadd.f32 %v5920, %v6657
      %v6659 = vpop.f32.mrb[0].mxu0
      %6660 = vmatprep.mubr.bf16.mxu0 %v6259
      %6661 = vmatmul.mubr.bf16.gmra.mrb[0].mxu0 %v6251
      %v6662 = vpop.f32.mrb[0].mxu0
      %v6663 = vadd.f32 %v5920, %v6662
      %v6664 = vpop.f32.mrb[0].mxu0
      %v6665 = vpop.f32.mrb[0].mxu0
      %v6666 = vadd.f32 %v5920, %v6665
      %v6667 = vpop.f32.mrb[0].mxu0
      %6668 = vmatprep.mubr.bf16.mxu0 %v6284
      %6669 = vmatmul.mubr.bf16.gmra.mrb[0].mxu0 %v6276
      %v6670 = vpop.f32.mrb[0].mxu0
      %v6671 = vadd.f32 %v5920, %v6670
      %v6672 = vpop.f32.mrb[0].mxu0
      %v6673 = vpop.f32.mrb[0].mxu0
      %v6674 = vadd.f32 %v5920, %v6673
      %v6675 = vpop.f32.mrb[0].mxu0
      %6676 = vmatprep.mubr.bf16.mxu0 %v6309
      %6677 = vmatmul.mubr.bf16.gmra.mrb[0].mxu0 %v6301
      %v6678 = vpop.f32.mrb[0].mxu0
      %v6679 = vadd.f32 %v5920, %v6678
      %v6680 = vpop.f32.mrb[0].mxu0
      %v6681 = vpop.f32.mrb[0].mxu0
      %v6682 = vadd.f32 %v5920, %v6681
      %v6683 = vpop.f32.mrb[0].mxu0
      %6684 = vmatprep.mubr.bf16.mxu0 %v6334
      %6685 = vmatmul.mubr.bf16.gmra.mrb[0].mxu0 %v6326
      %v6686 = vpop.f32.mrb[0].mxu0
      %v6687 = vadd.f32 %v5920, %v6686
      %v6688 = vpop.f32.mrb[0].mxu0
      %v6689 = vpop.f32.mrb[0].mxu0
      %v6690 = vadd.f32 %v5920, %v6689
      %v6691 = vpop.f32.mrb[0].mxu0
      %6692 = vdwg.mxu0
      %6693 = vmatprep.subr.bf16.mxu0 0
      %6694 = vmatpush1.bf16.msra.mxu0 %v6464
      %6695 = vmatprep.subr.bf16.mxu0 0
      %6696 = vmatpush1.bf16.msra.mxu0 %v6465
      %6697 = vmatprep.subr.bf16.mxu0 0
      %6698 = vmatpush1.bf16.msra.mxu0 0
      %6699 = vmatprep.subr.bf16.mxu0 0
      %6700 = vmatpush1.bf16.msra.mxu0 0
      %6701 = vmatprep.subr.bf16.mxu0 0
      %6702 = vmatpush1.bf16.msra.mxu0 0
      %6703 = vmatprep.subr.bf16.mxu0 0
      %6704 = vmatpush1.bf16.msra.mxu0 0
      %6705 = vmatprep.subr.bf16.mxu0 0
      %6706 = vmatpush1.bf16.msra.mxu0 0
      %6707 = vmatprep.subr.bf16.mxu0 0
      %6708 = vmatpush1.bf16.msra.mxu0 0
      %6709 = vmatprep.subr.bf16.mxu0 0
      %6710 = vmatpush1.bf16.msra.mxu0 0
      %6711 = vmatprep.subr.bf16.mxu0 0
      %6712 = vmatpush1.bf16.msra.mxu0 0
      %6713 = vmatprep.subr.bf16.mxu0 0
      %6714 = vmatpush1.bf16.msra.mxu0 0
      %6715 = vmatprep.subr.bf16.mxu0 0
      %6716 = vmatpush1.bf16.msra.mxu0 0
      %6717 = vmatprep.subr.bf16.mxu0 0
      %6718 = vmatpush1.bf16.msra.mxu0 0
      %6719 = vmatprep.subr.bf16.mxu0 0
      %6720 = vmatpush1.bf16.msra.mxu0 0
      %6721 = vmatprep.subr.bf16.mxu0 0
      %6722 = vmatpush1.bf16.msra.mxu0 0
      %6723 = vmatprep.subr.bf16.mxu0 0
      %6724 = vmatpush1.bf16.msra.mxu0 0
      %6725 = vmatprep.mubr.bf16.mxu0 0
      %6726 = vmatmul.mubr.bf16.gmra.mrb[0].mxu0 %v6485
      %v6727 = vpop.f32.mrb[0].mxu0
      %v6728 = vadd.f32 %v6567, %v6727
      %v6729 = vpop.f32.mrb[0].mxu0
      %v6730 = vpop.f32.mrb[0].mxu0
      %v6731 = vadd.f32 %v6570, %v6730
      %v6732 = vpop.f32.mrb[0].mxu0
      %6733 = vmatprep.mubr.bf16.mxu0 0
      %6734 = vmatmul.mubr.bf16.gmra.mrb[0].mxu0 %v6488
      %v6735 = vpop.f32.mrb[0].mxu0
      %v6736 = vadd.f32 %v6575, %v6735
      %v6737 = vpop.f32.mrb[0].mxu0
      %v6738 = vpop.f32.mrb[0].mxu0
      %v6739 = vadd.f32 %v6578, %v6738
      %v6740 = vpop.f32.mrb[0].mxu0
      %6741 = vmatprep.mubr.bf16.mxu0 0
      %6742 = vmatmul.mubr.bf16.gmra.mrb[0].mxu0 %v6491
      %v6743 = vpop.f32.mrb[0].mxu0
      %v6744 = vadd.f32 %v6583, %v6743
      %v6745 = vpop.f32.mrb[0].mxu0
      %v6746 = vpop.f32.mrb[0].mxu0
      %v6747 = vadd.f32 %v6586, %v6746
      %v6748 = vpop.f32.mrb[0].mxu0
      %6749 = vmatprep.mubr.bf16.mxu0 0
      %6750 = vmatmul.mubr.bf16.gmra.mrb[0].mxu0 %v6494
      %v6751 = vpop.f32.mrb[0].mxu0
      %v6752 = vadd.f32 %v6591, %v6751
      %v6753 = vpop.f32.mrb[0].mxu0
      %v6754 = vpop.f32.mrb[0].mxu0
      %v6755 = vadd.f32 %v6594, %v6754
      %v6756 = vpop.f32.mrb[0].mxu0
      %6757 = vmatprep.mubr.bf16.mxu0 0
      %6758 = vmatmul.mubr.bf16.gmra.mrb[0].mxu0 %v6497
      %v6759 = vpop.f32.mrb[0].mxu0
      %v6760 = vadd.f32 %v6599, %v6759
      %v6761 = vpop.f32.mrb[0].mxu0
      %v6762 = vpop.f32.mrb[0].mxu0
      %v6763 = vadd.f32 %v6602, %v6762
      %v6764 = vpop.f32.mrb[0].mxu0
      %6765 = vmatprep.mubr.bf16.mxu0 0
      %6766 = vmatmul.mubr.bf16.gmra.mrb[0].mxu0 %v6500
      %v6767 = vpop.f32.mrb[0].mxu0
      %v6768 = vadd.f32 %v6607, %v6767
      %v6769 = vpop.f32.mrb[0].mxu0
      %v6770 = vpop.f32.mrb[0].mxu0
      %v6771 = vadd.f32 %v6610, %v6770
      %v6772 = vpop.f32.mrb[0].mxu0
      %6773 = vmatprep.mubr.bf16.mxu0 0
      %6774 = vmatmul.mubr.bf16.gmra.mrb[0].mxu0 %v6503
      %v6775 = vpop.f32.mrb[0].mxu0
      %v6776 = vadd.f32 %v6615, %v6775
      %v6777 = vpop.f32.mrb[0].mxu0
      %v6778 = vpop.f32.mrb[0].mxu0
      %v6779 = vadd.f32 %v6618, %v6778
      %v6780 = vpop.f32.mrb[0].mxu0
      %6781 = vmatprep.mubr.bf16.mxu0 0
      %6782 = vmatmul.mubr.bf16.gmra.mrb[0].mxu0 %v6506
      %v6783 = vpop.f32.mrb[0].mxu0
      %v6784 = vadd.f32 %v6623, %v6783
      %v6785 = vpop.f32.mrb[0].mxu0
      %v6786 = vpop.f32.mrb[0].mxu0
      %v6787 = vadd.f32 %v6626, %v6786
      %v6788 = vpop.f32.mrb[0].mxu0
      %6789 = vmatprep.mubr.bf16.mxu0 0
      %6790 = vmatmul.mubr.bf16.gmra.mrb[0].mxu0 %v6509
      %v6791 = vpop.f32.mrb[0].mxu0
      %v6792 = vadd.f32 %v6631, %v6791
      %v6793 = vpop.f32.mrb[0].mxu0
      %v6794 = vpop.f32.mrb[0].mxu0
      %v6795 = vadd.f32 %v6634, %v6794
      %v6796 = vpop.f32.mrb[0].mxu0
      %6797 = vmatprep.mubr.bf16.mxu0 0
      %6798 = vmatmul.mubr.bf16.gmra.mrb[0].mxu0 %v6512
      %v6799 = vpop.f32.mrb[0].mxu0
      %v6800 = vadd.f32 %v6639, %v6799
      %v6801 = vpop.f32.mrb[0].mxu0
      %v6802 = vpop.f32.mrb[0].mxu0
      %v6803 = vadd.f32 %v6642, %v6802
      %v6804 = vpop.f32.mrb[0].mxu0
      %6805 = vmatprep.mubr.bf16.mxu0 0
      %6806 = vmatmul.mubr.bf16.gmra.mrb[0].mxu0 %v6515
      %v6807 = vpop.f32.mrb[0].mxu0
      %v6808 = vadd.f32 %v6647, %v6807
      %v6809 = vpop.f32.mrb[0].mxu0
      %v6810 = vpop.f32.mrb[0].mxu0
      %v6811 = vadd.f32 %v6650, %v6810
      %v6812 = vpop.f32.mrb[0].mxu0
      %6813 = vmatprep.mubr.bf16.mxu0 0
      %6814 = vmatmul.mubr.bf16.gmra.mrb[0].mxu0 %v6518
      %v6815 = vpop.f32.mrb[0].mxu0
      %v6816 = vadd.f32 %v6655, %v6815
      %v6817 = vpop.f32.mrb[0].mxu0
      %v6818 = vpop.f32.mrb[0].mxu0
      %v6819 = vadd.f32 %v6658, %v6818
      %v6820 = vpop.f32.mrb[0].mxu0
      %6821 = vmatprep.mubr.bf16.mxu0 0
      %6822 = vmatmul.mubr.bf16.gmra.mrb[0].mxu0 %v6521
      %v6823 = vpop.f32.mrb[0].mxu0
      %v6824 = vadd.f32 %v6663, %v6823
      %v6825 = vpop.f32.mrb[0].mxu0
      %v6826 = vpop.f32.mrb[0].mxu0
      %v6827 = vadd.f32 %v6666, %v6826
      %v6828 = vpop.f32.mrb[0].mxu0
      %6829 = vmatprep.mubr.bf16.mxu0 0
      %6830 = vmatmul.mubr.bf16.gmra.mrb[0].mxu0 %v6524
      %v6831 = vpop.f32.mrb[0].mxu0
      %v6832 = vadd.f32 %v6671, %v6831
      %v6833 = vpop.f32.mrb[0].mxu0
      %v6834 = vpop.f32.mrb[0].mxu0
      %v6835 = vadd.f32 %v6674, %v6834
      %v6836 = vpop.f32.mrb[0].mxu0
      %6837 = vmatprep.mubr.bf16.mxu0 0
      %6838 = vmatmul.mubr.bf16.gmra.mrb[0].mxu0 %v6527
      %v6839 = vpop.f32.mrb[0].mxu0
      %v6840 = vadd.f32 %v6679, %v6839
      %v6841 = vpop.f32.mrb[0].mxu0
      %v6842 = vpop.f32.mrb[0].mxu0
      %v6843 = vadd.f32 %v6682, %v6842
      %v6844 = vpop.f32.mrb[0].mxu0
      %6845 = vmatprep.mubr.bf16.mxu0 0
      %6846 = vmatmul.mubr.bf16.gmra.mrb[0].mxu0 %v6530
      %v6847 = vpop.f32.mrb[0].mxu0
      %v6848 = vadd.f32 %v6687, %v6847
      %v6849 = vpop.f32.mrb[0].mxu0
      %v6850 = vpop.f32.mrb[0].mxu0
      %v6851 = vadd.f32 %v6690, %v6850
      %v6852 = vpop.f32.mrb[0].mxu0
      %6853 = vdwg.mxu0
      %v6854 = vpack.c.bf16 %v6731, %v6728
      %v6855 = vpack.c.bf16 %v6739, %v6736
      %v6856 = vpack.c.bf16 %v6747, %v6744
      %v6857 = vpack.c.bf16 %v6755, %v6752
      %v6858 = vpack.c.bf16 %v6763, %v6760
      %v6859 = vpack.c.bf16 %v6771, %v6768
      %v6860 = vpack.c.bf16 %v6779, %v6776
      %v6861 = vpack.c.bf16 %v6787, %v6784
      %v6862 = vpack.c.bf16 %v6795, %v6792
      %v6863 = vpack.c.bf16 %v6803, %v6800
      %v6864 = vpack.c.bf16 %v6811, %v6808
      %v6865 = vpack.c.bf16 %v6819, %v6816
      %v6866 = vpack.c.bf16 %v6827, %v6824
      %v6867 = vpack.c.bf16 %v6835, %v6832
      %v6868 = vpack.c.bf16 %v6843, %v6840
      %v6869 = vpack.c.bf16 %v6851, %v6848
      %v6886 = vunpack.c.l.b16 %v6854
      %v6887 = vunpack.c.h.b16 %v6854
      %v6888 = vunpack.c.l.b16 %v6855
      %v6889 = vunpack.c.h.b16 %v6855
      %v6890 = vunpack.c.l.b16 %v6856
      %v6891 = vunpack.c.h.b16 %v6856
      %v6892 = vunpack.c.l.b16 %v6857
      %v6893 = vunpack.c.h.b16 %v6857
      %v6894 = vunpack.c.l.b16 %v6858
      %v6895 = vunpack.c.h.b16 %v6858
      %v6896 = vunpack.c.l.b16 %v6859
      %v6897 = vunpack.c.h.b16 %v6859
      %v6898 = vunpack.c.l.b16 %v6860
      %v6899 = vunpack.c.h.b16 %v6860
      %v6900 = vunpack.c.l.b16 %v6861
      %v6901 = vunpack.c.h.b16 %v6861
      %v6902 = vunpack.c.l.b16 %v6862
      %v6903 = vunpack.c.h.b16 %v6862
      %v6904 = vunpack.c.l.b16 %v6863
      %v6905 = vunpack.c.h.b16 %v6863
      %v6906 = vunpack.c.l.b16 %v6864
      %v6907 = vunpack.c.h.b16 %v6864
      %v6908 = vunpack.c.l.b16 %v6865
      %v6909 = vunpack.c.h.b16 %v6865
      %v6910 = vunpack.c.l.b16 %v6866
      %v6911 = vunpack.c.h.b16 %v6866
      %v6912 = vunpack.c.l.b16 %v6867
      %v6913 = vunpack.c.h.b16 %v6867
      %v6914 = vunpack.c.l.b16 %v6868
      %v6915 = vunpack.c.h.b16 %v6868
      %v6916 = vunpack.c.l.b16 %v6869
      %v6917 = vunpack.c.h.b16 %v6869
      %v6918 = vpack.c.b16 %v6886, %v6886
      %v6919 = vpack.c.b16 %v6887, %v6887
      %v6920 = vpack.c.b16 %v6888, %v6888
      %v6921 = vpack.c.b16 %v6889, %v6889
      %v6922 = vpack.c.b16 %v6890, %v6890
      %v6923 = vpack.c.b16 %v6891, %v6891
      %v6924 = vpack.c.b16 %v6892, %v6892
      %v6925 = vpack.c.b16 %v6893, %v6893
      %v6926 = vpack.c.b16 %v6894, %v6894
      %v6927 = vpack.c.b16 %v6895, %v6895
      %v6928 = vpack.c.b16 %v6896, %v6896
      %v6929 = vpack.c.b16 %v6897, %v6897
      %v6930 = vpack.c.b16 %v6898, %v6898
      %v6931 = vpack.c.b16 %v6899, %v6899
      %v6932 = vpack.c.b16 %v6900, %v6900
      %v6933 = vpack.c.b16 %v6901, %v6901
      %v6934 = vpack.c.b16 %v6902, %v6902
      %v6935 = vpack.c.b16 %v6903, %v6903
      %v6936 = vpack.c.b16 %v6904, %v6904
      %v6937 = vpack.c.b16 %v6905, %v6905
      %v6938 = vpack.c.b16 %v6906, %v6906
      %v6939 = vpack.c.b16 %v6907, %v6907
      %v6940 = vpack.c.b16 %v6908, %v6908
      %v6941 = vpack.c.b16 %v6909, %v6909
      %v6942 = vpack.c.b16 %v6910, %v6910
      %v6943 = vpack.c.b16 %v6911, %v6911
      %v6944 = vpack.c.b16 %v6912, %v6912
      %v6945 = vpack.c.b16 %v6913, %v6913
      %v6946 = vpack.c.b16 %v6914, %v6914
      %v6947 = vpack.c.b16 %v6915, %v6915
      %v6948 = vpack.c.b16 %v6916, %v6916
      %v6949 = vpack.c.b16 %v6917, %v6917
      %6982 = vst [vmem:[%s332] sm:$0xf] %v6918
      %6983 = vst [vmem:[%s332 + $0x4] sm:$0xf] %v6919
      %6984 = vst [vmem:[%s332 + $0x8] sm:$0xf] %v6920
      %6985 = vst [vmem:[%s332 + $0xc] sm:$0xf] %v6921
      %6986 = vst [vmem:[%s332 + $0x10] sm:$0xf] %v6922
      %6987 = vst [vmem:[%s332 + $0x14] sm:$0xf] %v6923
      %6988 = vst [vmem:[%s332 + $0x18] sm:$0xf] %v6924
      %6989 = vst [vmem:[%s332 + $0x1c] sm:$0xf] %v6925
      %6990 = vst [vmem:[%s332 + $0x20] sm:$0xf] %v6926
      %6991 = vst [vmem:[%s332 + $0x24] sm:$0xf] %v6927
      %6992 = vst [vmem:[%s332 + $0x28] sm:$0xf] %v6928
      %6993 = vst [vmem:[%s332 + $0x2c] sm:$0xf] %v6929
      %6994 = vst [vmem:[%s332 + $0x30] sm:$0xf] %v6930
      %6995 = vst [vmem:[%s332 + $0x34] sm:$0xf] %v6931
      %6996 = vst [vmem:[%s332 + $0x38] sm:$0xf] %v6932
      %6997 = vst [vmem:[%s332 + $0x3c] sm:$0xf] %v6933
      %6998 = vst [vmem:[%s332 + $0x40] sm:$0xf] %v6934
      %6999 = vst [vmem:[%s332 + $0x44] sm:$0xf] %v6935
      %7000 = vst [vmem:[%s332 + $0x48] sm:$0xf] %v6936
      %7001 = vst [vmem:[%s332 + $0x4c] sm:$0xf] %v6937
      %7002 = vst [vmem:[%s332 + $0x50] sm:$0xf] %v6938
      %7003 = vst [vmem:[%s332 + $0x54] sm:$0xf] %v6939
      %7004 = vst [vmem:[%s332 + $0x58] sm:$0xf] %v6940
      %7005 = vst [vmem:[%s332 + $0x5c] sm:$0xf] %v6941
      %7006 = vst [vmem:[%s332 + $0x60] sm:$0xf] %v6942
      %7007 = vst [vmem:[%s332 + $0x64] sm:$0xf] %v6943
      %7008 = vst [vmem:[%s332 + $0x68] sm:$0xf] %v6944
      %7009 = vst [vmem:[%s332 + $0x6c] sm:$0xf] %v6945
      %7010 = vst [vmem:[%s332 + $0x70] sm:$0xf] %v6946
      %7011 = vst [vmem:[%s332 + $0x74] sm:$0xf] %v6947
      %7012 = vst [vmem:[%s332 + $0x78] sm:$0xf] %v6948
      %7013 = vst [vmem:[%s332 + $0x7c] sm:$0xf] %v6949
      %p7014 = scmp.lt.s32.totalorder %s20, 1
      %s7015 = scalar_select %p7014, %s20, 1
      %s7016 = smul.addr %s7015, 32
      %s7017 = smul.addr %s7016, 4
      %s7018 = scalar_lea.vmem %s9, %s7017
      // Predicated region
      $region57: #{mobilevod_forward.1} parent=55 // pred_check
        %p7019 = pneg %p232
      $region58: #{mobilevod_forward.1} parent=55 // pred_check_branch
        %7021 = sbr.rel (%p7019) target = $region60
      $region59: #{mobilevod_forward.1} parent=55 // pred_region
        _
      $region60: #{mobilevod_forward.1} parent=55 // pred_fallthru
        _
    $region56: #{mobilevod_forward.1} parent=5 // pred_fallthru
      _
    %p7022 = scmp.le.s32.totalorder 2, %s15
    // Predicated region
    $region61: #{mobilevod_forward.1} parent=5 // pred_check
      %p7023 = pneg %p7022
    $region62: #{mobilevod_forward.1} parent=5 // pred_check_branch
      %7025 = sbr.rel (%p7023) target = $region64
    $region63: #{mobilevod_forward.1} parent=5 // pred_region
      %s7026 = ssub.s32 %s15, 2
      // Predicated region
      $region65: #{mobilevod_forward.1} parent=63 // pred_check
        %p7027 = pneg %p238
      $region66: #{mobilevod_forward.1} parent=63 // pred_check_branch
        %7029 = sbr.rel (%p7027) target = $region68
      $region67: #{mobilevod_forward.1} parent=63 // pred_region
        %p7030 = scmp.lt.s32.totalorder %s21, 1
        %s7031 = scalar_select %p7030, %s21, 1
        %s7032 = smul.addr %s7031, 32
        %s7033 = smul.addr %s7032, 4
        %s7034 = scalar_lea.vmem %s9, %s7033
      $region68: #{mobilevod_forward.1} parent=63 // pred_fallthru
        _
    $region64: #{mobilevod_forward.1} parent=5 // pred_fallthru
      _
  $region6: #{mobilevod_forward.1} parent=0 // loop_footer
    %s19 = sadd.s32 1, %s15
  $region7: #{mobilevod_forward.1} parent=0 // loop_footer_branch
    %14 = sbr.rel target = $region3
  $region8: #{mobilevod_forward.1} parent=0 // loop_exit
    _

</llo_original>
